<compile_context>
chip_gen: v5e
topology: v5e:2x2
jax: 0.10.0
libtpu: 0.0.40
codegen_flags: <defaults>
</compile_context>

<pallas_src>
import math

import jax
import jax.numpy as jnp
from jax.experimental import pallas as pl
from jax.experimental.pallas import tpu as pltpu


# ----------------------------------------------------------------------------
# Pallas kernels
# ----------------------------------------------------------------------------
def _make_lgc_ca_kernel(H, with_softmax):
    """Fused Gabor-conv (matmul) + CoordAtt [+ scale & channel-softmax]."""

    def kernel(patch_ref, gk_ref, P_ref, EH_ref, EW_ref,
               w1_ref, b1_ref, wh_ref, bh_ref, ww_ref, bw_ref, *rest):
        if with_softmax:
            ab_ref, o_ref = rest
        else:
            (o_ref,) = rest

        # --- LGC: (C, K) @ (K, HW) on the MXU, bf16 operands, f32 accumulate.
        y = jnp.dot(gk_ref[...], patch_ref[0],
                    preferred_element_type=jnp.float32)              # (C, HW)

        # --- CoordAtt (everything f32, lane-dense, no reshapes) -------------
        # pooling: y @ P gives [mean over W | mean over H] = (C, H+W)
        yp = jnp.dot(y, P_ref[...], preferred_element_type=jnp.float32)
        # 1x1 conv + folded BatchNorm affine + h_swish
        y1 = jnp.dot(w1_ref[...], yp,
                     preferred_element_type=jnp.float32) + b1_ref[...]
        y1 = y1 * (jnp.clip(y1 + 3.0, 0.0, 6.0) * (1.0 / 6.0))
        yh = y1[:, :H]                                               # (mip, H)
        yw = y1[:, H:]                                               # (mip, W)
        a_h = jax.nn.sigmoid(
            jnp.dot(wh_ref[...], yh, preferred_element_type=jnp.float32)
            + bh_ref[...])                                           # (C, H)
        a_w = jax.nn.sigmoid(
            jnp.dot(ww_ref[...], yw, preferred_element_type=jnp.float32)
            + bw_ref[...])                                           # (C, W)
        # expand gates back to (C, HW) with one-hot matmuls (exact gather)
        gate = (jnp.dot(a_h, EH_ref[...], preferred_element_type=jnp.float32) *
                jnp.dot(a_w, EW_ref[...], preferred_element_type=jnp.float32))
        out = y * gate

        if with_softmax:
            # (x - b) * a, then softmax over the channel (sublane) axis.
            a = ab_ref[0, 0]
            b = ab_ref[0, 1]
            z = (out - b) * a
            z = z - jnp.max(z, axis=0, keepdims=True)
            e = jnp.exp(z)
            out = e / jnp.sum(e, axis=0, keepdims=True)

        o_ref[0] = out.astype(o_ref.dtype)

    return kernel


def _ppu_kernel(patch_ref, w1_ref, b1_ref, w2_ref, b2_ref, o_ref):
    # conv1 5x5 (valid) as one matmul; columns are ordered as four contiguous
    # slabs (one per 2x2-pool offset) so the maxpool is a max of lane slices.
    y = jnp.dot(w1_ref[...], patch_ref[0],
                preferred_element_type=jnp.float32) + b1_ref[...]   # (o1, 4*P)
    phw = y.shape[1] // 4
    pooled = jnp.maximum(
        jnp.maximum(y[:, 0 * phw:1 * phw], y[:, 1 * phw:2 * phw]),
        jnp.maximum(y[:, 2 * phw:3 * phw], y[:, 3 * phw:4 * phw]))  # (o1, P)
    out = jnp.dot(w2_ref[...], pooled,
                  preferred_element_type=jnp.float32) + b2_ref[...]  # (o2, P)
    o_ref[0] = out.astype(o_ref.dtype)


# ----------------------------------------------------------------------------
# Pallas wrappers
# ----------------------------------------------------------------------------
def lgc_coordatt_block(patches, gk, P, EH, EW, ca, ab=None):
    """patches: (N, K, HW) bf16; gk: (C, K) bf16.  Returns (N, C, HW) f32."""
    N, K, HW = patches.shape
    C = gk.shape[0]
    H = EH.shape[0]
    W = EW.shape[0]
    mip = ca["w1"].shape[0]
    kern = _make_lgc_ca_kernel(H, ab is not None)
    in_specs = [
        pl.BlockSpec((1, K, HW), lambda n: (n, 0, 0)),     # per-image patches
        pl.BlockSpec((C, K), lambda n: (0, 0)),            # gabor weights
        pl.BlockSpec((HW, H + W), lambda n: (0, 0)),       # pooling matrix
        pl.BlockSpec((H, HW), lambda n: (0, 0)),           # h-gate expansion
        pl.BlockSpec((W, HW), lambda n: (0, 0)),           # w-gate expansion
        pl.BlockSpec((mip, C), lambda n: (0, 0)),          # conv1 (BN folded)
        pl.BlockSpec((mip, 1), lambda n: (0, 0)),
        pl.BlockSpec((C, mip), lambda n: (0, 0)),          # conv_h
        pl.BlockSpec((C, 1), lambda n: (0, 0)),
        pl.BlockSpec((C, mip), lambda n: (0, 0)),          # conv_w
        pl.BlockSpec((C, 1), lambda n: (0, 0)),
    ]
    args = [patches, gk, P, EH, EW,
            ca["w1"], ca["b1"], ca["wh"], ca["bh"], ca["ww"], ca["bw"]]
    if ab is not None:
        in_specs.append(pl.BlockSpec((1, 2), lambda n: (0, 0),
                                     memory_space=pltpu.MemorySpace.SMEM))
        args.append(ab)
    return pl.pallas_call(
        kern,
        out_shape=jax.ShapeDtypeStruct((N, C, HW), jnp.float32),
        grid=(N,),
        in_specs=in_specs,
        out_specs=pl.BlockSpec((1, C, HW), lambda n: (n, 0, 0)),
        compiler_params=pltpu.CompilerParams(dimension_semantics=("parallel",)),
    )(*args)


def ppu_block(patches, w1, b1, w2, b2):
    """patches: (N, K, 4*PHW) bf16 (pool-slab column order). -> (N, o2, PHW)."""
    N, K, CW = patches.shape
    o1 = w1.shape[0]
    o2 = w2.shape[0]
    phw = CW // 4
    return pl.pallas_call(
        _ppu_kernel,
        out_shape=jax.ShapeDtypeStruct((N, o2, phw), jnp.float32),
        grid=(N,),
        in_specs=[
            pl.BlockSpec((1, K, CW), lambda n: (n, 0, 0)),
            pl.BlockSpec((o1, K), lambda n: (0, 0)),
            pl.BlockSpec((o1, 1), lambda n: (0, 0)),
            pl.BlockSpec((o2, o1), lambda n: (0, 0)),
            pl.BlockSpec((o2, 1), lambda n: (0, 0)),
        ],
        out_specs=pl.BlockSpec((1, o2, phw), lambda n: (n, 0, 0)),
        compiler_params=pltpu.CompilerParams(dimension_semantics=("parallel",)),
    )(patches, w1, b1, w2, b2)


# ----------------------------------------------------------------------------
# Plain-JAX glue: Gabor bank, transposed im2col, constants, parameter prep
# ----------------------------------------------------------------------------
def gen_gabor_bank(ksize, cin, cout, sigma, gamma, theta, f, psi):
    half = ksize // 2
    coords = jnp.arange(-half, half + 1, dtype=jnp.float32)
    y2 = jnp.broadcast_to(coords[None, :], (ksize, ksize))   # varies along cols
    x2 = jnp.broadcast_to(coords[:, None], (ksize, ksize))   # varies along rows
    x4 = jnp.broadcast_to(x2[None, None], (cout, cin, ksize, ksize))
    y4 = jnp.broadcast_to(y2[None, None], (cout, cin, ksize, ksize))
    th = theta.reshape(-1, 1, 1, 1)
    x_th = x4 * jnp.cos(th) + y4 * jnp.sin(th)
    y_th = -x4 * jnp.sin(th) + y4 * jnp.cos(th)
    sg = sigma.reshape(-1, 1, 1, 1)
    gb = -jnp.exp(-0.5 * ((gamma * x_th) ** 2 + y_th ** 2) / (8.0 * sg ** 2)) * \
        jnp.cos(2.0 * math.pi * f.reshape(-1, 1, 1, 1) * x_th +
                psi.reshape(-1, 1, 1, 1))
    gb = gb - gb.mean(axis=(2, 3), keepdims=True)
    return gb


def im2col_T(x, ksize, stride, pad):
    """x: (N, C, H, W) -> (N, C*k*k, OH*OW); row index = c*k*k + kh*k + kw."""
    N, C, H, W = x.shape
    xp = jnp.pad(x, ((0, 0), (0, 0), (pad, pad), (pad, pad)))
    OH = (H + 2 * pad - ksize) // stride + 1
    OW = (W + 2 * pad - ksize) // stride + 1
    cols = []
    for kh in range(ksize):
        for kw in range(ksize):
            cols.append(xp[:, :, kh:kh + stride * OH:stride,
                           kw:kw + stride * OW:stride])
    p = jnp.stack(cols, axis=2)                       # (N, C, k*k, OH, OW)
    return p.reshape(N, C * ksize * ksize, OH * OW), OH, OW


def im2col_T_pool2x2(x, ksize):
    """Valid-conv patches with columns ordered as 4 contiguous slabs, one per
    2x2 maxpool offset: col = (dh*2+dw)*PH*PW + ph*PW + pw."""
    N, C, H, W = x.shape
    OH, OW = H - ksize + 1, W - ksize + 1
    PH, PW = OH // 2, OW // 2
    cols = []
    for kh in range(ksize):
        for kw in range(ksize):
            cols.append(x[:, :, kh:kh + OH, kw:kw + OW])
    p = jnp.stack(cols, axis=2)                       # (N, C, k*k, OH, OW)
    subs = []
    for dh in range(2):
        for dw in range(2):
            subs.append(p[:, :, :, dh:2 * PH:2, dw:2 * PW:2])
    q = jnp.stack(subs, axis=3)                       # (N, C, k*k, 4, PH, PW)
    return q.reshape(N, C * ksize * ksize, 4 * PH * PW), PH, PW


def build_coordatt_consts(H, W):
    """Pooling matrix P (HW, H+W) and one-hot expansion matrices EH, EW."""
    q = jnp.arange(H * W, dtype=jnp.int32)
    row = q // W
    col = q % W
    eh = (jnp.arange(H, dtype=jnp.int32)[:, None] == row[None, :]
          ).astype(jnp.float32)                        # (H, HW)
    ew = (jnp.arange(W, dtype=jnp.int32)[:, None] == col[None, :]
          ).astype(jnp.float32)                        # (W, HW)
    P = jnp.concatenate([eh.T / float(W), ew.T / float(H)], axis=1)  # (HW, H+W)
    return P, eh, ew


def init_params(key, n_competitor=8, ksize=5, o1=32, o2=12):
    C = n_competitor
    mip = max(8, C)  # CoordAtt reduction = 1

    def u(k, shape, fan_in):
        bound = 1.0 / math.sqrt(fan_in)
        return jax.random.uniform(k, shape, jnp.float32, -bound, bound)

    keys = jax.random.split(key, 8)

    def ca_params(k):
        ks = jax.random.split(k, 6)
        return {
            "w1": u(ks[0], (mip, C), C), "b1": u(ks[1], (mip,), C),
            "bn_gamma": jnp.ones((mip,), jnp.float32),
            "bn_beta": jnp.zeros((mip,), jnp.float32),
            "bn_rm": jnp.zeros((mip,), jnp.float32),
            "bn_rv": jnp.ones((mip,), jnp.float32),
            "wh": u(ks[2], (C, mip), mip), "bh": u(ks[3], (C,), mip),
            "ww": u(ks[4], (C, mip), mip), "bw": u(ks[5], (C,), mip),
        }

    gabor = lambda: dict(
        sigma=jnp.array([9.2], jnp.float32), gamma=jnp.array([2.0], jnp.float32),
        f=jnp.array([0.057], jnp.float32), psi=jnp.array([0.0], jnp.float32),
        theta=jnp.arange(C, dtype=jnp.float32) * math.pi / C)

    return {
        "g1": gabor(), "g2": gabor(),
        "ca1": ca_params(keys[0]), "ca2": ca_params(keys[1]),
        "a": jnp.array([1.0], jnp.float32), "b": jnp.array([0.0], jnp.float32),
        "conv1_w": u(keys[2], (o1, C, 5, 5), C * 25),
        "conv1_b": u(keys[3], (o1,), C * 25),
        "conv2_w": u(keys[4], (o2, o1, 1, 1), o1),
        "conv2_b": u(keys[5], (o2,), o1),
    }


def prepare_inference_params(params, H, W, ksize, stride):
    """One-time weight prep: flatten/cast, fold BN, build constant matrices."""
    pad = ksize // 2
    OH = (H + 2 * pad - ksize) // stride + 1
    OW = (W + 2 * pad - ksize) // stride + 1
    P, EH, EW = build_coordatt_consts(OH, OW)
    eps = 1e-5

    def fold_ca(p):
        s = p["bn_gamma"] / jnp.sqrt(p["bn_rv"] + eps)
        return {
            "w1": (p["w1"] * s[:, None]).astype(jnp.float32),
            "b1": (p["b1"] * s + p["bn_beta"] - p["bn_rm"] * s
                   ).reshape(-1, 1).astype(jnp.float32),
            "wh": p["wh"].astype(jnp.float32),
            "bh": p["bh"].reshape(-1, 1).astype(jnp.float32),
            "ww": p["ww"].astype(jnp.float32),
            "bw": p["bw"].reshape(-1, 1).astype(jnp.float32),
        }

    o1 = params["conv1_w"].shape[0]
    o2 = params["conv2_w"].shape[0]
    return {
        "P": P, "EH": EH, "EW": EW,
        "ca1": fold_ca(params["ca1"]), "ca2": fold_ca(params["ca2"]),
        "ab": jnp.concatenate([params["a"], params["b"]]
                              ).reshape(1, 2).astype(jnp.float32),
        "conv1_w": params["conv1_w"].reshape(o1, -1).astype(jnp.bfloat16),
        "conv1_b": params["conv1_b"].reshape(o1, 1).astype(jnp.float32),
        "conv2_w": params["conv2_w"].reshape(o2, -1).astype(jnp.float32),
        "conv2_b": params["conv2_b"].reshape(o2, 1).astype(jnp.float32),
    }


# ----------------------------------------------------------------------------
# Full forward pass
# ----------------------------------------------------------------------------
def competitive_block_forward(x, params, prep, ksize, stride):
    N, Cin, H, W = x.shape
    C = params["g1"]["theta"].shape[0]
    pad = ksize // 2

    # --- LGC 1 + CoordAtt 1 (fused kernel, one image per grid step) ---------
    g1 = params["g1"]
    gk1 = gen_gabor_bank(ksize, Cin, C, g1["sigma"], g1["gamma"], g1["theta"],
                         g1["f"], g1["psi"]).reshape(C, Cin * ksize * ksize)
    p1, OH, OW = im2col_T(x, ksize, stride, pad)
    y = lgc_coordatt_block(p1.astype(jnp.bfloat16), gk1.astype(jnp.bfloat16),
                           prep["P"], prep["EH"], prep["EW"], prep["ca1"])
    y = y.reshape(N, C, OH, OW)                        # NCHW, contiguous

    # --- LGC 2 + CoordAtt 2 + (x - b)*a + channel softmax (fused kernel) ----
    g2 = params["g2"]
    gk2 = gen_gabor_bank(ksize, C, C, g2["sigma"], g2["gamma"], g2["theta"],
                         g2["f"], g2["psi"]).reshape(C, C * ksize * ksize)
    p2, OH2, OW2 = im2col_T(y, ksize, 1, pad)
    y = lgc_coordatt_block(p2.astype(jnp.bfloat16), gk2.astype(jnp.bfloat16),
                           prep["P"], prep["EH"], prep["EW"], prep["ca2"],
                           ab=prep["ab"])
    y = y.reshape(N, C, OH2, OW2)

    # --- PPU: conv1 5x5 valid + maxpool 2x2 + conv2 1x1 (fused kernel) ------
    p3, PH, PW = im2col_T_pool2x2(y, 5)
    out = ppu_block(p3.astype(jnp.bfloat16), prep["conv1_w"], prep["conv1_b"],
                    prep["conv2_w"], prep["conv2_b"])
    return out.reshape(N, -1, PH, PW)                  # NCHW


if __name__ == "__main__":
    key = jax.random.PRNGKey(0)
    k_x, k_p = jax.random.split(key)

    # Small shapes consistent with the module: channel_in must be 1.
    N, Cin, H, W = 2, 1, 32, 32
    n_competitor, ksize, stride, o1, o2 = 8, 5, 1, 32, 12

    x = jax.random.normal(k_x, (N, Cin, H, W), jnp.float32)
    params = init_params(k_p, n_competitor, ksize, o1, o2)
    prep = prepare_inference_params(params, H, W, ksize, stride)

    fwd = jax.jit(competitive_block_forward, static_argnames=("ksize", "stride"))
    out = fwd(x, params, prep, ksize=ksize, stride=stride)
    out = jax.block_until_ready(out)

    assert out.shape == (N, o2, 14, 14), out.shape
    assert bool(jnp.all(jnp.isfinite(out)))
    print("KERNEL_OK")
</pallas_src>

<mosaic_0001>
module attributes {stable_mosaic.version = 11 : i64} {
  func.func @kernel(%arg0: i32, %arg1: memref<1x25x1024xbf16, #tpu.memory_space<vmem>>, %arg2: memref<8x25xbf16, #tpu.memory_space<vmem>>, %arg3: memref<1024x64xf32, #tpu.memory_space<vmem>>, %arg4: memref<32x1024xf32, #tpu.memory_space<vmem>>, %arg5: memref<32x1024xf32, #tpu.memory_space<vmem>>, %arg6: memref<8x8xf32, #tpu.memory_space<vmem>>, %arg7: memref<8x1xf32, #tpu.memory_space<vmem>>, %arg8: memref<8x8xf32, #tpu.memory_space<vmem>>, %arg9: memref<8x1xf32, #tpu.memory_space<vmem>>, %arg10: memref<8x8xf32, #tpu.memory_space<vmem>>, %arg11: memref<8x1xf32, #tpu.memory_space<vmem>>, %arg12: memref<1x8x1024xf32, #tpu.memory_space<vmem>>) attributes {dimension_semantics = [#tpu.dimension_semantics<parallel>], iteration_bounds = array<i64: 2>, scalar_prefetch = 0 : i64, scratch_operands = 0 : i64, tpu.core_type = #tpu.core_type<tc>, window_params = [{transform_indices = @transform_0, window_bounds = array<i64: 1, 25, 1024>}, {pipeline_mode = #tpu.pipeline_mode<synchronous>, transform_indices = @transform_1, window_bounds = array<i64: 8, 25>}, {pipeline_mode = #tpu.pipeline_mode<synchronous>, transform_indices = @transform_2, window_bounds = array<i64: 1024, 64>}, {pipeline_mode = #tpu.pipeline_mode<synchronous>, transform_indices = @transform_3, window_bounds = array<i64: 32, 1024>}, {pipeline_mode = #tpu.pipeline_mode<synchronous>, transform_indices = @transform_4, window_bounds = array<i64: 32, 1024>}, {pipeline_mode = #tpu.pipeline_mode<synchronous>, transform_indices = @transform_5, window_bounds = array<i64: 8, 8>}, {pipeline_mode = #tpu.pipeline_mode<synchronous>, transform_indices = @transform_6, window_bounds = array<i64: 8, 1>}, {pipeline_mode = #tpu.pipeline_mode<synchronous>, transform_indices = @transform_7, window_bounds = array<i64: 8, 8>}, {pipeline_mode = #tpu.pipeline_mode<synchronous>, transform_indices = @transform_8, window_bounds = array<i64: 8, 1>}, {pipeline_mode = #tpu.pipeline_mode<synchronous>, transform_indices = @transform_9, window_bounds = array<i64: 8, 8>}, {pipeline_mode = #tpu.pipeline_mode<synchronous>, transform_indices = @transform_10, window_bounds = array<i64: 8, 1>}, {transform_indices = @transform_11, window_bounds = array<i64: 1, 8, 1024>}]} {
    %c0 = arith.constant 0 : index
    %c0_0 = arith.constant 0 : index
    %0 = vector.load %arg2[%c0, %c0_0] : memref<8x25xbf16, #tpu.memory_space<vmem>>, vector<8x25xbf16>
    %c0_1 = arith.constant 0 : index
    %c0_2 = arith.constant 0 : index
    %c0_3 = arith.constant 0 : index
    %1 = vector.load %arg1[%c0_1, %c0_2, %c0_3] : memref<1x25x1024xbf16, #tpu.memory_space<vmem>>, vector<1x25x1024xbf16>
    %2 = vector.shape_cast %1 : vector<1x25x1024xbf16> to vector<25x1024xbf16>
    %cst = arith.constant dense<0.000000e+00> : vector<8x1024xf32>
    %3 = tpu.matmul %0, %2, %cst {dimension_numbers = #tpu.dot_dimension_numbers<[1], [0], [0], [1], [0, 0, 1, 1], [], []>} : vector<8x25xbf16>, vector<25x1024xbf16>, vector<8x1024xf32> -> vector<8x1024xf32>
    %c0_4 = arith.constant 0 : index
    %c0_5 = arith.constant 0 : index
    %4 = vector.load %arg3[%c0_4, %c0_5] : memref<1024x64xf32, #tpu.memory_space<vmem>>, vector<1024x64xf32>
    %cst_6 = arith.constant dense<0.000000e+00> : vector<8x64xf32>
    %5 = tpu.matmul %3, %4, %cst_6 {dimension_numbers = #tpu.dot_dimension_numbers<[1], [0], [0], [1], [0, 0, 1, 1], [], []>} : vector<8x1024xf32>, vector<1024x64xf32>, vector<8x64xf32> -> vector<8x64xf32>
    %c0_7 = arith.constant 0 : index
    %c0_8 = arith.constant 0 : index
    %6 = vector.load %arg6[%c0_7, %c0_8] : memref<8x8xf32, #tpu.memory_space<vmem>>, vector<8x8xf32>
    %cst_9 = arith.constant dense<0.000000e+00> : vector<8x64xf32>
    %7 = tpu.matmul %6, %5, %cst_9 {dimension_numbers = #tpu.dot_dimension_numbers<[1], [0], [0], [1], [0, 0, 1, 1], [], []>} : vector<8x8xf32>, vector<8x64xf32>, vector<8x64xf32> -> vector<8x64xf32>
    %c0_10 = arith.constant 0 : index
    %c0_11 = arith.constant 0 : index
    %8 = vector.load %arg7[%c0_10, %c0_11] : memref<8x1xf32, #tpu.memory_space<vmem>>, vector<8x1xf32>
    %9 = vector.broadcast %8 : vector<8x1xf32> to vector<8x64xf32>
    %10 = arith.addf %7, %9 : vector<8x64xf32>
    %cst_12 = arith.constant 3.000000e+00 : f32
    %11 = vector.broadcast %cst_12 : f32 to vector<8x64xf32>
    %12 = arith.addf %10, %11 : vector<8x64xf32>
    %cst_13 = arith.constant 0.000000e+00 : f32
    %cst_14 = arith.constant 6.000000e+00 : f32
    %13 = vector.broadcast %cst_13 : f32 to vector<8x64xf32>
    %14 = arith.maximumf %13, %12 : vector<8x64xf32>
    %15 = vector.broadcast %cst_14 : f32 to vector<8x64xf32>
    %16 = arith.minimumf %15, %14 : vector<8x64xf32>
    %cst_15 = arith.constant 0.166666672 : f32
    %17 = vector.broadcast %cst_15 : f32 to vector<8x64xf32>
    %18 = arith.mulf %16, %17 : vector<8x64xf32>
    %19 = arith.mulf %10, %18 : vector<8x64xf32>
    %20 = vector.extract_strided_slice %19 {offsets = [0, 0], sizes = [8, 32], strides = [1, 1]} : vector<8x64xf32> to vector<8x32xf32>
    %21 = vector.extract_strided_slice %19 {offsets = [0, 32], sizes = [8, 32], strides = [1, 1]} : vector<8x64xf32> to vector<8x32xf32>
    %c0_16 = arith.constant 0 : index
    %c0_17 = arith.constant 0 : index
    %22 = vector.load %arg8[%c0_16, %c0_17] : memref<8x8xf32, #tpu.memory_space<vmem>>, vector<8x8xf32>
    %cst_18 = arith.constant dense<0.000000e+00> : vector<8x32xf32>
    %23 = tpu.matmul %22, %20, %cst_18 {dimension_numbers = #tpu.dot_dimension_numbers<[1], [0], [0], [1], [0, 0, 1, 1], [], []>} : vector<8x8xf32>, vector<8x32xf32>, vector<8x32xf32> -> vector<8x32xf32>
    %c0_19 = arith.constant 0 : index
    %c0_20 = arith.constant 0 : index
    %24 = vector.load %arg9[%c0_19, %c0_20] : memref<8x1xf32, #tpu.memory_space<vmem>>, vector<8x1xf32>
    %25 = vector.broadcast %24 : vector<8x1xf32> to vector<8x32xf32>
    %26 = arith.addf %23, %25 : vector<8x32xf32>
    %27 = arith.negf %26 : vector<8x32xf32>
    %28 = math.exp %27 : vector<8x32xf32>
    %cst_21 = arith.constant 1.000000e+00 : f32
    %29 = vector.broadcast %cst_21 : f32 to vector<8x32xf32>
    %30 = arith.addf %29, %28 : vector<8x32xf32>
    %31 = arith.divf %29, %30 : vector<8x32xf32>
    %c0_22 = arith.constant 0 : index
    %c0_23 = arith.constant 0 : index
    %32 = vector.load %arg10[%c0_22, %c0_23] : memref<8x8xf32, #tpu.memory_space<vmem>>, vector<8x8xf32>
    %cst_24 = arith.constant dense<0.000000e+00> : vector<8x32xf32>
    %33 = tpu.matmul %32, %21, %cst_24 {dimension_numbers = #tpu.dot_dimension_numbers<[1], [0], [0], [1], [0, 0, 1, 1], [], []>} : vector<8x8xf32>, vector<8x32xf32>, vector<8x32xf32> -> vector<8x32xf32>
    %c0_25 = arith.constant 0 : index
    %c0_26 = arith.constant 0 : index
    %34 = vector.load %arg11[%c0_25, %c0_26] : memref<8x1xf32, #tpu.memory_space<vmem>>, vector<8x1xf32>
    %35 = vector.broadcast %34 : vector<8x1xf32> to vector<8x32xf32>
    %36 = arith.addf %33, %35 : vector<8x32xf32>
    %37 = arith.negf %36 : vector<8x32xf32>
    %38 = math.exp %37 : vector<8x32xf32>
    %cst_27 = arith.constant 1.000000e+00 : f32
    %39 = vector.broadcast %cst_27 : f32 to vector<8x32xf32>
    %40 = arith.addf %39, %38 : vector<8x32xf32>
    %41 = arith.divf %39, %40 : vector<8x32xf32>
    %c0_28 = arith.constant 0 : index
    %c0_29 = arith.constant 0 : index
    %42 = vector.load %arg4[%c0_28, %c0_29] : memref<32x1024xf32, #tpu.memory_space<vmem>>, vector<32x1024xf32>
    %cst_30 = arith.constant dense<0.000000e+00> : vector<8x1024xf32>
    %43 = tpu.matmul %31, %42, %cst_30 {dimension_numbers = #tpu.dot_dimension_numbers<[1], [0], [0], [1], [0, 0, 1, 1], [], []>} : vector<8x32xf32>, vector<32x1024xf32>, vector<8x1024xf32> -> vector<8x1024xf32>
    %c0_31 = arith.constant 0 : index
    %c0_32 = arith.constant 0 : index
    %44 = vector.load %arg5[%c0_31, %c0_32] : memref<32x1024xf32, #tpu.memory_space<vmem>>, vector<32x1024xf32>
    %cst_33 = arith.constant dense<0.000000e+00> : vector<8x1024xf32>
    %45 = tpu.matmul %41, %44, %cst_33 {dimension_numbers = #tpu.dot_dimension_numbers<[1], [0], [0], [1], [0, 0, 1, 1], [], []>} : vector<8x32xf32>, vector<32x1024xf32>, vector<8x1024xf32> -> vector<8x1024xf32>
    %46 = arith.mulf %43, %45 : vector<8x1024xf32>
    %47 = arith.mulf %3, %46 : vector<8x1024xf32>
    %c0_34 = arith.constant 0 : index
    %c0_35 = arith.constant 0 : index
    %c0_36 = arith.constant 0 : index
    %48 = vector.load %arg12[%c0_34, %c0_35, %c0_36] : memref<1x8x1024xf32, #tpu.memory_space<vmem>>, vector<1x8x1024xf32>
    %49 = vector.shape_cast %48 : vector<1x8x1024xf32> to vector<8x1024xf32>
    %50 = vector.shape_cast %47 : vector<8x1024xf32> to vector<1x8x1024xf32>
    tpu.vector_store %arg12[%c0_34, %c0_35, %c0_36], %50 {strides = array<i32>} : memref<1x8x1024xf32, #tpu.memory_space<vmem>>, vector<1x8x1024xf32>,
    return
  }
  func.func @transform_0(%arg0: i32) -> (i32, i32, i32) {
    %c0_i32 = arith.constant 0 : i32
    %c0_i32_0 = arith.constant 0 : i32
    %c0_i32_1 = arith.constant 0 : i32
    return %arg0, %c0_i32, %c0_i32_0 : i32, i32, i32
  }
  func.func @transform_1(%arg0: i32) -> (i32, i32) {
    %c0_i32 = arith.constant 0 : i32
    %c0_i32_0 = arith.constant 0 : i32
    %c0_i32_1 = arith.constant 0 : i32
    return %c0_i32, %c0_i32_0 : i32, i32
  }
  func.func @transform_2(%arg0: i32) -> (i32, i32) {
    %c0_i32 = arith.constant 0 : i32
    %c0_i32_0 = arith.constant 0 : i32
    %c0_i32_1 = arith.constant 0 : i32
    return %c0_i32, %c0_i32_0 : i32, i32
  }
  func.func @transform_3(%arg0: i32) -> (i32, i32) {
    %c0_i32 = arith.constant 0 : i32
    %c0_i32_0 = arith.constant 0 : i32
    %c0_i32_1 = arith.constant 0 : i32
    return %c0_i32, %c0_i32_0 : i32, i32
  }
  func.func @transform_4(%arg0: i32) -> (i32, i32) {
    %c0_i32 = arith.constant 0 : i32
    %c0_i32_0 = arith.constant 0 : i32
    %c0_i32_1 = arith.constant 0 : i32
    return %c0_i32, %c0_i32_0 : i32, i32
  }
  func.func @transform_5(%arg0: i32) -> (i32, i32) {
    %c0_i32 = arith.constant 0 : i32
    %c0_i32_0 = arith.constant 0 : i32
    %c0_i32_1 = arith.constant 0 : i32
    return %c0_i32, %c0_i32_0 : i32, i32
  }
  func.func @transform_6(%arg0: i32) -> (i32, i32) {
    %c0_i32 = arith.constant 0 : i32
    %c0_i32_0 = arith.constant 0 : i32
    %c0_i32_1 = arith.constant 0 : i32
    return %c0_i32, %c0_i32_0 : i32, i32
  }
  func.func @transform_7(%arg0: i32) -> (i32, i32) {
    %c0_i32 = arith.constant 0 : i32
    %c0_i32_0 = arith.constant 0 : i32
    %c0_i32_1 = arith.constant 0 : i32
    return %c0_i32, %c0_i32_0 : i32, i32
  }
  func.func @transform_8(%arg0: i32) -> (i32, i32) {
    %c0_i32 = arith.constant 0 : i32
    %c0_i32_0 = arith.constant 0 : i32
    %c0_i32_1 = arith.constant 0 : i32
    return %c0_i32, %c0_i32_0 : i32, i32
  }
  func.func @transform_9(%arg0: i32) -> (i32, i32) {
    %c0_i32 = arith.constant 0 : i32
    %c0_i32_0 = arith.constant 0 : i32
    %c0_i32_1 = arith.constant 0 : i32
    return %c0_i32, %c0_i32_0 : i32, i32
  }
  func.func @transform_10(%arg0: i32) -> (i32, i32) {
    %c0_i32 = arith.constant 0 : i32
    %c0_i32_0 = arith.constant 0 : i32
    %c0_i32_1 = arith.constant 0 : i32
    return %c0_i32, %c0_i32_0 : i32, i32
  }
  func.func @transform_11(%arg0: i32) -> (i32, i32, i32) {
    %c0_i32 = arith.constant 0 : i32
    %c0_i32_0 = arith.constant 0 : i32
    %c0_i32_1 = arith.constant 0 : i32
    return %arg0, %c0_i32, %c0_i32_0 : i32, i32, i32
  }
}

module attributes {stable_mosaic.version = 11 : i64} {
  func.func @kernel(%arg0: i32, %arg1: memref<1x200x1024xbf16, #tpu.memory_space<vmem>>, %arg2: memref<8x200xbf16, #tpu.memory_space<vmem>>, %arg3: memref<1024x64xf32, #tpu.memory_space<vmem>>, %arg4: memref<32x1024xf32, #tpu.memory_space<vmem>>, %arg5: memref<32x1024xf32, #tpu.memory_space<vmem>>, %arg6: memref<8x8xf32, #tpu.memory_space<vmem>>, %arg7: memref<8x1xf32, #tpu.memory_space<vmem>>, %arg8: memref<8x8xf32, #tpu.memory_space<vmem>>, %arg9: memref<8x1xf32, #tpu.memory_space<vmem>>, %arg10: memref<8x8xf32, #tpu.memory_space<vmem>>, %arg11: memref<8x1xf32, #tpu.memory_space<vmem>>, %arg12: memref<1x2xf32, #tpu.memory_space<smem>>, %arg13: memref<1x8x1024xf32, #tpu.memory_space<vmem>>) attributes {dimension_semantics = [#tpu.dimension_semantics<parallel>], iteration_bounds = array<i64: 2>, scalar_prefetch = 0 : i64, scratch_operands = 0 : i64, tpu.core_type = #tpu.core_type<tc>, window_params = [{transform_indices = @transform_0, window_bounds = array<i64: 1, 200, 1024>}, {pipeline_mode = #tpu.pipeline_mode<synchronous>, transform_indices = @transform_1, window_bounds = array<i64: 8, 200>}, {pipeline_mode = #tpu.pipeline_mode<synchronous>, transform_indices = @transform_2, window_bounds = array<i64: 1024, 64>}, {pipeline_mode = #tpu.pipeline_mode<synchronous>, transform_indices = @transform_3, window_bounds = array<i64: 32, 1024>}, {pipeline_mode = #tpu.pipeline_mode<synchronous>, transform_indices = @transform_4, window_bounds = array<i64: 32, 1024>}, {pipeline_mode = #tpu.pipeline_mode<synchronous>, transform_indices = @transform_5, window_bounds = array<i64: 8, 8>}, {pipeline_mode = #tpu.pipeline_mode<synchronous>, transform_indices = @transform_6, window_bounds = array<i64: 8, 1>}, {pipeline_mode = #tpu.pipeline_mode<synchronous>, transform_indices = @transform_7, window_bounds = array<i64: 8, 8>}, {pipeline_mode = #tpu.pipeline_mode<synchronous>, transform_indices = @transform_8, window_bounds = array<i64: 8, 1>}, {pipeline_mode = #tpu.pipeline_mode<synchronous>, transform_indices = @transform_9, window_bounds = array<i64: 8, 8>}, {pipeline_mode = #tpu.pipeline_mode<synchronous>, transform_indices = @transform_10, window_bounds = array<i64: 8, 1>}, {transform_indices = @transform_11, window_bounds = array<i64: 1, 2>}, {transform_indices = @transform_12, window_bounds = array<i64: 1, 8, 1024>}]} {
    %c0 = arith.constant 0 : index
    %c0_0 = arith.constant 0 : index
    %0 = vector.load %arg2[%c0, %c0_0] : memref<8x200xbf16, #tpu.memory_space<vmem>>, vector<8x200xbf16>
    %c0_1 = arith.constant 0 : index
    %c0_2 = arith.constant 0 : index
    %c0_3 = arith.constant 0 : index
    %1 = vector.load %arg1[%c0_1, %c0_2, %c0_3] : memref<1x200x1024xbf16, #tpu.memory_space<vmem>>, vector<1x200x1024xbf16>
    %2 = vector.shape_cast %1 : vector<1x200x1024xbf16> to vector<200x1024xbf16>
    %cst = arith.constant dense<0.000000e+00> : vector<8x1024xf32>
    %3 = tpu.matmul %0, %2, %cst {dimension_numbers = #tpu.dot_dimension_numbers<[1], [0], [0], [1], [0, 0, 1, 1], [], []>} : vector<8x200xbf16>, vector<200x1024xbf16>, vector<8x1024xf32> -> vector<8x1024xf32>
    %c0_4 = arith.constant 0 : index
    %c0_5 = arith.constant 0 : index
    %4 = vector.load %arg3[%c0_4, %c0_5] : memref<1024x64xf32, #tpu.memory_space<vmem>>, vector<1024x64xf32>
    %cst_6 = arith.constant dense<0.000000e+00> : vector<8x64xf32>
    %5 = tpu.matmul %3, %4, %cst_6 {dimension_numbers = #tpu.dot_dimension_numbers<[1], [0], [0], [1], [0, 0, 1, 1], [], []>} : vector<8x1024xf32>, vector<1024x64xf32>, vector<8x64xf32> -> vector<8x64xf32>
    %c0_7 = arith.constant 0 : index
    %c0_8 = arith.constant 0 : index
    %6 = vector.load %arg6[%c0_7, %c0_8] : memref<8x8xf32, #tpu.memory_space<vmem>>, vector<8x8xf32>
    %cst_9 = arith.constant dense<0.000000e+00> : vector<8x64xf32>
    %7 = tpu.matmul %6, %5, %cst_9 {dimension_numbers = #tpu.dot_dimension_numbers<[1], [0], [0], [1], [0, 0, 1, 1], [], []>} : vector<8x8xf32>, vector<8x64xf32>, vector<8x64xf32> -> vector<8x64xf32>
    %c0_10 = arith.constant 0 : index
    %c0_11 = arith.constant 0 : index
    %8 = vector.load %arg7[%c0_10, %c0_11] : memref<8x1xf32, #tpu.memory_space<vmem>>, vector<8x1xf32>
    %9 = vector.broadcast %8 : vector<8x1xf32> to vector<8x64xf32>
    %10 = arith.addf %7, %9 : vector<8x64xf32>
    %cst_12 = arith.constant 3.000000e+00 : f32
    %11 = vector.broadcast %cst_12 : f32 to vector<8x64xf32>
    %12 = arith.addf %10, %11 : vector<8x64xf32>
    %cst_13 = arith.constant 0.000000e+00 : f32
    %cst_14 = arith.constant 6.000000e+00 : f32
    %13 = vector.broadcast %cst_13 : f32 to vector<8x64xf32>
    %14 = arith.maximumf %13, %12 : vector<8x64xf32>
    %15 = vector.broadcast %cst_14 : f32 to vector<8x64xf32>
    %16 = arith.minimumf %15, %14 : vector<8x64xf32>
    %cst_15 = arith.constant 0.166666672 : f32
    %17 = vector.broadcast %cst_15 : f32 to vector<8x64xf32>
    %18 = arith.mulf %16, %17 : vector<8x64xf32>
    %19 = arith.mulf %10, %18 : vector<8x64xf32>
    %20 = vector.extract_strided_slice %19 {offsets = [0, 0], sizes = [8, 32], strides = [1, 1]} : vector<8x64xf32> to vector<8x32xf32>
    %21 = vector.extract_strided_slice %19 {offsets = [0, 32], sizes = [8, 32], strides = [1, 1]} : vector<8x64xf32> to vector<8x32xf32>
    %c0_16 = arith.constant 0 : index
    %c0_17 = arith.constant 0 : index
    %22 = vector.load %arg8[%c0_16, %c0_17] : memref<8x8xf32, #tpu.memory_space<vmem>>, vector<8x8xf32>
    %cst_18 = arith.constant dense<0.000000e+00> : vector<8x32xf32>
    %23 = tpu.matmul %22, %20, %cst_18 {dimension_numbers = #tpu.dot_dimension_numbers<[1], [0], [0], [1], [0, 0, 1, 1], [], []>} : vector<8x8xf32>, vector<8x32xf32>, vector<8x32xf32> -> vector<8x32xf32>
    %c0_19 = arith.constant 0 : index
    %c0_20 = arith.constant 0 : index
    %24 = vector.load %arg9[%c0_19, %c0_20] : memref<8x1xf32, #tpu.memory_space<vmem>>, vector<8x1xf32>
    %25 = vector.broadcast %24 : vector<8x1xf32> to vector<8x32xf32>
    %26 = arith.addf %23, %25 : vector<8x32xf32>
    %27 = arith.negf %26 : vector<8x32xf32>
    %28 = math.exp %27 : vector<8x32xf32>
    %cst_21 = arith.constant 1.000000e+00 : f32
    %29 = vector.broadcast %cst_21 : f32 to vector<8x32xf32>
    %30 = arith.addf %29, %28 : vector<8x32xf32>
    %31 = arith.divf %29, %30 : vector<8x32xf32>
    %c0_22 = arith.constant 0 : index
    %c0_23 = arith.constant 0 : index
    %32 = vector.load %arg10[%c0_22, %c0_23] : memref<8x8xf32, #tpu.memory_space<vmem>>, vector<8x8xf32>
    %cst_24 = arith.constant dense<0.000000e+00> : vector<8x32xf32>
    %33 = tpu.matmul %32, %21, %cst_24 {dimension_numbers = #tpu.dot_dimension_numbers<[1], [0], [0], [1], [0, 0, 1, 1], [], []>} : vector<8x8xf32>, vector<8x32xf32>, vector<8x32xf32> -> vector<8x32xf32>
    %c0_25 = arith.constant 0 : index
    %c0_26 = arith.constant 0 : index
    %34 = vector.load %arg11[%c0_25, %c0_26] : memref<8x1xf32, #tpu.memory_space<vmem>>, vector<8x1xf32>
    %35 = vector.broadcast %34 : vector<8x1xf32> to vector<8x32xf32>
    %36 = arith.addf %33, %35 : vector<8x32xf32>
    %37 = arith.negf %36 : vector<8x32xf32>
    %38 = math.exp %37 : vector<8x32xf32>
    %cst_27 = arith.constant 1.000000e+00 : f32
    %39 = vector.broadcast %cst_27 : f32 to vector<8x32xf32>
    %40 = arith.addf %39, %38 : vector<8x32xf32>
    %41 = arith.divf %39, %40 : vector<8x32xf32>
    %c0_28 = arith.constant 0 : index
    %c0_29 = arith.constant 0 : index
    %42 = vector.load %arg4[%c0_28, %c0_29] : memref<32x1024xf32, #tpu.memory_space<vmem>>, vector<32x1024xf32>
    %cst_30 = arith.constant dense<0.000000e+00> : vector<8x1024xf32>
    %43 = tpu.matmul %31, %42, %cst_30 {dimension_numbers = #tpu.dot_dimension_numbers<[1], [0], [0], [1], [0, 0, 1, 1], [], []>} : vector<8x32xf32>, vector<32x1024xf32>, vector<8x1024xf32> -> vector<8x1024xf32>
    %c0_31 = arith.constant 0 : index
    %c0_32 = arith.constant 0 : index
    %44 = vector.load %arg5[%c0_31, %c0_32] : memref<32x1024xf32, #tpu.memory_space<vmem>>, vector<32x1024xf32>
    %cst_33 = arith.constant dense<0.000000e+00> : vector<8x1024xf32>
    %45 = tpu.matmul %41, %44, %cst_33 {dimension_numbers = #tpu.dot_dimension_numbers<[1], [0], [0], [1], [0, 0, 1, 1], [], []>} : vector<8x32xf32>, vector<32x1024xf32>, vector<8x1024xf32> -> vector<8x1024xf32>
    %46 = arith.mulf %43, %45 : vector<8x1024xf32>
    %47 = arith.mulf %3, %46 : vector<8x1024xf32>
    %c0_34 = arith.constant 0 : index
    %c0_35 = arith.constant 0 : index
    %48 = memref.load %arg12[%c0_34, %c0_35] : memref<1x2xf32, #tpu.memory_space<smem>>
    %c0_36 = arith.constant 0 : index
    %c1 = arith.constant 1 : index
    %49 = memref.load %arg12[%c0_36, %c1] : memref<1x2xf32, #tpu.memory_space<smem>>
    %50 = vector.broadcast %49 : f32 to vector<8x1024xf32>
    %51 = arith.subf %47, %50 : vector<8x1024xf32>
    %52 = vector.broadcast %48 : f32 to vector<8x1024xf32>
    %53 = arith.mulf %51, %52 : vector<8x1024xf32>
    %cst_37 = arith.constant dense<0xFF800000> : vector<1024xf32>
    %54 = vector.multi_reduction <maximumf>, %53, %cst_37 [0] : vector<8x1024xf32> to vector<1024xf32>
    %55 = vector.shape_cast %54 : vector<1024xf32> to vector<1x1024xf32>
    %56 = vector.broadcast %55 : vector<1x1024xf32> to vector<8x1024xf32>
    %57 = arith.subf %53, %56 : vector<8x1024xf32>
    %58 = math.exp %57 : vector<8x1024xf32>
    %cst_38 = arith.constant dense<0.000000e+00> : vector<1024xf32>
    %59 = vector.multi_reduction <add>, %58, %cst_38 [0] : vector<8x1024xf32> to vector<1024xf32>
    %60 = vector.shape_cast %59 : vector<1024xf32> to vector<1x1024xf32>
    %61 = vector.broadcast %60 : vector<1x1024xf32> to vector<8x1024xf32>
    %62 = arith.divf %58, %61 : vector<8x1024xf32>
    %c0_39 = arith.constant 0 : index
    %c0_40 = arith.constant 0 : index
    %c0_41 = arith.constant 0 : index
    %63 = vector.load %arg13[%c0_39, %c0_40, %c0_41] : memref<1x8x1024xf32, #tpu.memory_space<vmem>>, vector<1x8x1024xf32>
    %64 = vector.shape_cast %63 : vector<1x8x1024xf32> to vector<8x1024xf32>
    %65 = vector.shape_cast %62 : vector<8x1024xf32> to vector<1x8x1024xf32>
    tpu.vector_store %arg13[%c0_39, %c0_40, %c0_41], %65 {strides = array<i32>} : memref<1x8x1024xf32, #tpu.memory_space<vmem>>, vector<1x8x1024xf32>,
    return
  }
  func.func @transform_0(%arg0: i32) -> (i32, i32, i32) {
    %c0_i32 = arith.constant 0 : i32
    %c0_i32_0 = arith.constant 0 : i32
    %c0_i32_1 = arith.constant 0 : i32
    return %arg0, %c0_i32, %c0_i32_0 : i32, i32, i32
  }
  func.func @transform_1(%arg0: i32) -> (i32, i32) {
    %c0_i32 = arith.constant 0 : i32
    %c0_i32_0 = arith.constant 0 : i32
    %c0_i32_1 = arith.constant 0 : i32
    return %c0_i32, %c0_i32_0 : i32, i32
  }
  func.func @transform_2(%arg0: i32) -> (i32, i32) {
    %c0_i32 = arith.constant 0 : i32
    %c0_i32_0 = arith.constant 0 : i32
    %c0_i32_1 = arith.constant 0 : i32
    return %c0_i32, %c0_i32_0 : i32, i32
  }
  func.func @transform_3(%arg0: i32) -> (i32, i32) {
    %c0_i32 = arith.constant 0 : i32
    %c0_i32_0 = arith.constant 0 : i32
    %c0_i32_1 = arith.constant 0 : i32
    return %c0_i32, %c0_i32_0 : i32, i32
  }
  func.func @transform_4(%arg0: i32) -> (i32, i32) {
    %c0_i32 = arith.constant 0 : i32
    %c0_i32_0 = arith.constant 0 : i32
    %c0_i32_1 = arith.constant 0 : i32
    return %c0_i32, %c0_i32_0 : i32, i32
  }
  func.func @transform_5(%arg0: i32) -> (i32, i32) {
    %c0_i32 = arith.constant 0 : i32
    %c0_i32_0 = arith.constant 0 : i32
    %c0_i32_1 = arith.constant 0 : i32
    return %c0_i32, %c0_i32_0 : i32, i32
  }
  func.func @transform_6(%arg0: i32) -> (i32, i32) {
    %c0_i32 = arith.constant 0 : i32
    %c0_i32_0 = arith.constant 0 : i32
    %c0_i32_1 = arith.constant 0 : i32
    return %c0_i32, %c0_i32_0 : i32, i32
  }
  func.func @transform_7(%arg0: i32) -> (i32, i32) {
    %c0_i32 = arith.constant 0 : i32
    %c0_i32_0 = arith.constant 0 : i32
    %c0_i32_1 = arith.constant 0 : i32
    return %c0_i32, %c0_i32_0 : i32, i32
  }
  func.func @transform_8(%arg0: i32) -> (i32, i32) {
    %c0_i32 = arith.constant 0 : i32
    %c0_i32_0 = arith.constant 0 : i32
    %c0_i32_1 = arith.constant 0 : i32
    return %c0_i32, %c0_i32_0 : i32, i32
  }
  func.func @transform_9(%arg0: i32) -> (i32, i32) {
    %c0_i32 = arith.constant 0 : i32
    %c0_i32_0 = arith.constant 0 : i32
    %c0_i32_1 = arith.constant 0 : i32
    return %c0_i32, %c0_i32_0 : i32, i32
  }
  func.func @transform_10(%arg0: i32) -> (i32, i32) {
    %c0_i32 = arith.constant 0 : i32
    %c0_i32_0 = arith.constant 0 : i32
    %c0_i32_1 = arith.constant 0 : i32
    return %c0_i32, %c0_i32_0 : i32, i32
  }
  func.func @transform_11(%arg0: i32) -> (i32, i32) {
    %c0_i32 = arith.constant 0 : i32
    %c0_i32_0 = arith.constant 0 : i32
    %c0_i32_1 = arith.constant 0 : i32
    return %c0_i32, %c0_i32_0 : i32, i32
  }
  func.func @transform_12(%arg0: i32) -> (i32, i32, i32) {
    %c0_i32 = arith.constant 0 : i32
    %c0_i32_0 = arith.constant 0 : i32
    %c0_i32_1 = arith.constant 0 : i32
    return %arg0, %c0_i32, %c0_i32_0 : i32, i32, i32
  }
}

module attributes {stable_mosaic.version = 11 : i64} {
  func.func @_ppu_kernel(%arg0: i32, %arg1: memref<1x200x784xbf16, #tpu.memory_space<vmem>>, %arg2: memref<32x200xbf16, #tpu.memory_space<vmem>>, %arg3: memref<32x1xf32, #tpu.memory_space<vmem>>, %arg4: memref<12x32xf32, #tpu.memory_space<vmem>>, %arg5: memref<12x1xf32, #tpu.memory_space<vmem>>, %arg6: memref<1x12x196xf32, #tpu.memory_space<vmem>>) attributes {dimension_semantics = [#tpu.dimension_semantics<parallel>], iteration_bounds = array<i64: 2>, scalar_prefetch = 0 : i64, scratch_operands = 0 : i64, tpu.core_type = #tpu.core_type<tc>, window_params = [{transform_indices = @transform_0, window_bounds = array<i64: 1, 200, 784>}, {pipeline_mode = #tpu.pipeline_mode<synchronous>, transform_indices = @transform_1, window_bounds = array<i64: 32, 200>}, {pipeline_mode = #tpu.pipeline_mode<synchronous>, transform_indices = @transform_2, window_bounds = array<i64: 32, 1>}, {pipeline_mode = #tpu.pipeline_mode<synchronous>, transform_indices = @transform_3, window_bounds = array<i64: 12, 32>}, {pipeline_mode = #tpu.pipeline_mode<synchronous>, transform_indices = @transform_4, window_bounds = array<i64: 12, 1>}, {transform_indices = @transform_5, window_bounds = array<i64: 1, 12, 196>}]} {
    %c0 = arith.constant 0 : index
    %c0_0 = arith.constant 0 : index
    %0 = vector.load %arg2[%c0, %c0_0] : memref<32x200xbf16, #tpu.memory_space<vmem>>, vector<32x200xbf16>
    %c0_1 = arith.constant 0 : index
    %c0_2 = arith.constant 0 : index
    %c0_3 = arith.constant 0 : index
    %1 = vector.load %arg1[%c0_1, %c0_2, %c0_3] : memref<1x200x784xbf16, #tpu.memory_space<vmem>>, vector<1x200x784xbf16>
    %2 = vector.shape_cast %1 : vector<1x200x784xbf16> to vector<200x784xbf16>
    %cst = arith.constant dense<0.000000e+00> : vector<32x784xf32>
    %3 = tpu.matmul %0, %2, %cst {dimension_numbers = #tpu.dot_dimension_numbers<[1], [0], [0], [1], [0, 0, 1, 1], [], []>} : vector<32x200xbf16>, vector<200x784xbf16>, vector<32x784xf32> -> vector<32x784xf32>
    %c0_4 = arith.constant 0 : index
    %c0_5 = arith.constant 0 : index
    %4 = vector.load %arg3[%c0_4, %c0_5] : memref<32x1xf32, #tpu.memory_space<vmem>>, vector<32x1xf32>
    %5 = vector.broadcast %4 : vector<32x1xf32> to vector<32x784xf32>
    %6 = arith.addf %3, %5 : vector<32x784xf32>
    %7 = vector.extract_strided_slice %6 {offsets = [0, 0], sizes = [32, 196], strides = [1, 1]} : vector<32x784xf32> to vector<32x196xf32>
    %8 = vector.extract_strided_slice %6 {offsets = [0, 196], sizes = [32, 196], strides = [1, 1]} : vector<32x784xf32> to vector<32x196xf32>
    %9 = arith.maximumf %7, %8 : vector<32x196xf32>
    %10 = vector.extract_strided_slice %6 {offsets = [0, 392], sizes = [32, 196], strides = [1, 1]} : vector<32x784xf32> to vector<32x196xf32>
    %11 = vector.extract_strided_slice %6 {offsets = [0, 588], sizes = [32, 196], strides = [1, 1]} : vector<32x784xf32> to vector<32x196xf32>
    %12 = arith.maximumf %10, %11 : vector<32x196xf32>
    %13 = arith.maximumf %9, %12 : vector<32x196xf32>
    %c0_6 = arith.constant 0 : index
    %c0_7 = arith.constant 0 : index
    %14 = vector.load %arg4[%c0_6, %c0_7] : memref<12x32xf32, #tpu.memory_space<vmem>>, vector<12x32xf32>
    %cst_8 = arith.constant dense<0.000000e+00> : vector<12x196xf32>
    %15 = tpu.matmul %14, %13, %cst_8 {dimension_numbers = #tpu.dot_dimension_numbers<[1], [0], [0], [1], [0, 0, 1, 1], [], []>} : vector<12x32xf32>, vector<32x196xf32>, vector<12x196xf32> -> vector<12x196xf32>
    %c0_9 = arith.constant 0 : index
    %c0_10 = arith.constant 0 : index
    %16 = vector.load %arg5[%c0_9, %c0_10] : memref<12x1xf32, #tpu.memory_space<vmem>>, vector<12x1xf32>
    %17 = vector.broadcast %16 : vector<12x1xf32> to vector<12x196xf32>
    %18 = arith.addf %15, %17 : vector<12x196xf32>
    %c0_11 = arith.constant 0 : index
    %c0_12 = arith.constant 0 : index
    %c0_13 = arith.constant 0 : index
    %19 = vector.load %arg6[%c0_11, %c0_12, %c0_13] : memref<1x12x196xf32, #tpu.memory_space<vmem>>, vector<1x12x196xf32>
    %20 = vector.shape_cast %19 : vector<1x12x196xf32> to vector<12x196xf32>
    %21 = vector.shape_cast %18 : vector<12x196xf32> to vector<1x12x196xf32>
    tpu.vector_store %arg6[%c0_11, %c0_12, %c0_13], %21 {strides = array<i32>} : memref<1x12x196xf32, #tpu.memory_space<vmem>>, vector<1x12x196xf32>,
    return
  }
  func.func @transform_0(%arg0: i32) -> (i32, i32, i32) {
    %c0_i32 = arith.constant 0 : i32
    %c0_i32_0 = arith.constant 0 : i32
    %c0_i32_1 = arith.constant 0 : i32
    return %arg0, %c0_i32, %c0_i32_0 : i32, i32, i32
  }
  func.func @transform_1(%arg0: i32) -> (i32, i32) {
    %c0_i32 = arith.constant 0 : i32
    %c0_i32_0 = arith.constant 0 : i32
    %c0_i32_1 = arith.constant 0 : i32
    return %c0_i32, %c0_i32_0 : i32, i32
  }
  func.func @transform_2(%arg0: i32) -> (i32, i32) {
    %c0_i32 = arith.constant 0 : i32
    %c0_i32_0 = arith.constant 0 : i32
    %c0_i32_1 = arith.constant 0 : i32
    return %c0_i32, %c0_i32_0 : i32, i32
  }
  func.func @transform_3(%arg0: i32) -> (i32, i32) {
    %c0_i32 = arith.constant 0 : i32
    %c0_i32_0 = arith.constant 0 : i32
    %c0_i32_1 = arith.constant 0 : i32
    return %c0_i32, %c0_i32_0 : i32, i32
  }
  func.func @transform_4(%arg0: i32) -> (i32, i32) {
    %c0_i32 = arith.constant 0 : i32
    %c0_i32_0 = arith.constant 0 : i32
    %c0_i32_1 = arith.constant 0 : i32
    return %c0_i32, %c0_i32_0 : i32, i32
  }
  func.func @transform_5(%arg0: i32) -> (i32, i32, i32) {
    %c0_i32 = arith.constant 0 : i32
    %c0_i32_0 = arith.constant 0 : i32
    %c0_i32_1 = arith.constant 0 : i32
    return %arg0, %c0_i32, %c0_i32_0 : i32, i32, i32
  }
}

</mosaic_0001>

<llo_original>
// kernel: competitive_block_forward.3
$region0: #{competitive_block_forward.3}
  #allocation0 [shape = 'u32[]', space=smem, size = 0x4, offset = 0x4, fixed_abs, tag = 'smem constant byte address 0x4 - core index']
  #allocation1 [shape = 'u32[72,128]{1,0:T(1,128)}', space=vmem, size = 0x9000, scoped, tag = 'internal scratch']
  %s0 = inlined_call_operand.vmem [shape: bf16[2,25,1024], index: 0, kind: input, shape index: {}]
  %s1 = inlined_call_operand.vmem [shape: bf16[8,25], index: 1, kind: input, shape index: {}]
  %s2 = inlined_call_operand.vmem [shape: f32[1024,64], index: 2, kind: input, shape index: {}]
  %s3 = inlined_call_operand.hbm [shape: f32[32,1024], index: 3, kind: input, shape index: {}]
  %s4 = inlined_call_operand.hbm [shape: f32[32,1024], index: 4, kind: input, shape index: {}]
  %s5 = inlined_call_operand.hbm [shape: f32[8,8], index: 5, kind: input, shape index: {}]
  %s6 = inlined_call_operand.vmem [shape: f32[8,1], index: 6, kind: input, shape index: {}]
  %s7 = inlined_call_operand.hbm [shape: f32[8,8], index: 7, kind: input, shape index: {}]
  %s8 = inlined_call_operand.vmem [shape: f32[8,1], index: 8, kind: input, shape index: {}]
  %s9 = inlined_call_operand.hbm [shape: f32[8,8], index: 9, kind: input, shape index: {}]
  %s10 = inlined_call_operand.vmem [shape: f32[8,1], index: 10, kind: input, shape index: {}]
  %s11 = inlined_call_operand.vmem [shape: f32[2,8,1024], index: 11, kind: output, shape index: {}]
  %s12 = sld [smem:[#allocation0]]
  $region97: #{competitive_block_forward.3} parent=0
    _
  %s14 = ssub.s32 1, %s12
  %s15 = scalar_select 0, %s14, %s12
  $region1: #{competitive_block_forward.3} parent=0
    #allocation2 [shape = 'u8[131072]{0}', space=vmem, size = 0x20000, scoped, tag = 'input window, operand 3, single buffered']
    #allocation3 [shape = 's32[2]{0}', space=sflag, size = 0x8, scoped, tag = 'scoped memory for competitive_block_forward.3']
    #allocation4 [shape = 'u8[131072]{0}', space=vmem, size = 0x20000, scoped, tag = 'input window, operand 4, single buffered']
    #allocation5 [shape = 's32[1]{0}', space=sflag, size = 0x4, scoped, tag = 'scoped memory for competitive_block_forward.3']
    #allocation6 [shape = 'u8[4096]{0}', space=vmem, size = 0x1000, scoped, tag = 'input window, operand 5, single buffered']
    #allocation7 [shape = 'u8[4096]{0}', space=vmem, size = 0x1000, scoped, tag = 'input window, operand 7, single buffered']
    #allocation8 [shape = 's32[1]{0}', space=sflag, size = 0x4, scoped, tag = 'scoped memory for competitive_block_forward.3']
    #allocation9 [shape = 'u8[4096]{0}', space=vmem, size = 0x1000, scoped, tag = 'input window, operand 9, single buffered']
    %16 = vsyncpa [#allocation3], 0
    %17 = vsyncpa [#allocation5], 0
    %18 = vsyncpa [#allocation8], 0
    loop: start=0, step=1, limit=4
    $region2: #{competitive_block_forward.3} parent=1 // loop_pre_header
      _
    $region3: #{competitive_block_forward.3} parent=1 // loop_header
      %s20 = sphi 0, %s24
      %p21 = scmp.ge.s32.totalorder %s20, 4
      %s30 = sphi 0, %s32
      %s33 = sphi 0, %s30
      %s34 = sphi 0, %s33
      %s50 = sphi 0, %s34
      %s54 = sphi 0, %s54
      %s56 = sphi 0, %s54
      %s57 = sphi 0, %s56
      %s71 = sphi 0, %s57
      %s75 = sphi 0, %s75
      %s77 = sphi 0, %s75
      %s78 = sphi 0, %s77
      %s92 = sphi 0, %s78
      %s96 = sphi 0, %s96
      %s98 = sphi 0, %s96
      %s99 = sphi 0, %s98
      %s113 = sphi 0, %s99
      %s117 = sphi 0, %s117
      %s119 = sphi 0, %s117
      %s120 = sphi 0, %s119
      %s134 = sphi 0, %s120
      %s138 = sphi 0, %s138
      %s140 = sphi 0, %s138
      %s141 = sphi 0, %s140
      %s155 = sphi 0, %s141
      %s159 = sphi 0, %s159
      %s161 = sphi 0, %s159
      %s162 = sphi 0, %s161
      %s176 = sphi 0, %s162
      %s180 = sphi 0, %s180
      %s182 = sphi 0, %s180
      %s183 = sphi 0, %s182
      %s197 = sphi 0, %s183
      %s201 = sphi 0, %s201
      %s203 = sphi 0, %s201
      %s204 = sphi 0, %s203
      %s218 = sphi 0, %s204
      %s222 = sphi 0, %s222
      %s224 = sphi 0, %s222
      %s225 = sphi 0, %s224
      %s239 = sphi 0, %s225
      %s243 = sphi 0, %s243
      %s245 = sphi 0, %s243
      %s246 = sphi 0, %s245
      %s260 = sphi 0, %s246
      %s266 = sphi 0, %s268
      %s269 = sphi 0, %s266
      %s270 = sphi 0, %s269
      %s286 = sphi 0, %s270
    $region4: #{competitive_block_forward.3} parent=1 // loop_header_branch
      %23 = sbr.rel (%p21) target = $region8
    $region5: #{competitive_block_forward.3} parent=1 // loop_body
      %s25 = ssub.s32 %s20, 1
      %s26 = ssub.s32 %s20, 2
      %s27 = sadd.s32 %s20, 1
      %s28 = ssub.s32 %s20, %s27
      %p29 = scmp.eq.s32.totalorder %s28, 0
      %s31 = sadd.s32 %s30, 1
      %s32 = scalar_select %p29, %s30, %s31
      %p35 = pneg %p29
      %p36 = scmp.eq.s32.totalorder %s20, 1
      %p37 = por %p35, %p36
      %p38 = scmp.ne.s32.totalorder %s30, %s33
      %p39 = scmp.eq.s32.totalorder %s20, 0
      %p40 = por %p38, %p39
      %p41 = scmp.ne.s32.totalorder %s30, %s33
      %p42 = scmp.eq.s32.totalorder %s25, 1
      %p43 = por %p41, %p42
      %p44 = scmp.ne.s32.totalorder %s33, %s34
      %p45 = scmp.eq.s32.totalorder %s25, 0
      %p46 = por %p44, %p45
      %p47 = scmp.ne.s32.totalorder %s33, %s34
      %p48 = scmp.eq.s32.totalorder %s26, 1
      %p49 = por %p47, %p48
      %p51 = scmp.ne.s32.totalorder %s34, %s50
      %p52 = scmp.eq.s32.totalorder %s26, 0
      %p53 = por %p51, %p52
      %s55 = sadd.s32 %s54, 1
      %p58 = scmp.eq.s32.totalorder %s20, 1
      %p59 = scmp.ne.s32.totalorder %s54, %s56
      %p60 = scmp.eq.s32.totalorder %s20, 0
      %p61 = por %p59, %p60
      %p62 = scmp.ne.s32.totalorder %s54, %s56
      %p63 = scmp.eq.s32.totalorder %s25, 1
      %p64 = por %p62, %p63
      %p65 = scmp.ne.s32.totalorder %s56, %s57
      %p66 = scmp.eq.s32.totalorder %s25, 0
      %p67 = por %p65, %p66
      %p68 = scmp.ne.s32.totalorder %s56, %s57
      %p69 = scmp.eq.s32.totalorder %s26, 1
      %p70 = por %p68, %p69
      %p72 = scmp.ne.s32.totalorder %s57, %s71
      %p73 = scmp.eq.s32.totalorder %s26, 0
      %p74 = por %p72, %p73
      %s76 = sadd.s32 %s75, 1
      %p79 = scmp.eq.s32.totalorder %s20, 1
      %p80 = scmp.ne.s32.totalorder %s75, %s77
      %p81 = scmp.eq.s32.totalorder %s20, 0
      %p82 = por %p80, %p81
      %p83 = scmp.ne.s32.totalorder %s75, %s77
      %p84 = scmp.eq.s32.totalorder %s25, 1
      %p85 = por %p83, %p84
      %p86 = scmp.ne.s32.totalorder %s77, %s78
      %p87 = scmp.eq.s32.totalorder %s25, 0
      %p88 = por %p86, %p87
      %p89 = scmp.ne.s32.totalorder %s77, %s78
      %p90 = scmp.eq.s32.totalorder %s26, 1
      %p91 = por %p89, %p90
      %p93 = scmp.ne.s32.totalorder %s78, %s92
      %p94 = scmp.eq.s32.totalorder %s26, 0
      %p95 = por %p93, %p94
      %s97 = sadd.s32 %s96, 1
      %p100 = scmp.eq.s32.totalorder %s20, 1
      %p101 = scmp.ne.s32.totalorder %s96, %s98
      %p102 = scmp.eq.s32.totalorder %s20, 0
      %p103 = por %p101, %p102
      %p104 = scmp.ne.s32.totalorder %s96, %s98
      %p105 = scmp.eq.s32.totalorder %s25, 1
      %p106 = por %p104, %p105
      %p107 = scmp.ne.s32.totalorder %s98, %s99
      %p108 = scmp.eq.s32.totalorder %s25, 0
      %p109 = por %p107, %p108
      %p110 = scmp.ne.s32.totalorder %s98, %s99
      %p111 = scmp.eq.s32.totalorder %s26, 1
      %p112 = por %p110, %p111
      %p114 = scmp.ne.s32.totalorder %s99, %s113
      %p115 = scmp.eq.s32.totalorder %s26, 0
      %p116 = por %p114, %p115
      %s118 = sadd.s32 %s117, 1
      %p121 = scmp.eq.s32.totalorder %s20, 1
      %p122 = scmp.ne.s32.totalorder %s117, %s119
      %p123 = scmp.eq.s32.totalorder %s20, 0
      %p124 = por %p122, %p123
      %p125 = scmp.ne.s32.totalorder %s117, %s119
      %p126 = scmp.eq.s32.totalorder %s25, 1
      %p127 = por %p125, %p126
      %p128 = scmp.ne.s32.totalorder %s119, %s120
      %p129 = scmp.eq.s32.totalorder %s25, 0
      %p130 = por %p128, %p129
      %p131 = scmp.ne.s32.totalorder %s119, %s120
      %p132 = scmp.eq.s32.totalorder %s26, 1
      %p133 = por %p131, %p132
      %p135 = scmp.ne.s32.totalorder %s120, %s134
      %p136 = scmp.eq.s32.totalorder %s26, 0
      %p137 = por %p135, %p136
      %s139 = sadd.s32 %s138, 1
      %p142 = scmp.eq.s32.totalorder %s20, 1
      %p143 = scmp.ne.s32.totalorder %s138, %s140
      %p144 = scmp.eq.s32.totalorder %s20, 0
      %p145 = por %p143, %p144
      %p146 = scmp.ne.s32.totalorder %s138, %s140
      %p147 = scmp.eq.s32.totalorder %s25, 1
      %p148 = por %p146, %p147
      %p149 = scmp.ne.s32.totalorder %s140, %s141
      %p150 = scmp.eq.s32.totalorder %s25, 0
      %p151 = por %p149, %p150
      %p152 = scmp.ne.s32.totalorder %s140, %s141
      %p153 = scmp.eq.s32.totalorder %s26, 1
      %p154 = por %p152, %p153
      %p156 = scmp.ne.s32.totalorder %s141, %s155
      %p157 = scmp.eq.s32.totalorder %s26, 0
      %p158 = por %p156, %p157
      %s160 = sadd.s32 %s159, 1
      %p163 = scmp.eq.s32.totalorder %s20, 1
      %p164 = scmp.ne.s32.totalorder %s159, %s161
      %p165 = scmp.eq.s32.totalorder %s20, 0
      %p166 = por %p164, %p165
      %p167 = scmp.ne.s32.totalorder %s159, %s161
      %p168 = scmp.eq.s32.totalorder %s25, 1
      %p169 = por %p167, %p168
      %p170 = scmp.ne.s32.totalorder %s161, %s162
      %p171 = scmp.eq.s32.totalorder %s25, 0
      %p172 = por %p170, %p171
      %p173 = scmp.ne.s32.totalorder %s161, %s162
      %p174 = scmp.eq.s32.totalorder %s26, 1
      %p175 = por %p173, %p174
      %p177 = scmp.ne.s32.totalorder %s162, %s176
      %p178 = scmp.eq.s32.totalorder %s26, 0
      %p179 = por %p177, %p178
      %s181 = sadd.s32 %s180, 1
      %p184 = scmp.eq.s32.totalorder %s20, 1
      %p185 = scmp.ne.s32.totalorder %s180, %s182
      %p186 = scmp.eq.s32.totalorder %s20, 0
      %p187 = por %p185, %p186
      %p188 = scmp.ne.s32.totalorder %s180, %s182
      %p189 = scmp.eq.s32.totalorder %s25, 1
      %p190 = por %p188, %p189
      %p191 = scmp.ne.s32.totalorder %s182, %s183
      %p192 = scmp.eq.s32.totalorder %s25, 0
      %p193 = por %p191, %p192
      %p194 = scmp.ne.s32.totalorder %s182, %s183
      %p195 = scmp.eq.s32.totalorder %s26, 1
      %p196 = por %p194, %p195
      %p198 = scmp.ne.s32.totalorder %s183, %s197
      %p199 = scmp.eq.s32.totalorder %s26, 0
      %p200 = por %p198, %p199
      %s202 = sadd.s32 %s201, 1
      %p205 = scmp.eq.s32.totalorder %s20, 1
      %p206 = scmp.ne.s32.totalorder %s201, %s203
      %p207 = scmp.eq.s32.totalorder %s20, 0
      %p208 = por %p206, %p207
      %p209 = scmp.ne.s32.totalorder %s201, %s203
      %p210 = scmp.eq.s32.totalorder %s25, 1
      %p211 = por %p209, %p210
      %p212 = scmp.ne.s32.totalorder %s203, %s204
      %p213 = scmp.eq.s32.totalorder %s25, 0
      %p214 = por %p212, %p213
      %p215 = scmp.ne.s32.totalorder %s203, %s204
      %p216 = scmp.eq.s32.totalorder %s26, 1
      %p217 = por %p215, %p216
      %p219 = scmp.ne.s32.totalorder %s204, %s218
      %p220 = scmp.eq.s32.totalorder %s26, 0
      %p221 = por %p219, %p220
      %s223 = sadd.s32 %s222, 1
      %p226 = scmp.eq.s32.totalorder %s20, 1
      %p227 = scmp.ne.s32.totalorder %s222, %s224
      %p228 = scmp.eq.s32.totalorder %s20, 0
      %p229 = por %p227, %p228
      %p230 = scmp.ne.s32.totalorder %s222, %s224
      %p231 = scmp.eq.s32.totalorder %s25, 1
      %p232 = por %p230, %p231
      %p233 = scmp.ne.s32.totalorder %s224, %s225
      %p234 = scmp.eq.s32.totalorder %s25, 0
      %p235 = por %p233, %p234
      %p236 = scmp.ne.s32.totalorder %s224, %s225
      %p237 = scmp.eq.s32.totalorder %s26, 1
      %p238 = por %p236, %p237
      %p240 = scmp.ne.s32.totalorder %s225, %s239
      %p241 = scmp.eq.s32.totalorder %s26, 0
      %p242 = por %p240, %p241
      %s244 = sadd.s32 %s243, 1
      %p247 = scmp.eq.s32.totalorder %s20, 1
      %p248 = scmp.ne.s32.totalorder %s243, %s245
      %p249 = scmp.eq.s32.totalorder %s20, 0
      %p250 = por %p248, %p249
      %p251 = scmp.ne.s32.totalorder %s243, %s245
      %p252 = scmp.eq.s32.totalorder %s25, 1
      %p253 = por %p251, %p252
      %p254 = scmp.ne.s32.totalorder %s245, %s246
      %p255 = scmp.eq.s32.totalorder %s25, 0
      %p256 = por %p254, %p255
      %p257 = scmp.ne.s32.totalorder %s245, %s246
      %p258 = scmp.eq.s32.totalorder %s26, 1
      %p259 = por %p257, %p258
      %p261 = scmp.ne.s32.totalorder %s246, %s260
      %p262 = scmp.eq.s32.totalorder %s26, 0
      %p263 = por %p261, %p262
      %s264 = ssub.s32 %s20, %s27
      %p265 = scmp.eq.s32.totalorder %s264, 0
      %s267 = sadd.s32 %s266, 1
      %s268 = scalar_select %p265, %s266, %s267
      %p271 = pneg %p265
      %p272 = scmp.eq.s32.totalorder %s20, 1
      %p273 = por %p271, %p272
      %p274 = scmp.ne.s32.totalorder %s266, %s269
      %p275 = scmp.eq.s32.totalorder %s20, 0
      %p276 = por %p274, %p275
      %p277 = scmp.ne.s32.totalorder %s266, %s269
      %p278 = scmp.eq.s32.totalorder %s25, 1
      %p279 = por %p277, %p278
      %p280 = scmp.ne.s32.totalorder %s269, %s270
      %p281 = scmp.eq.s32.totalorder %s25, 0
      %p282 = por %p280, %p281
      %p283 = scmp.ne.s32.totalorder %s269, %s270
      %p284 = scmp.eq.s32.totalorder %s26, 1
      %p285 = por %p283, %p284
      %p287 = scmp.ne.s32.totalorder %s270, %s286
      %p288 = scmp.eq.s32.totalorder %s26, 0
      %p289 = por %p287, %p288
      %p290 = scmp.le.s32.totalorder 1, %s20
      %p291 = scmp.lt.s32.totalorder %s20, 3
      %p292 = pnand %p290, %p291
      %p293 = pneg %p292
      // Predicated region
      $region9: #{competitive_block_forward.3} parent=5 // pred_check
        _
      $region10: #{competitive_block_forward.3} parent=5 // pred_check_branch
        %295 = sbr.rel (%p292) target = $region12
      $region11: #{competitive_block_forward.3} parent=5 // pred_region
        %s296 = ssub.s32 %s20, 1
        // Predicated region
        $region13: #{competitive_block_forward.3} parent=11 // pred_check
          %p297 = pneg %p67
        $region14: #{competitive_block_forward.3} parent=11 // pred_check_branch
          %299 = sbr.rel (%p297) target = $region16
        $region15: #{competitive_block_forward.3} parent=11 // pred_region
          _
        $region16: #{competitive_block_forward.3} parent=11 // pred_fallthru
          _
        // Predicated region
        $region17: #{competitive_block_forward.3} parent=11 // pred_check
          %p300 = pneg %p88
        $region18: #{competitive_block_forward.3} parent=11 // pred_check_branch
          %302 = sbr.rel (%p300) target = $region20
        $region19: #{competitive_block_forward.3} parent=11 // pred_region
          _
        $region20: #{competitive_block_forward.3} parent=11 // pred_fallthru
          _
        // Predicated region
        $region21: #{competitive_block_forward.3} parent=11 // pred_check
          %p303 = pneg %p109
        $region22: #{competitive_block_forward.3} parent=11 // pred_check_branch
          %305 = sbr.rel (%p303) target = $region24
        $region23: #{competitive_block_forward.3} parent=11 // pred_region
          %307 = vsyncadd [#allocation3], 0
          %s308 = sshll.u32 %s3, 4
          %s309 = int_to_ptr.hbm [resolvable:$true] %s308
          %s310 = sshll.u32 [#allocation2], 4
          %s311 = int_to_ptr.vmem [resolvable:$true] %s310
          %316 = dma.hbm_to_vmem [thread:$0]  %s309, 4096, %s311, [#allocation3], 1024, 1024, 64
        $region24: #{competitive_block_forward.3} parent=11 // pred_fallthru
          _
        // Predicated region
        $region25: #{competitive_block_forward.3} parent=11 // pred_check
          %p317 = pneg %p130
        $region26: #{competitive_block_forward.3} parent=11 // pred_check_branch
          %319 = sbr.rel (%p317) target = $region28
        $region27: #{competitive_block_forward.3} parent=11 // pred_region
          %321 = vsyncadd [#allocation5], 0
          %s322 = sshll.u32 %s4, 4
          %s323 = int_to_ptr.hbm [resolvable:$true] %s322
          %s324 = sshll.u32 [#allocation4], 4
          %s325 = int_to_ptr.vmem [resolvable:$true] %s324
          %330 = dma.hbm_to_vmem [thread:$0]  %s323, 4096, %s325, [#allocation5], 1024, 1024, 64
        $region28: #{competitive_block_forward.3} parent=11 // pred_fallthru
          _
        // Predicated region
        $region29: #{competitive_block_forward.3} parent=11 // pred_check
          %p331 = pneg %p151
        $region30: #{competitive_block_forward.3} parent=11 // pred_check_branch
          %333 = sbr.rel (%p331) target = $region32
        $region31: #{competitive_block_forward.3} parent=11 // pred_region
          %335 = vsyncadd [#allocation5], 0
          %s337 = sshll.u32 %s5, 4
          %s338 = int_to_ptr.hbm [resolvable:$true] %s337
          %s339 = sshll.u32 [#allocation6], 4
          %s340 = int_to_ptr.vmem [resolvable:$true] %s339
          %342 = dma.hbm_to_vmem [thread:$0]  %s338, 128, %s340, [#allocation5]
        $region32: #{competitive_block_forward.3} parent=11 // pred_fallthru
          _
        // Predicated region
        $region33: #{competitive_block_forward.3} parent=11 // pred_check
          %p343 = pneg %p172
        $region34: #{competitive_block_forward.3} parent=11 // pred_check_branch
          %345 = sbr.rel (%p343) target = $region36
        $region35: #{competitive_block_forward.3} parent=11 // pred_region
          _
        $region36: #{competitive_block_forward.3} parent=11 // pred_fallthru
          _
        // Predicated region
        $region37: #{competitive_block_forward.3} parent=11 // pred_check
          %p346 = pneg %p193
        $region38: #{competitive_block_forward.3} parent=11 // pred_check_branch
          %348 = sbr.rel (%p346) target = $region40
        $region39: #{competitive_block_forward.3} parent=11 // pred_region
          %350 = vsyncadd [#allocation8], 0
          %s352 = sshll.u32 %s7, 4
          %s353 = int_to_ptr.hbm [resolvable:$true] %s352
          %s354 = sshll.u32 [#allocation7], 4
          %s355 = int_to_ptr.vmem [resolvable:$true] %s354
          %357 = dma.hbm_to_vmem [thread:$0]  %s353, 128, %s355, [#allocation8]
        $region40: #{competitive_block_forward.3} parent=11 // pred_fallthru
          _
        // Predicated region
        $region41: #{competitive_block_forward.3} parent=11 // pred_check
          %p358 = pneg %p214
        $region42: #{competitive_block_forward.3} parent=11 // pred_check_branch
          %360 = sbr.rel (%p358) target = $region44
        $region43: #{competitive_block_forward.3} parent=11 // pred_region
          _
        $region44: #{competitive_block_forward.3} parent=11 // pred_fallthru
          _
        // Predicated region
        $region45: #{competitive_block_forward.3} parent=11 // pred_check
          %p361 = pneg %p235
        $region46: #{competitive_block_forward.3} parent=11 // pred_check_branch
          %363 = sbr.rel (%p361) target = $region48
        $region47: #{competitive_block_forward.3} parent=11 // pred_region
          %365 = vsyncadd [#allocation8], 0
          %s367 = sshll.u32 %s9, 4
          %s368 = int_to_ptr.hbm [resolvable:$true] %s367
          %s369 = sshll.u32 [#allocation9], 4
          %s370 = int_to_ptr.vmem [resolvable:$true] %s369
          %372 = dma.hbm_to_vmem [thread:$0]  %s368, 128, %s370, [#allocation8]
        $region48: #{competitive_block_forward.3} parent=11 // pred_fallthru
          _
        // Predicated region
        $region49: #{competitive_block_forward.3} parent=11 // pred_check
          %p373 = pneg %p256
        $region50: #{competitive_block_forward.3} parent=11 // pred_check_branch
          %375 = sbr.rel (%p373) target = $region52
        $region51: #{competitive_block_forward.3} parent=11 // pred_region
          _
        $region52: #{competitive_block_forward.3} parent=11 // pred_fallthru
          _
      $region12: #{competitive_block_forward.3} parent=5 // pred_fallthru
        _
      %p376 = scmp.lt.s32.totalorder %s20, 2
      // Predicated region
      $region53: #{competitive_block_forward.3} parent=5 // pred_check
        %p377 = pneg %p376
      $region54: #{competitive_block_forward.3} parent=5 // pred_check_branch
        %379 = sbr.rel (%p377) target = $region56
      $region55: #{competitive_block_forward.3} parent=5 // pred_region
        // Predicated region
        $region57: #{competitive_block_forward.3} parent=55 // pred_check
          %p380 = pneg %p40
        $region58: #{competitive_block_forward.3} parent=55 // pred_check_branch
          %382 = sbr.rel (%p380) target = $region60
        $region59: #{competitive_block_forward.3} parent=55 // pred_region
          %p383 = scmp.lt.s32.totalorder %s20, 1
          %s384 = scalar_select %p383, %s20, 1
          %s385 = smul.addr %s384, 32
          %s386 = smul.addr %s385, 4
          %s387 = scalar_lea.vmem %s0, %s386
        $region60: #{competitive_block_forward.3} parent=55 // pred_fallthru
          _
      $region56: #{competitive_block_forward.3} parent=5 // pred_fallthru
        _
      %p388 = scmp.le.s32.totalorder 1, %s20
      %p389 = scmp.lt.s32.totalorder %s20, 3
      %p390 = pnand %p388, %p389
      %p391 = pneg %p390
      // Predicated region
      $region61: #{competitive_block_forward.3} parent=5 // pred_check
        _
      $region62: #{competitive_block_forward.3} parent=5 // pred_check_branch
        %393 = sbr.rel (%p390) target = $region64
      $region63: #{competitive_block_forward.3} parent=5 // pred_region
        %s394 = ssub.s32 %s20, 1
        // Predicated region
        $region65: #{competitive_block_forward.3} parent=63 // pred_check
          %p395 = pneg %p109
        $region66: #{competitive_block_forward.3} parent=63 // pred_check_branch
          %397 = sbr.rel (%p395) target = $region68
        $region67: #{competitive_block_forward.3} parent=63 // pred_region
          %399 = dma.done [#allocation3], 4096
        $region68: #{competitive_block_forward.3} parent=63 // pred_fallthru
          _
        // Predicated region
        $region69: #{competitive_block_forward.3} parent=63 // pred_check
          %p400 = pneg %p130
        $region70: #{competitive_block_forward.3} parent=63 // pred_check_branch
          %402 = sbr.rel (%p400) target = $region72
        $region71: #{competitive_block_forward.3} parent=63 // pred_region
          %404 = dma.done [#allocation5], 4096
        $region72: #{competitive_block_forward.3} parent=63 // pred_fallthru
          _
        // Predicated region
        $region73: #{competitive_block_forward.3} parent=63 // pred_check
          %p405 = pneg %p151
        $region74: #{competitive_block_forward.3} parent=63 // pred_check_branch
          %407 = sbr.rel (%p405) target = $region76
        $region75: #{competitive_block_forward.3} parent=63 // pred_region
          %409 = dma.done [#allocation5], 128
        $region76: #{competitive_block_forward.3} parent=63 // pred_fallthru
          _
        // Predicated region
        $region77: #{competitive_block_forward.3} parent=63 // pred_check
          %p410 = pneg %p193
        $region78: #{competitive_block_forward.3} parent=63 // pred_check_branch
          %412 = sbr.rel (%p410) target = $region80
        $region79: #{competitive_block_forward.3} parent=63 // pred_region
          %414 = dma.done [#allocation8], 128
        $region80: #{competitive_block_forward.3} parent=63 // pred_fallthru
          _
        // Predicated region
        $region81: #{competitive_block_forward.3} parent=63 // pred_check
          %p415 = pneg %p235
        $region82: #{competitive_block_forward.3} parent=63 // pred_check_branch
          %417 = sbr.rel (%p415) target = $region84
        $region83: #{competitive_block_forward.3} parent=63 // pred_region
          %419 = dma.done [#allocation8], 128
        $region84: #{competitive_block_forward.3} parent=63 // pred_fallthru
          _
        %p420 = scmp.lt.s32.totalorder %s25, 1
        %s421 = scalar_select %p420, %s25, 1
        %s422 = smul.addr %s421, 32
        %s423 = smul.addr %s422, 4
        %s424 = scalar_lea.vmem %s0, %s423
        %p425 = pneg %p46
        %p426 = pneg %p43
        %p427 = pneg %p67
        %p428 = pneg %p64
        %p429 = pneg %p88
        %p430 = pneg %p85
        %p431 = pneg %p109
        %p432 = pneg %p106
        %p433 = pneg %p130
        %p434 = pneg %p127
        %p435 = pneg %p151
        %p436 = pneg %p148
        %p437 = pneg %p172
        %p438 = pneg %p169
        %p439 = pneg %p193
        %p440 = pneg %p190
        %p441 = pneg %p214
        %p442 = pneg %p211
        %p443 = pneg %p235
        %p444 = pneg %p232
        %p445 = pneg %p256
        %p446 = pneg %p253
        %p447 = pneg %p282
        %p448 = pneg %p279
        %p449 = scmp.lt.s32.totalorder %s25, 1
        %s450 = scalar_select %p449, %s25, 1
        %s451 = smul.addr %s450, 8
        %s452 = smul.addr %s451, 8
        %s453 = scalar_lea.vmem %s11, %s452
        %p454 = scmp.lt.s32.totalorder %s25, 1
        %s455 = scalar_select %p454, %s25, 1
        %s456 = smul.addr %s455, 32
        %s457 = smul.addr %s456, 4
        %s458 = scalar_lea.vmem %s0, %s457
        %p459 = scmp.lt.s32.totalorder %s25, 1
        %s460 = scalar_select %p459, %s25, 1
        %s461 = smul.addr %s460, 8
        %s462 = smul.addr %s461, 8
        %s463 = scalar_lea.vmem %s11, %s462
        %v465 = vld [vmem:[%s1] sm:$0xf]
        %v466 = vld [vmem:[%s458] sm:$0xff]
        %v467 = vld [vmem:[%s458 + $0x8] sm:$0xff]
        %v468 = vld [vmem:[%s458 + $0x10] sm:$0xff]
        %v469 = vld [vmem:[%s458 + $0x18] sm:$0xff]
        %v470 = vld [vmem:[%s458 + $0x20] sm:$0xff]
        %v471 = vld [vmem:[%s458 + $0x28] sm:$0xff]
        %v472 = vld [vmem:[%s458 + $0x30] sm:$0xff]
        %v473 = vld [vmem:[%s458 + $0x38] sm:$0xff]
        %v474 = vld [vmem:[%s458 + $0x40] sm:$0xff]
        %v475 = vld [vmem:[%s458 + $0x48] sm:$0xff]
        %v476 = vld [vmem:[%s458 + $0x50] sm:$0xff]
        %v477 = vld [vmem:[%s458 + $0x58] sm:$0xff]
        %v478 = vld [vmem:[%s458 + $0x60] sm:$0x11]
        %v479 = vld [vmem:[%s458 + $0x68] sm:$0x11]
        %v480 = vld [vmem:[%s458 + $0x70] sm:$0x11]
        %v481 = vld [vmem:[%s458 + $0x78] sm:$0x11]
        %v498 = vunpack.c.l.b16 %v466
        %v499 = vunpack.c.h.b16 %v466
        %v500 = vunpack.c.l.b16 %v467
        %v501 = vunpack.c.h.b16 %v467
        %v502 = vunpack.c.l.b16 %v468
        %v503 = vunpack.c.h.b16 %v468
        %v504 = vunpack.c.l.b16 %v469
        %v505 = vunpack.c.h.b16 %v469
        %v506 = vunpack.c.l.b16 %v470
        %v507 = vunpack.c.h.b16 %v470
        %v508 = vunpack.c.l.b16 %v471
        %v509 = vunpack.c.h.b16 %v471
        %v510 = vunpack.c.l.b16 %v472
        %v511 = vunpack.c.h.b16 %v472
        %v512 = vunpack.c.l.b16 %v473
        %v513 = vunpack.c.h.b16 %v473
        %v514 = vunpack.c.l.b16 %v474
        %v515 = vunpack.c.h.b16 %v474
        %v516 = vunpack.c.l.b16 %v475
        %v517 = vunpack.c.h.b16 %v475
        %v518 = vunpack.c.l.b16 %v476
        %v519 = vunpack.c.h.b16 %v476
        %v520 = vunpack.c.l.b16 %v477
        %v521 = vunpack.c.h.b16 %v477
        %v522 = vunpack.c.l.b16 %v478
        %v523 = vunpack.c.h.b16 %v478
        %v524 = vunpack.c.l.b16 %v479
        %v525 = vunpack.c.h.b16 %v479
        %v526 = vunpack.c.l.b16 %v480
        %v527 = vunpack.c.h.b16 %v480
        %v528 = vunpack.c.l.b16 %v481
        %v529 = vunpack.c.h.b16 %v481
        %v530 = vpack.c.b16 %v506, %v498
        %v531 = vpack.c.b16 %v507, %v499
        %v532 = vpack.c.b16 %v508, %v500
        %v533 = vpack.c.b16 %v509, %v501
        %v534 = vpack.c.b16 %v510, %v502
        %v535 = vpack.c.b16 %v511, %v503
        %v536 = vpack.c.b16 %v512, %v504
        %v537 = vpack.c.b16 %v513, %v505
        %v538 = vpack.c.b16 %v522, %v514
        %v539 = vpack.c.b16 %v523, %v515
        %v540 = vpack.c.b16 %v524, %v516
        %v541 = vpack.c.b16 %v525, %v517
        %v542 = vpack.c.b16 %v526, %v518
        %v543 = vpack.c.b16 %v527, %v519
        %v544 = vpack.c.b16 %v528, %v520
        %v545 = vpack.c.b16 %v529, %v521
        %vm554 = vcmask 203776
        %v556 = vsel %vm554, %v465, 0
        %vm558 = vcmask 1043456
        %vm559 = vcmask 1044480
        %v560 = vsel %vm558, 4294967295, 65535
        %v561 = vsel %vm559, %v560, 0
        %v563 = vand.u32 %v538, %v561
        %v566 = vand.u32 %v539, %v561
        %v569 = vand.u32 %v540, %v561
        %v572 = vand.u32 %v541, %v561
        %v575 = vand.u32 %v542, %v561
        %v578 = vand.u32 %v543, %v561
        %v581 = vand.u32 %v544, %v561
        %v584 = vand.u32 %v545, %v561
        %586 = vmatpush.bf16.msra.mxu0 0
        %587 = vmatpush.bf16.msra.mxu0 0
        %588 = vmatpush.bf16.msra.mxu0 0
        %589 = vmatpush.bf16.msra.mxu0 0
        %590 = vmatpush.bf16.msra.mxu0 0
        %591 = vmatpush.bf16.msra.mxu0 0
        %592 = vmatpush.bf16.msra.mxu0 %v563
        %593 = vmatpush.bf16.msra.mxu0 %v530
        %594 = vmatmul.bf16.gmra.mxu0 %v556
        %v595 = vpop.f32.mrf.mxu0
        %v596 = vadd.f32 0.0, %v595
        %v597 = vpop.f32.mrf.mxu0
        %598 = vdwg.mxu0
        %599 = vmatpush.bf16.msra.mxu0 0
        %600 = vmatpush.bf16.msra.mxu0 0
        %601 = vmatpush.bf16.msra.mxu0 0
        %602 = vmatpush.bf16.msra.mxu0 0
        %603 = vmatpush.bf16.msra.mxu0 0
        %604 = vmatpush.bf16.msra.mxu0 0
        %605 = vmatpush.bf16.msra.mxu0 %v566
        %606 = vmatpush.bf16.msra.mxu0 %v531
        %607 = vmatmul.bf16.gmra.mxu0 %v556
        %v608 = vpop.f32.mrf.mxu0
        %v609 = vadd.f32 0.0, %v608
        %v610 = vpop.f32.mrf.mxu0
        %611 = vdwg.mxu0
        %612 = vmatpush.bf16.msra.mxu0 0
        %613 = vmatpush.bf16.msra.mxu0 0
        %614 = vmatpush.bf16.msra.mxu0 0
        %615 = vmatpush.bf16.msra.mxu0 0
        %616 = vmatpush.bf16.msra.mxu0 0
        %617 = vmatpush.bf16.msra.mxu0 0
        %618 = vmatpush.bf16.msra.mxu0 %v569
        %619 = vmatpush.bf16.msra.mxu0 %v532
        %620 = vmatmul.bf16.gmra.mxu0 %v556
        %v621 = vpop.f32.mrf.mxu0
        %v622 = vadd.f32 0.0, %v621
        %v623 = vpop.f32.mrf.mxu0
        %624 = vdwg.mxu0
        %625 = vmatpush.bf16.msra.mxu0 0
        %626 = vmatpush.bf16.msra.mxu0 0
        %627 = vmatpush.bf16.msra.mxu0 0
        %628 = vmatpush.bf16.msra.mxu0 0
        %629 = vmatpush.bf16.msra.mxu0 0
        %630 = vmatpush.bf16.msra.mxu0 0
        %631 = vmatpush.bf16.msra.mxu0 %v572
        %632 = vmatpush.bf16.msra.mxu0 %v533
        %633 = vmatmul.bf16.gmra.mxu0 %v556
        %v634 = vpop.f32.mrf.mxu0
        %v635 = vadd.f32 0.0, %v634
        %v636 = vpop.f32.mrf.mxu0
        %637 = vdwg.mxu0
        %638 = vmatpush.bf16.msra.mxu0 0
        %639 = vmatpush.bf16.msra.mxu0 0
        %640 = vmatpush.bf16.msra.mxu0 0
        %641 = vmatpush.bf16.msra.mxu0 0
        %642 = vmatpush.bf16.msra.mxu0 0
        %643 = vmatpush.bf16.msra.mxu0 0
        %644 = vmatpush.bf16.msra.mxu0 %v575
        %645 = vmatpush.bf16.msra.mxu0 %v534
        %646 = vmatmul.bf16.gmra.mxu0 %v556
        %v647 = vpop.f32.mrf.mxu0
        %v648 = vadd.f32 0.0, %v647
        %v649 = vpop.f32.mrf.mxu0
        %650 = vdwg.mxu0
        %651 = vmatpush.bf16.msra.mxu0 0
        %652 = vmatpush.bf16.msra.mxu0 0
        %653 = vmatpush.bf16.msra.mxu0 0
        %654 = vmatpush.bf16.msra.mxu0 0
        %655 = vmatpush.bf16.msra.mxu0 0
        %656 = vmatpush.bf16.msra.mxu0 0
        %657 = vmatpush.bf16.msra.mxu0 %v578
        %658 = vmatpush.bf16.msra.mxu0 %v535
        %659 = vmatmul.bf16.gmra.mxu0 %v556
        %v660 = vpop.f32.mrf.mxu0
        %v661 = vadd.f32 0.0, %v660
        %v662 = vpop.f32.mrf.mxu0
        %663 = vdwg.mxu0
        %664 = vmatpush.bf16.msra.mxu0 0
        %665 = vmatpush.bf16.msra.mxu0 0
        %666 = vmatpush.bf16.msra.mxu0 0
        %667 = vmatpush.bf16.msra.mxu0 0
        %668 = vmatpush.bf16.msra.mxu0 0
        %669 = vmatpush.bf16.msra.mxu0 0
        %670 = vmatpush.bf16.msra.mxu0 %v581
        %671 = vmatpush.bf16.msra.mxu0 %v536
        %672 = vmatmul.bf16.gmra.mxu0 %v556
        %v673 = vpop.f32.mrf.mxu0
        %v674 = vadd.f32 0.0, %v673
        %v675 = vpop.f32.mrf.mxu0
        %676 = vdwg.mxu0
        %677 = vmatpush.bf16.msra.mxu0 0
        %678 = vmatpush.bf16.msra.mxu0 0
        %679 = vmatpush.bf16.msra.mxu0 0
        %680 = vmatpush.bf16.msra.mxu0 0
        %681 = vmatpush.bf16.msra.mxu0 0
        %682 = vmatpush.bf16.msra.mxu0 0
        %683 = vmatpush.bf16.msra.mxu0 %v584
        %684 = vmatpush.bf16.msra.mxu0 %v537
        %685 = vmatmul.bf16.gmra.mxu0 %v556
        %v686 = vpop.f32.mrf.mxu0
        %v687 = vadd.f32 0.0, %v686
        %v688 = vpop.f32.mrf.mxu0
        %689 = vdwg.mxu0
        %v690 = vld [vmem:[%s2] sm:$0xff]
        %v691 = vld [vmem:[%s2 + $0x8] sm:$0xff]
        %v692 = vld [vmem:[%s2 + $0x10] sm:$0xff]
        %v693 = vld [vmem:[%s2 + $0x18] sm:$0xff]
        %v694 = vld [vmem:[%s2 + $0x20] sm:$0xff]
        %v695 = vld [vmem:[%s2 + $0x28] sm:$0xff]
        %v696 = vld [vmem:[%s2 + $0x30] sm:$0xff]
        %v697 = vld [vmem:[%s2 + $0x38] sm:$0xff]
        %v698 = vld [vmem:[%s2 + $0x40] sm:$0xff]
        %v699 = vld [vmem:[%s2 + $0x48] sm:$0xff]
        %v700 = vld [vmem:[%s2 + $0x50] sm:$0xff]
        %v701 = vld [vmem:[%s2 + $0x58] sm:$0xff]
        %v702 = vld [vmem:[%s2 + $0x60] sm:$0xff]
        %v703 = vld [vmem:[%s2 + $0x68] sm:$0xff]
        %v704 = vld [vmem:[%s2 + $0x70] sm:$0xff]
        %v705 = vld [vmem:[%s2 + $0x78] sm:$0xff]
        %v706 = vld [vmem:[%s2 + $0x80] sm:$0xff]
        %v707 = vld [vmem:[%s2 + $0x88] sm:$0xff]
        %v708 = vld [vmem:[%s2 + $0x90] sm:$0xff]
        %v709 = vld [vmem:[%s2 + $0x98] sm:$0xff]
        %v710 = vld [vmem:[%s2 + $0xa0] sm:$0xff]
        %v711 = vld [vmem:[%s2 + $0xa8] sm:$0xff]
        %v712 = vld [vmem:[%s2 + $0xb0] sm:$0xff]
        %v713 = vld [vmem:[%s2 + $0xb8] sm:$0xff]
        %v714 = vld [vmem:[%s2 + $0xc0] sm:$0xff]
        %v715 = vld [vmem:[%s2 + $0xc8] sm:$0xff]
        %v716 = vld [vmem:[%s2 + $0xd0] sm:$0xff]
        %v717 = vld [vmem:[%s2 + $0xd8] sm:$0xff]
        %v718 = vld [vmem:[%s2 + $0xe0] sm:$0xff]
        %v719 = vld [vmem:[%s2 + $0xe8] sm:$0xff]
        %v720 = vld [vmem:[%s2 + $0xf0] sm:$0xff]
        %v721 = vld [vmem:[%s2 + $0xf8] sm:$0xff]
        %v722 = vld [vmem:[%s2 + $0x100] sm:$0xff]
        %v723 = vld [vmem:[%s2 + $0x108] sm:$0xff]
        %v724 = vld [vmem:[%s2 + $0x110] sm:$0xff]
        %v725 = vld [vmem:[%s2 + $0x118] sm:$0xff]
        %v726 = vld [vmem:[%s2 + $0x120] sm:$0xff]
        %v727 = vld [vmem:[%s2 + $0x128] sm:$0xff]
        %v728 = vld [vmem:[%s2 + $0x130] sm:$0xff]
        %v729 = vld [vmem:[%s2 + $0x138] sm:$0xff]
        %v730 = vld [vmem:[%s2 + $0x140] sm:$0xff]
        %v731 = vld [vmem:[%s2 + $0x148] sm:$0xff]
        %v732 = vld [vmem:[%s2 + $0x150] sm:$0xff]
        %v733 = vld [vmem:[%s2 + $0x158] sm:$0xff]
        %v734 = vld [vmem:[%s2 + $0x160] sm:$0xff]
        %v735 = vld [vmem:[%s2 + $0x168] sm:$0xff]
        %v736 = vld [vmem:[%s2 + $0x170] sm:$0xff]
        %v737 = vld [vmem:[%s2 + $0x178] sm:$0xff]
        %v738 = vld [vmem:[%s2 + $0x180] sm:$0xff]
        %v739 = vld [vmem:[%s2 + $0x188] sm:$0xff]
        %v740 = vld [vmem:[%s2 + $0x190] sm:$0xff]
        %v741 = vld [vmem:[%s2 + $0x198] sm:$0xff]
        %v742 = vld [vmem:[%s2 + $0x1a0] sm:$0xff]
        %v743 = vld [vmem:[%s2 + $0x1a8] sm:$0xff]
        %v744 = vld [vmem:[%s2 + $0x1b0] sm:$0xff]
        %v745 = vld [vmem:[%s2 + $0x1b8] sm:$0xff]
        %v746 = vld [vmem:[%s2 + $0x1c0] sm:$0xff]
        %v747 = vld [vmem:[%s2 + $0x1c8] sm:$0xff]
        %v748 = vld [vmem:[%s2 + $0x1d0] sm:$0xff]
        %v749 = vld [vmem:[%s2 + $0x1d8] sm:$0xff]
        %v750 = vld [vmem:[%s2 + $0x1e0] sm:$0xff]
        %v751 = vld [vmem:[%s2 + $0x1e8] sm:$0xff]
        %v752 = vld [vmem:[%s2 + $0x1f0] sm:$0xff]
        %v753 = vld [vmem:[%s2 + $0x1f8] sm:$0xff]
        %v754 = vld [vmem:[%s2 + $0x200] sm:$0xff]
        %v755 = vld [vmem:[%s2 + $0x208] sm:$0xff]
        %v756 = vld [vmem:[%s2 + $0x210] sm:$0xff]
        %v757 = vld [vmem:[%s2 + $0x218] sm:$0xff]
        %v758 = vld [vmem:[%s2 + $0x220] sm:$0xff]
        %v759 = vld [vmem:[%s2 + $0x228] sm:$0xff]
        %v760 = vld [vmem:[%s2 + $0x230] sm:$0xff]
        %v761 = vld [vmem:[%s2 + $0x238] sm:$0xff]
        %v762 = vld [vmem:[%s2 + $0x240] sm:$0xff]
        %v763 = vld [vmem:[%s2 + $0x248] sm:$0xff]
        %v764 = vld [vmem:[%s2 + $0x250] sm:$0xff]
        %v765 = vld [vmem:[%s2 + $0x258] sm:$0xff]
        %v766 = vld [vmem:[%s2 + $0x260] sm:$0xff]
        %v767 = vld [vmem:[%s2 + $0x268] sm:$0xff]
        %v768 = vld [vmem:[%s2 + $0x270] sm:$0xff]
        %v769 = vld [vmem:[%s2 + $0x278] sm:$0xff]
        %v770 = vld [vmem:[%s2 + $0x280] sm:$0xff]
        %v771 = vld [vmem:[%s2 + $0x288] sm:$0xff]
        %v772 = vld [vmem:[%s2 + $0x290] sm:$0xff]
        %v773 = vld [vmem:[%s2 + $0x298] sm:$0xff]
        %v774 = vld [vmem:[%s2 + $0x2a0] sm:$0xff]
        %v775 = vld [vmem:[%s2 + $0x2a8] sm:$0xff]
        %v776 = vld [vmem:[%s2 + $0x2b0] sm:$0xff]
        %v777 = vld [vmem:[%s2 + $0x2b8] sm:$0xff]
        %v778 = vld [vmem:[%s2 + $0x2c0] sm:$0xff]
        %v779 = vld [vmem:[%s2 + $0x2c8] sm:$0xff]
        %v780 = vld [vmem:[%s2 + $0x2d0] sm:$0xff]
        %v781 = vld [vmem:[%s2 + $0x2d8] sm:$0xff]
        %v782 = vld [vmem:[%s2 + $0x2e0] sm:$0xff]
        %v783 = vld [vmem:[%s2 + $0x2e8] sm:$0xff]
        %v784 = vld [vmem:[%s2 + $0x2f0] sm:$0xff]
        %v785 = vld [vmem:[%s2 + $0x2f8] sm:$0xff]
        %v786 = vld [vmem:[%s2 + $0x300] sm:$0xff]
        %v787 = vld [vmem:[%s2 + $0x308] sm:$0xff]
        %v788 = vld [vmem:[%s2 + $0x310] sm:$0xff]
        %v789 = vld [vmem:[%s2 + $0x318] sm:$0xff]
        %v790 = vld [vmem:[%s2 + $0x320] sm:$0xff]
        %v791 = vld [vmem:[%s2 + $0x328] sm:$0xff]
        %v792 = vld [vmem:[%s2 + $0x330] sm:$0xff]
        %v793 = vld [vmem:[%s2 + $0x338] sm:$0xff]
        %v794 = vld [vmem:[%s2 + $0x340] sm:$0xff]
        %v795 = vld [vmem:[%s2 + $0x348] sm:$0xff]
        %v796 = vld [vmem:[%s2 + $0x350] sm:$0xff]
        %v797 = vld [vmem:[%s2 + $0x358] sm:$0xff]
        %v798 = vld [vmem:[%s2 + $0x360] sm:$0xff]
        %v799 = vld [vmem:[%s2 + $0x368] sm:$0xff]
        %v800 = vld [vmem:[%s2 + $0x370] sm:$0xff]
        %v801 = vld [vmem:[%s2 + $0x378] sm:$0xff]
        %v802 = vld [vmem:[%s2 + $0x380] sm:$0xff]
        %v803 = vld [vmem:[%s2 + $0x388] sm:$0xff]
        %v804 = vld [vmem:[%s2 + $0x390] sm:$0xff]
        %v805 = vld [vmem:[%s2 + $0x398] sm:$0xff]
        %v806 = vld [vmem:[%s2 + $0x3a0] sm:$0xff]
        %v807 = vld [vmem:[%s2 + $0x3a8] sm:$0xff]
        %v808 = vld [vmem:[%s2 + $0x3b0] sm:$0xff]
        %v809 = vld [vmem:[%s2 + $0x3b8] sm:$0xff]
        %v810 = vld [vmem:[%s2 + $0x3c0] sm:$0xff]
        %v811 = vld [vmem:[%s2 + $0x3c8] sm:$0xff]
        %v812 = vld [vmem:[%s2 + $0x3d0] sm:$0xff]
        %v813 = vld [vmem:[%s2 + $0x3d8] sm:$0xff]
        %v814 = vld [vmem:[%s2 + $0x3e0] sm:$0xff]
        %v815 = vld [vmem:[%s2 + $0x3e8] sm:$0xff]
        %v816 = vld [vmem:[%s2 + $0x3f0] sm:$0xff]
        %v817 = vld [vmem:[%s2 + $0x3f8] sm:$0xff]
        %818 = vmatpush.msra.mxu0 %v705
        %819 = vmatpush.msra.mxu0 %v704
        %820 = vmatpush.msra.mxu0 %v703
        %821 = vmatpush.msra.mxu0 %v702
        %822 = vmatpush.msra.mxu0 %v701
        %823 = vmatpush.msra.mxu0 %v700
        %824 = vmatpush.msra.mxu0 %v699
        %825 = vmatpush.msra.mxu0 %v698
        %826 = vmatpush.msra.mxu0 %v697
        %827 = vmatpush.msra.mxu0 %v696
        %828 = vmatpush.msra.mxu0 %v695
        %829 = vmatpush.msra.mxu0 %v694
        %830 = vmatpush.msra.mxu0 %v693
        %831 = vmatpush.msra.mxu0 %v692
        %832 = vmatpush.msra.mxu0 %v691
        %833 = vmatpush.msra.mxu0 %v690
        %834 = vmatmul.f32.gmra.mxu0 %v596
        %v835 = vpop.f32.mrf.mxu0
        %v836 = vadd.f32 0.0, %v835
        %837 = vdwg.mxu0
        %838 = vmatpush.msra.mxu0 %v721
        %839 = vmatpush.msra.mxu0 %v720
        %840 = vmatpush.msra.mxu0 %v719
        %841 = vmatpush.msra.mxu0 %v718
        %842 = vmatpush.msra.mxu0 %v717
        %843 = vmatpush.msra.mxu0 %v716
        %844 = vmatpush.msra.mxu0 %v715
        %845 = vmatpush.msra.mxu0 %v714
        %846 = vmatpush.msra.mxu0 %v713
        %847 = vmatpush.msra.mxu0 %v712
        %848 = vmatpush.msra.mxu0 %v711
        %849 = vmatpush.msra.mxu0 %v710
        %850 = vmatpush.msra.mxu0 %v709
        %851 = vmatpush.msra.mxu0 %v708
        %852 = vmatpush.msra.mxu0 %v707
        %853 = vmatpush.msra.mxu0 %v706
        %854 = vmatmul.f32.gmra.mxu0 %v609
        %v855 = vpop.f32.mrf.mxu0
        %v856 = vadd.f32 %v836, %v855
        %857 = vdwg.mxu0
        %858 = vmatpush.msra.mxu0 %v737
        %859 = vmatpush.msra.mxu0 %v736
        %860 = vmatpush.msra.mxu0 %v735
        %861 = vmatpush.msra.mxu0 %v734
        %862 = vmatpush.msra.mxu0 %v733
        %863 = vmatpush.msra.mxu0 %v732
        %864 = vmatpush.msra.mxu0 %v731
        %865 = vmatpush.msra.mxu0 %v730
        %866 = vmatpush.msra.mxu0 %v729
        %867 = vmatpush.msra.mxu0 %v728
        %868 = vmatpush.msra.mxu0 %v727
        %869 = vmatpush.msra.mxu0 %v726
        %870 = vmatpush.msra.mxu0 %v725
        %871 = vmatpush.msra.mxu0 %v724
        %872 = vmatpush.msra.mxu0 %v723
        %873 = vmatpush.msra.mxu0 %v722
        %874 = vmatmul.f32.gmra.mxu0 %v622
        %v875 = vpop.f32.mrf.mxu0
        %v876 = vadd.f32 %v856, %v875
        %877 = vdwg.mxu0
        %878 = vmatpush.msra.mxu0 %v753
        %879 = vmatpush.msra.mxu0 %v752
        %880 = vmatpush.msra.mxu0 %v751
        %881 = vmatpush.msra.mxu0 %v750
        %882 = vmatpush.msra.mxu0 %v749
        %883 = vmatpush.msra.mxu0 %v748
        %884 = vmatpush.msra.mxu0 %v747
        %885 = vmatpush.msra.mxu0 %v746
        %886 = vmatpush.msra.mxu0 %v745
        %887 = vmatpush.msra.mxu0 %v744
        %888 = vmatpush.msra.mxu0 %v743
        %889 = vmatpush.msra.mxu0 %v742
        %890 = vmatpush.msra.mxu0 %v741
        %891 = vmatpush.msra.mxu0 %v740
        %892 = vmatpush.msra.mxu0 %v739
        %893 = vmatpush.msra.mxu0 %v738
        %894 = vmatmul.f32.gmra.mxu0 %v635
        %v895 = vpop.f32.mrf.mxu0
        %v896 = vadd.f32 %v876, %v895
        %897 = vdwg.mxu0
        %898 = vmatpush.msra.mxu0 %v769
        %899 = vmatpush.msra.mxu0 %v768
        %900 = vmatpush.msra.mxu0 %v767
        %901 = vmatpush.msra.mxu0 %v766
        %902 = vmatpush.msra.mxu0 %v765
        %903 = vmatpush.msra.mxu0 %v764
        %904 = vmatpush.msra.mxu0 %v763
        %905 = vmatpush.msra.mxu0 %v762
        %906 = vmatpush.msra.mxu0 %v761
        %907 = vmatpush.msra.mxu0 %v760
        %908 = vmatpush.msra.mxu0 %v759
        %909 = vmatpush.msra.mxu0 %v758
        %910 = vmatpush.msra.mxu0 %v757
        %911 = vmatpush.msra.mxu0 %v756
        %912 = vmatpush.msra.mxu0 %v755
        %913 = vmatpush.msra.mxu0 %v754
        %914 = vmatmul.f32.gmra.mxu0 %v648
        %v915 = vpop.f32.mrf.mxu0
        %v916 = vadd.f32 %v896, %v915
        %917 = vdwg.mxu0
        %918 = vmatpush.msra.mxu0 %v785
        %919 = vmatpush.msra.mxu0 %v784
        %920 = vmatpush.msra.mxu0 %v783
        %921 = vmatpush.msra.mxu0 %v782
        %922 = vmatpush.msra.mxu0 %v781
        %923 = vmatpush.msra.mxu0 %v780
        %924 = vmatpush.msra.mxu0 %v779
        %925 = vmatpush.msra.mxu0 %v778
        %926 = vmatpush.msra.mxu0 %v777
        %927 = vmatpush.msra.mxu0 %v776
        %928 = vmatpush.msra.mxu0 %v775
        %929 = vmatpush.msra.mxu0 %v774
        %930 = vmatpush.msra.mxu0 %v773
        %931 = vmatpush.msra.mxu0 %v772
        %932 = vmatpush.msra.mxu0 %v771
        %933 = vmatpush.msra.mxu0 %v770
        %934 = vmatmul.f32.gmra.mxu0 %v661
        %v935 = vpop.f32.mrf.mxu0
        %v936 = vadd.f32 %v916, %v935
        %937 = vdwg.mxu0
        %938 = vmatpush.msra.mxu0 %v801
        %939 = vmatpush.msra.mxu0 %v800
        %940 = vmatpush.msra.mxu0 %v799
        %941 = vmatpush.msra.mxu0 %v798
        %942 = vmatpush.msra.mxu0 %v797
        %943 = vmatpush.msra.mxu0 %v796
        %944 = vmatpush.msra.mxu0 %v795
        %945 = vmatpush.msra.mxu0 %v794
        %946 = vmatpush.msra.mxu0 %v793
        %947 = vmatpush.msra.mxu0 %v792
        %948 = vmatpush.msra.mxu0 %v791
        %949 = vmatpush.msra.mxu0 %v790
        %950 = vmatpush.msra.mxu0 %v789
        %951 = vmatpush.msra.mxu0 %v788
        %952 = vmatpush.msra.mxu0 %v787
        %953 = vmatpush.msra.mxu0 %v786
        %954 = vmatmul.f32.gmra.mxu0 %v674
        %v955 = vpop.f32.mrf.mxu0
        %v956 = vadd.f32 %v936, %v955
        %957 = vdwg.mxu0
        %958 = vmatpush.msra.mxu0 %v817
        %959 = vmatpush.msra.mxu0 %v816
        %960 = vmatpush.msra.mxu0 %v815
        %961 = vmatpush.msra.mxu0 %v814
        %962 = vmatpush.msra.mxu0 %v813
        %963 = vmatpush.msra.mxu0 %v812
        %964 = vmatpush.msra.mxu0 %v811
        %965 = vmatpush.msra.mxu0 %v810
        %966 = vmatpush.msra.mxu0 %v809
        %967 = vmatpush.msra.mxu0 %v808
        %968 = vmatpush.msra.mxu0 %v807
        %969 = vmatpush.msra.mxu0 %v806
        %970 = vmatpush.msra.mxu0 %v805
        %971 = vmatpush.msra.mxu0 %v804
        %972 = vmatpush.msra.mxu0 %v803
        %973 = vmatpush.msra.mxu0 %v802
        %974 = vmatmul.f32.gmra.mxu0 %v687
        %v975 = vpop.f32.mrf.mxu0
        %v976 = vadd.f32 %v956, %v975
        %977 = vdwg.mxu0
        %v978 = vld [vmem:[#allocation6] sm:$0xff]
        %v979 = vld [vmem:[%s6] sm:$0xff]
        %981 = vset.pattern.permute.xlu0 0
        %982 = vperm.xlu0 %981, %v979
        %v983 = vpop.permute.xlu0 %982
        %vm985 = vcmask 64512
        %v987 = vsel %vm985, %v978, 0
        %989 = vmatpush.msra.mxu0 0.0
        %990 = vmatpush.msra.mxu0 0.0
        %991 = vmatpush.msra.mxu0 0.0
        %992 = vmatpush.msra.mxu0 0.0
        %993 = vmatpush.msra.mxu0 0.0
        %994 = vmatpush.msra.mxu0 0.0
        %995 = vmatpush.msra.mxu0 0.0
        %996 = vmatpush.msra.mxu0 0.0
        %997 = vmatpush.msra.mxu0 0.0
        %998 = vmatpush.msra.mxu0 0.0
        %999 = vmatpush.msra.mxu0 0.0
        %1000 = vmatpush.msra.mxu0 0.0
        %1001 = vmatpush.msra.mxu0 0.0
        %1002 = vmatpush.msra.mxu0 0.0
        %1003 = vmatpush.msra.mxu0 0.0
        %1004 = vmatpush.msra.mxu0 %v976
        %1005 = vmatmul.f32.gmra.mxu0 %v987
        %v1006 = vpop.f32.mrf.mxu0
        %v1007 = vadd.f32 %v983, %v1006
        %1008 = vdwg.mxu0
        %v1009 = vadd.f32 %v1007, 3.0
        %v1010 = vmax.f32 %v1009, 0.0
        %v1011 = vmin.f32 %v1010, 6.0
        %v1012 = vmul.f32 %v1011, 0.16666667
        %v1013 = vmul.f32 %v1007, %v1012
        %v1014 = vld [vmem:[#allocation7] sm:$0xff]
        %v1015 = vld [vmem:[%s8] sm:$0xff]
        %1017 = vset.pattern.permute.xlu0 0
        %1018 = vperm.xlu0 %1017, %v1015
        %v1019 = vpop.permute.xlu0 %1018
        %v1022 = vsel %vm985, %v1014, 0
        %1024 = vmatpush.msra.mxu0 0.0
        %1025 = vmatpush.msra.mxu0 0.0
        %1026 = vmatpush.msra.mxu0 0.0
        %1027 = vmatpush.msra.mxu0 0.0
        %1028 = vmatpush.msra.mxu0 0.0
        %1029 = vmatpush.msra.mxu0 0.0
        %1030 = vmatpush.msra.mxu0 0.0
        %1031 = vmatpush.msra.mxu0 0.0
        %1032 = vmatpush.msra.mxu0 0.0
        %1033 = vmatpush.msra.mxu0 0.0
        %1034 = vmatpush.msra.mxu0 0.0
        %1035 = vmatpush.msra.mxu0 0.0
        %1036 = vmatpush.msra.mxu0 0.0
        %1037 = vmatpush.msra.mxu0 0.0
        %1038 = vmatpush.msra.mxu0 0.0
        %1039 = vmatpush.msra.mxu0 %v1013
        %1040 = vmatmul.f32.gmra.mxu0 %v1022
        %v1041 = vpop.f32.mrf.mxu0
        %v1042 = vadd.f32 %v1019, %v1041
        %1043 = vdwg.mxu0
        %v1044 = vxor.u32 %v1042, 2147483648
        %v1045 = vmul.f32 %v1044, 1.442695
        %v1046 = vpow.pop %v1045
        %v1047 = vadd.f32 %v1046, 1.0
        %v1048 = vrcp.pop %v1047
        %v1049 = vmul.f32 %v1047, %v1048
        %v1050 = vsub.f32 1.0, %v1049
        %v1051 = vmul.f32 %v1048, %v1050
        %v1052 = vadd.f32 %v1048, %v1051
        %vm1053 = vweird.f32 %v1047
        %vm1054 = vweird.f32 %v1048
        %vm1055 = vmor %vm1053, %vm1054
        %v1056 = vsel %vm1055, %v1048, %v1052
        %v1057 = vand.u32 2147483647, %v1047
        %vm1058 = vcmp.eq.f32.partialorder %v1057, 8.507059e+37
        %v1059 = vand.u32 %v1047, 2147483648
        %v1060 = vor.u32 1.1754944e-38, %v1059
        %v1061 = vsel %vm1058, %v1060, %v1056
        %v1062 = vmul.f32 1.0, %v1061
        %v1063 = vld [vmem:[#allocation9] sm:$0xff]
        %v1064 = vld [vmem:[%s10] sm:$0xff]
        %1066 = vset.pattern.permute.xlu0 0
        %1067 = vperm.xlu0 %1066, %v1064
        %v1068 = vpop.permute.xlu0 %1067
        %1071 = vrot.lane.b32.xlu0 %v1013, 96
        %v1072 = vpop.permute.xlu0 %1071
        %v1075 = vsel %vm985, %v1063, 0
        %1077 = vmatpush.msra.mxu0 0.0
        %1078 = vmatpush.msra.mxu0 0.0
        %1079 = vmatpush.msra.mxu0 0.0
        %1080 = vmatpush.msra.mxu0 0.0
        %1081 = vmatpush.msra.mxu0 0.0
        %1082 = vmatpush.msra.mxu0 0.0
        %1083 = vmatpush.msra.mxu0 0.0
        %1084 = vmatpush.msra.mxu0 0.0
        %1085 = vmatpush.msra.mxu0 0.0
        %1086 = vmatpush.msra.mxu0 0.0
        %1087 = vmatpush.msra.mxu0 0.0
        %1088 = vmatpush.msra.mxu0 0.0
        %1089 = vmatpush.msra.mxu0 0.0
        %1090 = vmatpush.msra.mxu0 0.0
        %1091 = vmatpush.msra.mxu0 0.0
        %1092 = vmatpush.msra.mxu0 %v1072
        %1093 = vmatmul.f32.gmra.mxu0 %v1075
        %v1094 = vpop.f32.mrf.mxu0
        %v1095 = vadd.f32 %v1068, %v1094
        %1096 = vdwg.mxu0
        %v1097 = vxor.u32 %v1095, 2147483648
        %v1098 = vmul.f32 %v1097, 1.442695
        %v1099 = vpow.pop %v1098
        %v1100 = vadd.f32 %v1099, 1.0
        %v1101 = vrcp.pop %v1100
        %v1102 = vmul.f32 %v1100, %v1101
        %v1103 = vsub.f32 1.0, %v1102
        %v1104 = vmul.f32 %v1101, %v1103
        %v1105 = vadd.f32 %v1101, %v1104
        %vm1106 = vweird.f32 %v1100
        %vm1107 = vweird.f32 %v1101
        %vm1108 = vmor %vm1106, %vm1107
        %v1109 = vsel %vm1108, %v1101, %v1105
        %v1110 = vand.u32 2147483647, %v1100
        %vm1111 = vcmp.eq.f32.partialorder %v1110, 8.507059e+37
        %v1112 = vand.u32 %v1100, 2147483648
        %v1113 = vor.u32 1.1754944e-38, %v1112
        %v1114 = vsel %vm1111, %v1113, %v1109
        %v1115 = vmul.f32 1.0, %v1114
        %v1116 = vld [vmem:[#allocation2] sm:$0xff]
        %v1117 = vld [vmem:[#allocation2 + $0x8] sm:$0xff]
        %v1118 = vld [vmem:[#allocation2 + $0x10] sm:$0xff]
        %v1119 = vld [vmem:[#allocation2 + $0x18] sm:$0xff]
        %v1120 = vld [vmem:[#allocation2 + $0x20] sm:$0xff]
        %v1121 = vld [vmem:[#allocation2 + $0x28] sm:$0xff]
        %v1122 = vld [vmem:[#allocation2 + $0x30] sm:$0xff]
        %v1123 = vld [vmem:[#allocation2 + $0x38] sm:$0xff]
        %v1124 = vld [vmem:[#allocation2 + $0x40] sm:$0xff]
        %v1125 = vld [vmem:[#allocation2 + $0x48] sm:$0xff]
        %v1126 = vld [vmem:[#allocation2 + $0x50] sm:$0xff]
        %v1127 = vld [vmem:[#allocation2 + $0x58] sm:$0xff]
        %v1128 = vld [vmem:[#allocation2 + $0x60] sm:$0xff]
        %v1129 = vld [vmem:[#allocation2 + $0x68] sm:$0xff]
        %v1130 = vld [vmem:[#allocation2 + $0x70] sm:$0xff]
        %v1131 = vld [vmem:[#allocation2 + $0x78] sm:$0xff]
        %v1132 = vld [vmem:[#allocation2 + $0x80] sm:$0xff]
        %v1133 = vld [vmem:[#allocation2 + $0x88] sm:$0xff]
        %v1134 = vld [vmem:[#allocation2 + $0x90] sm:$0xff]
        %v1135 = vld [vmem:[#allocation2 + $0x98] sm:$0xff]
        %v1136 = vld [vmem:[#allocation2 + $0xa0] sm:$0xff]
        %v1137 = vld [vmem:[#allocation2 + $0xa8] sm:$0xff]
        %v1138 = vld [vmem:[#allocation2 + $0xb0] sm:$0xff]
        %v1139 = vld [vmem:[#allocation2 + $0xb8] sm:$0xff]
        %v1140 = vld [vmem:[#allocation2 + $0xc0] sm:$0xff]
        %v1141 = vld [vmem:[#allocation2 + $0xc8] sm:$0xff]
        %v1142 = vld [vmem:[#allocation2 + $0xd0] sm:$0xff]
        %v1143 = vld [vmem:[#allocation2 + $0xd8] sm:$0xff]
        %v1144 = vld [vmem:[#allocation2 + $0xe0] sm:$0xff]
        %v1145 = vld [vmem:[#allocation2 + $0xe8] sm:$0xff]
        %v1146 = vld [vmem:[#allocation2 + $0xf0] sm:$0xff]
        %v1147 = vld [vmem:[#allocation2 + $0xf8] sm:$0xff]
        %vm1148 = vcmask 261120
        %v1150 = vsel %vm1148, %v1062, 0
        %1152 = vmatpush.msra.mxu0 0.0
        %1153 = vmatpush.msra.mxu0 0.0
        %1154 = vmatpush.msra.mxu0 0.0
        %1155 = vmatpush.msra.mxu0 0.0
        %1156 = vmatpush.msra.mxu0 0.0
        %1157 = vmatpush.msra.mxu0 0.0
        %1158 = vmatpush.msra.mxu0 0.0
        %1159 = vmatpush.msra.mxu0 0.0
        %1160 = vmatpush.msra.mxu0 0.0
        %1161 = vmatpush.msra.mxu0 0.0
        %1162 = vmatpush.msra.mxu0 0.0
        %1163 = vmatpush.msra.mxu0 0.0
        %1164 = vmatpush.msra.mxu0 %v1140
        %1165 = vmatpush.msra.mxu0 %v1132
        %1166 = vmatpush.msra.mxu0 %v1124
        %1167 = vmatpush.msra.mxu0 %v1116
        %1168 = vmatmul.f32.gmra.mxu0 %v1150
        %v1169 = vpop.f32.mrf.mxu0
        %v1170 = vadd.f32 0.0, %v1169
        %1171 = vdwg.mxu0
        %1172 = vmatpush.msra.mxu0 0.0
        %1173 = vmatpush.msra.mxu0 0.0
        %1174 = vmatpush.msra.mxu0 0.0
        %1175 = vmatpush.msra.mxu0 0.0
        %1176 = vmatpush.msra.mxu0 0.0
        %1177 = vmatpush.msra.mxu0 0.0
        %1178 = vmatpush.msra.mxu0 0.0
        %1179 = vmatpush.msra.mxu0 0.0
        %1180 = vmatpush.msra.mxu0 0.0
        %1181 = vmatpush.msra.mxu0 0.0
        %1182 = vmatpush.msra.mxu0 0.0
        %1183 = vmatpush.msra.mxu0 0.0
        %1184 = vmatpush.msra.mxu0 %v1141
        %1185 = vmatpush.msra.mxu0 %v1133
        %1186 = vmatpush.msra.mxu0 %v1125
        %1187 = vmatpush.msra.mxu0 %v1117
        %1188 = vmatmul.f32.gmra.mxu0 %v1150
        %v1189 = vpop.f32.mrf.mxu0
        %v1190 = vadd.f32 0.0, %v1189
        %1191 = vdwg.mxu0
        %1192 = vmatpush.msra.mxu0 0.0
        %1193 = vmatpush.msra.mxu0 0.0
        %1194 = vmatpush.msra.mxu0 0.0
        %1195 = vmatpush.msra.mxu0 0.0
        %1196 = vmatpush.msra.mxu0 0.0
        %1197 = vmatpush.msra.mxu0 0.0
        %1198 = vmatpush.msra.mxu0 0.0
        %1199 = vmatpush.msra.mxu0 0.0
        %1200 = vmatpush.msra.mxu0 0.0
        %1201 = vmatpush.msra.mxu0 0.0
        %1202 = vmatpush.msra.mxu0 0.0
        %1203 = vmatpush.msra.mxu0 0.0
        %1204 = vmatpush.msra.mxu0 %v1142
        %1205 = vmatpush.msra.mxu0 %v1134
        %1206 = vmatpush.msra.mxu0 %v1126
        %1207 = vmatpush.msra.mxu0 %v1118
        %1208 = vmatmul.f32.gmra.mxu0 %v1150
        %v1209 = vpop.f32.mrf.mxu0
        %v1210 = vadd.f32 0.0, %v1209
        %1211 = vdwg.mxu0
        %1212 = vmatpush.msra.mxu0 0.0
        %1213 = vmatpush.msra.mxu0 0.0
        %1214 = vmatpush.msra.mxu0 0.0
        %1215 = vmatpush.msra.mxu0 0.0
        %1216 = vmatpush.msra.mxu0 0.0
        %1217 = vmatpush.msra.mxu0 0.0
        %1218 = vmatpush.msra.mxu0 0.0
        %1219 = vmatpush.msra.mxu0 0.0
        %1220 = vmatpush.msra.mxu0 0.0
        %1221 = vmatpush.msra.mxu0 0.0
        %1222 = vmatpush.msra.mxu0 0.0
        %1223 = vmatpush.msra.mxu0 0.0
        %1224 = vmatpush.msra.mxu0 %v1143
        %1225 = vmatpush.msra.mxu0 %v1135
        %1226 = vmatpush.msra.mxu0 %v1127
        %1227 = vmatpush.msra.mxu0 %v1119
        %1228 = vmatmul.f32.gmra.mxu0 %v1150
        %v1229 = vpop.f32.mrf.mxu0
        %v1230 = vadd.f32 0.0, %v1229
        %1231 = vdwg.mxu0
        %1232 = vmatpush.msra.mxu0 0.0
        %1233 = vmatpush.msra.mxu0 0.0
        %1234 = vmatpush.msra.mxu0 0.0
        %1235 = vmatpush.msra.mxu0 0.0
        %1236 = vmatpush.msra.mxu0 0.0
        %1237 = vmatpush.msra.mxu0 0.0
        %1238 = vmatpush.msra.mxu0 0.0
        %1239 = vmatpush.msra.mxu0 0.0
        %1240 = vmatpush.msra.mxu0 0.0
        %1241 = vmatpush.msra.mxu0 0.0
        %1242 = vmatpush.msra.mxu0 0.0
        %1243 = vmatpush.msra.mxu0 0.0
        %1244 = vmatpush.msra.mxu0 %v1144
        %1245 = vmatpush.msra.mxu0 %v1136
        %1246 = vmatpush.msra.mxu0 %v1128
        %1247 = vmatpush.msra.mxu0 %v1120
        %1248 = vmatmul.f32.gmra.mxu0 %v1150
        %v1249 = vpop.f32.mrf.mxu0
        %v1250 = vadd.f32 0.0, %v1249
        %1251 = vdwg.mxu0
        %1252 = vmatpush.msra.mxu0 0.0
        %1253 = vmatpush.msra.mxu0 0.0
        %1254 = vmatpush.msra.mxu0 0.0
        %1255 = vmatpush.msra.mxu0 0.0
        %1256 = vmatpush.msra.mxu0 0.0
        %1257 = vmatpush.msra.mxu0 0.0
        %1258 = vmatpush.msra.mxu0 0.0
        %1259 = vmatpush.msra.mxu0 0.0
        %1260 = vmatpush.msra.mxu0 0.0
        %1261 = vmatpush.msra.mxu0 0.0
        %1262 = vmatpush.msra.mxu0 0.0
        %1263 = vmatpush.msra.mxu0 0.0
        %1264 = vmatpush.msra.mxu0 %v1145
        %1265 = vmatpush.msra.mxu0 %v1137
        %1266 = vmatpush.msra.mxu0 %v1129
        %1267 = vmatpush.msra.mxu0 %v1121
        %1268 = vmatmul.f32.gmra.mxu0 %v1150
        %v1269 = vpop.f32.mrf.mxu0
        %v1270 = vadd.f32 0.0, %v1269
        %1271 = vdwg.mxu0
        %1272 = vmatpush.msra.mxu0 0.0
        %1273 = vmatpush.msra.mxu0 0.0
        %1274 = vmatpush.msra.mxu0 0.0
        %1275 = vmatpush.msra.mxu0 0.0
        %1276 = vmatpush.msra.mxu0 0.0
        %1277 = vmatpush.msra.mxu0 0.0
        %1278 = vmatpush.msra.mxu0 0.0
        %1279 = vmatpush.msra.mxu0 0.0
        %1280 = vmatpush.msra.mxu0 0.0
        %1281 = vmatpush.msra.mxu0 0.0
        %1282 = vmatpush.msra.mxu0 0.0
        %1283 = vmatpush.msra.mxu0 0.0
        %1284 = vmatpush.msra.mxu0 %v1146
        %1285 = vmatpush.msra.mxu0 %v1138
        %1286 = vmatpush.msra.mxu0 %v1130
        %1287 = vmatpush.msra.mxu0 %v1122
        %1288 = vmatmul.f32.gmra.mxu0 %v1150
        %v1289 = vpop.f32.mrf.mxu0
        %v1290 = vadd.f32 0.0, %v1289
        %1291 = vdwg.mxu0
        %1292 = vmatpush.msra.mxu0 0.0
        %1293 = vmatpush.msra.mxu0 0.0
        %1294 = vmatpush.msra.mxu0 0.0
        %1295 = vmatpush.msra.mxu0 0.0
        %1296 = vmatpush.msra.mxu0 0.0
        %1297 = vmatpush.msra.mxu0 0.0
        %1298 = vmatpush.msra.mxu0 0.0
        %1299 = vmatpush.msra.mxu0 0.0
        %1300 = vmatpush.msra.mxu0 0.0
        %1301 = vmatpush.msra.mxu0 0.0
        %1302 = vmatpush.msra.mxu0 0.0
        %1303 = vmatpush.msra.mxu0 0.0
        %1304 = vmatpush.msra.mxu0 %v1147
        %1305 = vmatpush.msra.mxu0 %v1139
        %1306 = vmatpush.msra.mxu0 %v1131
        %1307 = vmatpush.msra.mxu0 %v1123
        %1308 = vmatmul.f32.gmra.mxu0 %v1150
        %v1309 = vpop.f32.mrf.mxu0
        %v1310 = vadd.f32 0.0, %v1309
        %1311 = vdwg.mxu0
        %v1312 = vld [vmem:[#allocation4] sm:$0xff]
        %v1313 = vld [vmem:[#allocation4 + $0x8] sm:$0xff]
        %v1314 = vld [vmem:[#allocation4 + $0x10] sm:$0xff]
        %v1315 = vld [vmem:[#allocation4 + $0x18] sm:$0xff]
        %v1316 = vld [vmem:[#allocation4 + $0x20] sm:$0xff]
        %v1317 = vld [vmem:[#allocation4 + $0x28] sm:$0xff]
        %v1318 = vld [vmem:[#allocation4 + $0x30] sm:$0xff]
        %v1319 = vld [vmem:[#allocation4 + $0x38] sm:$0xff]
        %v1320 = vld [vmem:[#allocation4 + $0x40] sm:$0xff]
        %v1321 = vld [vmem:[#allocation4 + $0x48] sm:$0xff]
        %v1322 = vld [vmem:[#allocation4 + $0x50] sm:$0xff]
        %v1323 = vld [vmem:[#allocation4 + $0x58] sm:$0xff]
        %v1324 = vld [vmem:[#allocation4 + $0x60] sm:$0xff]
        %v1325 = vld [vmem:[#allocation4 + $0x68] sm:$0xff]
        %v1326 = vld [vmem:[#allocation4 + $0x70] sm:$0xff]
        %v1327 = vld [vmem:[#allocation4 + $0x78] sm:$0xff]
        %v1328 = vld [vmem:[#allocation4 + $0x80] sm:$0xff]
        %v1329 = vld [vmem:[#allocation4 + $0x88] sm:$0xff]
        %v1330 = vld [vmem:[#allocation4 + $0x90] sm:$0xff]
        %v1331 = vld [vmem:[#allocation4 + $0x98] sm:$0xff]
        %v1332 = vld [vmem:[#allocation4 + $0xa0] sm:$0xff]
        %v1333 = vld [vmem:[#allocation4 + $0xa8] sm:$0xff]
        %v1334 = vld [vmem:[#allocation4 + $0xb0] sm:$0xff]
        %v1335 = vld [vmem:[#allocation4 + $0xb8] sm:$0xff]
        %v1336 = vld [vmem:[#allocation4 + $0xc0] sm:$0xff]
        %v1337 = vld [vmem:[#allocation4 + $0xc8] sm:$0xff]
        %v1338 = vld [vmem:[#allocation4 + $0xd0] sm:$0xff]
        %v1339 = vld [vmem:[#allocation4 + $0xd8] sm:$0xff]
        %v1340 = vld [vmem:[#allocation4 + $0xe0] sm:$0xff]
        %v1341 = vld [vmem:[#allocation4 + $0xe8] sm:$0xff]
        %v1342 = vld [vmem:[#allocation4 + $0xf0] sm:$0xff]
        %v1343 = vld [vmem:[#allocation4 + $0xf8] sm:$0xff]
        %v1345 = vsel %vm1148, %v1115, 0
        %1347 = vmatpush.msra.mxu0 0.0
        %1348 = vmatpush.msra.mxu0 0.0
        %1349 = vmatpush.msra.mxu0 0.0
        %1350 = vmatpush.msra.mxu0 0.0
        %1351 = vmatpush.msra.mxu0 0.0
        %1352 = vmatpush.msra.mxu0 0.0
        %1353 = vmatpush.msra.mxu0 0.0
        %1354 = vmatpush.msra.mxu0 0.0
        %1355 = vmatpush.msra.mxu0 0.0
        %1356 = vmatpush.msra.mxu0 0.0
        %1357 = vmatpush.msra.mxu0 0.0
        %1358 = vmatpush.msra.mxu0 0.0
        %1359 = vmatpush.msra.mxu0 %v1336
        %1360 = vmatpush.msra.mxu0 %v1328
        %1361 = vmatpush.msra.mxu0 %v1320
        %1362 = vmatpush.msra.mxu0 %v1312
        %1363 = vmatmul.f32.gmra.mxu0 %v1345
        %v1364 = vpop.f32.mrf.mxu0
        %v1365 = vadd.f32 0.0, %v1364
        %1366 = vdwg.mxu0
        %1367 = vmatpush.msra.mxu0 0.0
        %1368 = vmatpush.msra.mxu0 0.0
        %1369 = vmatpush.msra.mxu0 0.0
        %1370 = vmatpush.msra.mxu0 0.0
        %1371 = vmatpush.msra.mxu0 0.0
        %1372 = vmatpush.msra.mxu0 0.0
        %1373 = vmatpush.msra.mxu0 0.0
        %1374 = vmatpush.msra.mxu0 0.0
        %1375 = vmatpush.msra.mxu0 0.0
        %1376 = vmatpush.msra.mxu0 0.0
        %1377 = vmatpush.msra.mxu0 0.0
        %1378 = vmatpush.msra.mxu0 0.0
        %1379 = vmatpush.msra.mxu0 %v1337
        %1380 = vmatpush.msra.mxu0 %v1329
        %1381 = vmatpush.msra.mxu0 %v1321
        %1382 = vmatpush.msra.mxu0 %v1313
        %1383 = vmatmul.f32.gmra.mxu0 %v1345
        %v1384 = vpop.f32.mrf.mxu0
        %v1385 = vadd.f32 0.0, %v1384
        %1386 = vdwg.mxu0
        %1387 = vmatpush.msra.mxu0 0.0
        %1388 = vmatpush.msra.mxu0 0.0
        %1389 = vmatpush.msra.mxu0 0.0
        %1390 = vmatpush.msra.mxu0 0.0
        %1391 = vmatpush.msra.mxu0 0.0
        %1392 = vmatpush.msra.mxu0 0.0
        %1393 = vmatpush.msra.mxu0 0.0
        %1394 = vmatpush.msra.mxu0 0.0
        %1395 = vmatpush.msra.mxu0 0.0
        %1396 = vmatpush.msra.mxu0 0.0
        %1397 = vmatpush.msra.mxu0 0.0
        %1398 = vmatpush.msra.mxu0 0.0
        %1399 = vmatpush.msra.mxu0 %v1338
        %1400 = vmatpush.msra.mxu0 %v1330
        %1401 = vmatpush.msra.mxu0 %v1322
        %1402 = vmatpush.msra.mxu0 %v1314
        %1403 = vmatmul.f32.gmra.mxu0 %v1345
        %v1404 = vpop.f32.mrf.mxu0
        %v1405 = vadd.f32 0.0, %v1404
        %1406 = vdwg.mxu0
        %1407 = vmatpush.msra.mxu0 0.0
        %1408 = vmatpush.msra.mxu0 0.0
        %1409 = vmatpush.msra.mxu0 0.0
        %1410 = vmatpush.msra.mxu0 0.0
        %1411 = vmatpush.msra.mxu0 0.0
        %1412 = vmatpush.msra.mxu0 0.0
        %1413 = vmatpush.msra.mxu0 0.0
        %1414 = vmatpush.msra.mxu0 0.0
        %1415 = vmatpush.msra.mxu0 0.0
        %1416 = vmatpush.msra.mxu0 0.0
        %1417 = vmatpush.msra.mxu0 0.0
        %1418 = vmatpush.msra.mxu0 0.0
        %1419 = vmatpush.msra.mxu0 %v1339
        %1420 = vmatpush.msra.mxu0 %v1331
        %1421 = vmatpush.msra.mxu0 %v1323
        %1422 = vmatpush.msra.mxu0 %v1315
        %1423 = vmatmul.f32.gmra.mxu0 %v1345
        %v1424 = vpop.f32.mrf.mxu0
        %v1425 = vadd.f32 0.0, %v1424
        %1426 = vdwg.mxu0
        %1427 = vmatpush.msra.mxu0 0.0
        %1428 = vmatpush.msra.mxu0 0.0
        %1429 = vmatpush.msra.mxu0 0.0
        %1430 = vmatpush.msra.mxu0 0.0
        %1431 = vmatpush.msra.mxu0 0.0
        %1432 = vmatpush.msra.mxu0 0.0
        %1433 = vmatpush.msra.mxu0 0.0
        %1434 = vmatpush.msra.mxu0 0.0
        %1435 = vmatpush.msra.mxu0 0.0
        %1436 = vmatpush.msra.mxu0 0.0
        %1437 = vmatpush.msra.mxu0 0.0
        %1438 = vmatpush.msra.mxu0 0.0
        %1439 = vmatpush.msra.mxu0 %v1340
        %1440 = vmatpush.msra.mxu0 %v1332
        %1441 = vmatpush.msra.mxu0 %v1324
        %1442 = vmatpush.msra.mxu0 %v1316
        %1443 = vmatmul.f32.gmra.mxu0 %v1345
        %v1444 = vpop.f32.mrf.mxu0
        %v1445 = vadd.f32 0.0, %v1444
        %1446 = vdwg.mxu0
        %1447 = vmatpush.msra.mxu0 0.0
        %1448 = vmatpush.msra.mxu0 0.0
        %1449 = vmatpush.msra.mxu0 0.0
        %1450 = vmatpush.msra.mxu0 0.0
        %1451 = vmatpush.msra.mxu0 0.0
        %1452 = vmatpush.msra.mxu0 0.0
        %1453 = vmatpush.msra.mxu0 0.0
        %1454 = vmatpush.msra.mxu0 0.0
        %1455 = vmatpush.msra.mxu0 0.0
        %1456 = vmatpush.msra.mxu0 0.0
        %1457 = vmatpush.msra.mxu0 0.0
        %1458 = vmatpush.msra.mxu0 0.0
        %1459 = vmatpush.msra.mxu0 %v1341
        %1460 = vmatpush.msra.mxu0 %v1333
        %1461 = vmatpush.msra.mxu0 %v1325
        %1462 = vmatpush.msra.mxu0 %v1317
        %1463 = vmatmul.f32.gmra.mxu0 %v1345
        %v1464 = vpop.f32.mrf.mxu0
        %v1465 = vadd.f32 0.0, %v1464
        %1466 = vdwg.mxu0
        %1467 = vmatpush.msra.mxu0 0.0
        %1468 = vmatpush.msra.mxu0 0.0
        %1469 = vmatpush.msra.mxu0 0.0
        %1470 = vmatpush.msra.mxu0 0.0
        %1471 = vmatpush.msra.mxu0 0.0
        %1472 = vmatpush.msra.mxu0 0.0
        %1473 = vmatpush.msra.mxu0 0.0
        %1474 = vmatpush.msra.mxu0 0.0
        %1475 = vmatpush.msra.mxu0 0.0
        %1476 = vmatpush.msra.mxu0 0.0
        %1477 = vmatpush.msra.mxu0 0.0
        %1478 = vmatpush.msra.mxu0 0.0
        %1479 = vmatpush.msra.mxu0 %v1342
        %1480 = vmatpush.msra.mxu0 %v1334
        %1481 = vmatpush.msra.mxu0 %v1326
        %1482 = vmatpush.msra.mxu0 %v1318
        %1483 = vmatmul.f32.gmra.mxu0 %v1345
        %v1484 = vpop.f32.mrf.mxu0
        %v1485 = vadd.f32 0.0, %v1484
        %1486 = vdwg.mxu0
        %1487 = vmatpush.msra.mxu0 0.0
        %1488 = vmatpush.msra.mxu0 0.0
        %1489 = vmatpush.msra.mxu0 0.0
        %1490 = vmatpush.msra.mxu0 0.0
        %1491 = vmatpush.msra.mxu0 0.0
        %1492 = vmatpush.msra.mxu0 0.0
        %1493 = vmatpush.msra.mxu0 0.0
        %1494 = vmatpush.msra.mxu0 0.0
        %1495 = vmatpush.msra.mxu0 0.0
        %1496 = vmatpush.msra.mxu0 0.0
        %1497 = vmatpush.msra.mxu0 0.0
        %1498 = vmatpush.msra.mxu0 0.0
        %1499 = vmatpush.msra.mxu0 %v1343
        %1500 = vmatpush.msra.mxu0 %v1335
        %1501 = vmatpush.msra.mxu0 %v1327
        %1502 = vmatpush.msra.mxu0 %v1319
        %1503 = vmatmul.f32.gmra.mxu0 %v1345
        %v1504 = vpop.f32.mrf.mxu0
        %v1505 = vadd.f32 0.0, %v1504
        %1506 = vdwg.mxu0
        %v1507 = vmul.f32 %v1170, %v1365
        %v1508 = vmul.f32 %v1190, %v1385
        %v1509 = vmul.f32 %v1210, %v1405
        %v1510 = vmul.f32 %v1230, %v1425
        %v1511 = vmul.f32 %v1250, %v1445
        %v1512 = vmul.f32 %v1270, %v1465
        %v1513 = vmul.f32 %v1290, %v1485
        %v1514 = vmul.f32 %v1310, %v1505
        %v1515 = vmul.f32 %v596, %v1507
        %v1516 = vmul.f32 %v609, %v1508
        %v1517 = vmul.f32 %v622, %v1509
        %v1518 = vmul.f32 %v635, %v1510
        %v1519 = vmul.f32 %v648, %v1511
        %v1520 = vmul.f32 %v661, %v1512
        %v1521 = vmul.f32 %v674, %v1513
        %v1522 = vmul.f32 %v687, %v1514
        %1523 = vst [vmem:[%s463] sm:$0xff] %v1515
        %1524 = vst [vmem:[%s463 + $0x8] sm:$0xff] %v1516
        %1525 = vst [vmem:[%s463 + $0x10] sm:$0xff] %v1517
        %1526 = vst [vmem:[%s463 + $0x18] sm:$0xff] %v1518
        %1527 = vst [vmem:[%s463 + $0x20] sm:$0xff] %v1519
        %1528 = vst [vmem:[%s463 + $0x28] sm:$0xff] %v1520
        %1529 = vst [vmem:[%s463 + $0x30] sm:$0xff] %v1521
        %1530 = vst [vmem:[%s463 + $0x38] sm:$0xff] %v1522
        %p1531 = scmp.lt.s32.totalorder %s25, 1
        %s1532 = scalar_select %p1531, %s25, 1
        %s1533 = smul.addr %s1532, 8
        %s1534 = smul.addr %s1533, 8
        %s1535 = scalar_lea.vmem %s11, %s1534
        // Predicated region
        $region85: #{competitive_block_forward.3} parent=63 // pred_check
          %p1536 = pneg %p279
        $region86: #{competitive_block_forward.3} parent=63 // pred_check_branch
          %1538 = sbr.rel (%p1536) target = $region88
        $region87: #{competitive_block_forward.3} parent=63 // pred_region
          _
        $region88: #{competitive_block_forward.3} parent=63 // pred_fallthru
          _
      $region64: #{competitive_block_forward.3} parent=5 // pred_fallthru
        _
      %p1539 = scmp.le.s32.totalorder 2, %s20
      // Predicated region
      $region89: #{competitive_block_forward.3} parent=5 // pred_check
        %p1540 = pneg %p1539
      $region90: #{competitive_block_forward.3} parent=5 // pred_check_branch
        %1542 = sbr.rel (%p1540) target = $region92
      $region91: #{competitive_block_forward.3} parent=5 // pred_region
        %s1543 = ssub.s32 %s20, 2
        // Predicated region
        $region93: #{competitive_block_forward.3} parent=91 // pred_check
          %p1544 = pneg %p285
        $region94: #{competitive_block_forward.3} parent=91 // pred_check_branch
          %1546 = sbr.rel (%p1544) target = $region96
        $region95: #{competitive_block_forward.3} parent=91 // pred_region
          %p1547 = scmp.lt.s32.totalorder %s26, 1
          %s1548 = scalar_select %p1547, %s26, 1
          %s1549 = smul.addr %s1548, 8
          %s1550 = smul.addr %s1549, 8
          %s1551 = scalar_lea.vmem %s11, %s1550
        $region96: #{competitive_block_forward.3} parent=91 // pred_fallthru
          _
      $region92: #{competitive_block_forward.3} parent=5 // pred_fallthru
        _
    $region6: #{competitive_block_forward.3} parent=1 // loop_footer
      %s24 = sadd.s32 1, %s20
    $region7: #{competitive_block_forward.3} parent=1 // loop_footer_branch
      %19 = sbr.rel target = $region3
    $region8: #{competitive_block_forward.3} parent=1 // loop_exit
      _
    %1552 = vsyncpa [#allocation3], 1
    %s1553 = scalar_lea.sflag [#allocation3], 1
    %1554 = vsyncpa %s1553, 1
    %1555 = vsyncpa [#allocation5], 1
    %1556 = vsyncpa [#allocation8], 1

// kernel: competitive_block_forward.4
$region0: #{competitive_block_forward.4}
  #allocation0 [shape = 'u32[]', space=smem, size = 0x4, offset = 0x4, fixed_abs, tag = 'smem constant byte address 0x4 - core index']
  #allocation1 [shape = 'u32[72,128]{1,0:T(1,128)}', space=vmem, size = 0x9000, scoped, tag = 'internal scratch']
  %s0 = inlined_call_operand.vmem [shape: bf16[2,200,1024], index: 0, kind: input, shape index: {}]
  %s1 = inlined_call_operand.vmem [shape: bf16[8,200], index: 1, kind: input, shape index: {}]
  %s2 = inlined_call_operand.vmem [shape: f32[1024,64], index: 2, kind: input, shape index: {}]
  %s3 = inlined_call_operand.vmem [shape: f32[32,1024], index: 3, kind: input, shape index: {}]
  %s4 = inlined_call_operand.vmem [shape: f32[32,1024], index: 4, kind: input, shape index: {}]
  %s5 = inlined_call_operand.vmem [shape: f32[8,8], index: 5, kind: input, shape index: {}]
  %s6 = inlined_call_operand.vmem [shape: f32[8,1], index: 6, kind: input, shape index: {}]
  %s7 = inlined_call_operand.vmem [shape: f32[8,8], index: 7, kind: input, shape index: {}]
  %s8 = inlined_call_operand.vmem [shape: f32[8,1], index: 8, kind: input, shape index: {}]
  %s9 = inlined_call_operand.vmem [shape: f32[8,8], index: 9, kind: input, shape index: {}]
  %s10 = inlined_call_operand.vmem [shape: f32[8,1], index: 10, kind: input, shape index: {}]
  %s11 = inlined_call_operand.vmem [shape: f32[1,2], index: 11, kind: input, shape index: {}]
  %s12 = inlined_call_operand.vmem [shape: f32[2,8,1024], index: 12, kind: output, shape index: {}]
  %s13 = sld [smem:[#allocation0]]
  $region85: #{competitive_block_forward.4} parent=0
    _
  %s15 = ssub.s32 1, %s13
  %s16 = scalar_select 0, %s15, %s13
  $region1: #{competitive_block_forward.4} parent=0
    #allocation2 [shape = 'u8[512]{0}', space=smem, size = 0x200, scoped, tag = 'input window, operand 11, single buffered']
    #allocation3 [shape = 's32[2]{0}', space=sflag, size = 0x8, scoped, tag = 'scoped memory for competitive_block_forward.4']
    %17 = vsyncpa [#allocation3], 0
    loop: start=0, step=1, limit=4
    $region2: #{competitive_block_forward.4} parent=1 // loop_pre_header
      _
    $region3: #{competitive_block_forward.4} parent=1 // loop_header
      %s19 = sphi 0, %s23
      %p20 = scmp.ge.s32.totalorder %s19, 4
      %s29 = sphi 0, %s31
      %s32 = sphi 0, %s29
      %s33 = sphi 0, %s32
      %s49 = sphi 0, %s33
      %s53 = sphi 0, %s53
      %s55 = sphi 0, %s53
      %s56 = sphi 0, %s55
      %s70 = sphi 0, %s56
      %s74 = sphi 0, %s74
      %s76 = sphi 0, %s74
      %s77 = sphi 0, %s76
      %s91 = sphi 0, %s77
      %s95 = sphi 0, %s95
      %s97 = sphi 0, %s95
      %s98 = sphi 0, %s97
      %s112 = sphi 0, %s98
      %s116 = sphi 0, %s116
      %s118 = sphi 0, %s116
      %s119 = sphi 0, %s118
      %s133 = sphi 0, %s119
      %s137 = sphi 0, %s137
      %s139 = sphi 0, %s137
      %s140 = sphi 0, %s139
      %s154 = sphi 0, %s140
      %s158 = sphi 0, %s158
      %s160 = sphi 0, %s158
      %s161 = sphi 0, %s160
      %s175 = sphi 0, %s161
      %s179 = sphi 0, %s179
      %s181 = sphi 0, %s179
      %s182 = sphi 0, %s181
      %s196 = sphi 0, %s182
      %s200 = sphi 0, %s200
      %s202 = sphi 0, %s200
      %s203 = sphi 0, %s202
      %s217 = sphi 0, %s203
      %s221 = sphi 0, %s221
      %s223 = sphi 0, %s221
      %s224 = sphi 0, %s223
      %s238 = sphi 0, %s224
      %s242 = sphi 0, %s242
      %s244 = sphi 0, %s242
      %s245 = sphi 0, %s244
      %s259 = sphi 0, %s245
      %s263 = sphi 0, %s263
      %s265 = sphi 0, %s263
      %s266 = sphi 0, %s265
      %s280 = sphi 0, %s266
      %s286 = sphi 0, %s288
      %s289 = sphi 0, %s286
      %s290 = sphi 0, %s289
      %s306 = sphi 0, %s290
    $region4: #{competitive_block_forward.4} parent=1 // loop_header_branch
      %22 = sbr.rel (%p20) target = $region8
    $region5: #{competitive_block_forward.4} parent=1 // loop_body
      %s24 = ssub.s32 %s19, 1
      %s25 = ssub.s32 %s19, 2
      %s26 = sadd.s32 %s19, 1
      %s27 = ssub.s32 %s19, %s26
      %p28 = scmp.eq.s32.totalorder %s27, 0
      %s30 = sadd.s32 %s29, 1
      %s31 = scalar_select %p28, %s29, %s30
      %p34 = pneg %p28
      %p35 = scmp.eq.s32.totalorder %s19, 1
      %p36 = por %p34, %p35
      %p37 = scmp.ne.s32.totalorder %s29, %s32
      %p38 = scmp.eq.s32.totalorder %s19, 0
      %p39 = por %p37, %p38
      %p40 = scmp.ne.s32.totalorder %s29, %s32
      %p41 = scmp.eq.s32.totalorder %s24, 1
      %p42 = por %p40, %p41
      %p43 = scmp.ne.s32.totalorder %s32, %s33
      %p44 = scmp.eq.s32.totalorder %s24, 0
      %p45 = por %p43, %p44
      %p46 = scmp.ne.s32.totalorder %s32, %s33
      %p47 = scmp.eq.s32.totalorder %s25, 1
      %p48 = por %p46, %p47
      %p50 = scmp.ne.s32.totalorder %s33, %s49
      %p51 = scmp.eq.s32.totalorder %s25, 0
      %p52 = por %p50, %p51
      %s54 = sadd.s32 %s53, 1
      %p57 = scmp.eq.s32.totalorder %s19, 1
      %p58 = scmp.ne.s32.totalorder %s53, %s55
      %p59 = scmp.eq.s32.totalorder %s19, 0
      %p60 = por %p58, %p59
      %p61 = scmp.ne.s32.totalorder %s53, %s55
      %p62 = scmp.eq.s32.totalorder %s24, 1
      %p63 = por %p61, %p62
      %p64 = scmp.ne.s32.totalorder %s55, %s56
      %p65 = scmp.eq.s32.totalorder %s24, 0
      %p66 = por %p64, %p65
      %p67 = scmp.ne.s32.totalorder %s55, %s56
      %p68 = scmp.eq.s32.totalorder %s25, 1
      %p69 = por %p67, %p68
      %p71 = scmp.ne.s32.totalorder %s56, %s70
      %p72 = scmp.eq.s32.totalorder %s25, 0
      %p73 = por %p71, %p72
      %s75 = sadd.s32 %s74, 1
      %p78 = scmp.eq.s32.totalorder %s19, 1
      %p79 = scmp.ne.s32.totalorder %s74, %s76
      %p80 = scmp.eq.s32.totalorder %s19, 0
      %p81 = por %p79, %p80
      %p82 = scmp.ne.s32.totalorder %s74, %s76
      %p83 = scmp.eq.s32.totalorder %s24, 1
      %p84 = por %p82, %p83
      %p85 = scmp.ne.s32.totalorder %s76, %s77
      %p86 = scmp.eq.s32.totalorder %s24, 0
      %p87 = por %p85, %p86
      %p88 = scmp.ne.s32.totalorder %s76, %s77
      %p89 = scmp.eq.s32.totalorder %s25, 1
      %p90 = por %p88, %p89
      %p92 = scmp.ne.s32.totalorder %s77, %s91
      %p93 = scmp.eq.s32.totalorder %s25, 0
      %p94 = por %p92, %p93
      %s96 = sadd.s32 %s95, 1
      %p99 = scmp.eq.s32.totalorder %s19, 1
      %p100 = scmp.ne.s32.totalorder %s95, %s97
      %p101 = scmp.eq.s32.totalorder %s19, 0
      %p102 = por %p100, %p101
      %p103 = scmp.ne.s32.totalorder %s95, %s97
      %p104 = scmp.eq.s32.totalorder %s24, 1
      %p105 = por %p103, %p104
      %p106 = scmp.ne.s32.totalorder %s97, %s98
      %p107 = scmp.eq.s32.totalorder %s24, 0
      %p108 = por %p106, %p107
      %p109 = scmp.ne.s32.totalorder %s97, %s98
      %p110 = scmp.eq.s32.totalorder %s25, 1
      %p111 = por %p109, %p110
      %p113 = scmp.ne.s32.totalorder %s98, %s112
      %p114 = scmp.eq.s32.totalorder %s25, 0
      %p115 = por %p113, %p114
      %s117 = sadd.s32 %s116, 1
      %p120 = scmp.eq.s32.totalorder %s19, 1
      %p121 = scmp.ne.s32.totalorder %s116, %s118
      %p122 = scmp.eq.s32.totalorder %s19, 0
      %p123 = por %p121, %p122
      %p124 = scmp.ne.s32.totalorder %s116, %s118
      %p125 = scmp.eq.s32.totalorder %s24, 1
      %p126 = por %p124, %p125
      %p127 = scmp.ne.s32.totalorder %s118, %s119
      %p128 = scmp.eq.s32.totalorder %s24, 0
      %p129 = por %p127, %p128
      %p130 = scmp.ne.s32.totalorder %s118, %s119
      %p131 = scmp.eq.s32.totalorder %s25, 1
      %p132 = por %p130, %p131
      %p134 = scmp.ne.s32.totalorder %s119, %s133
      %p135 = scmp.eq.s32.totalorder %s25, 0
      %p136 = por %p134, %p135
      %s138 = sadd.s32 %s137, 1
      %p141 = scmp.eq.s32.totalorder %s19, 1
      %p142 = scmp.ne.s32.totalorder %s137, %s139
      %p143 = scmp.eq.s32.totalorder %s19, 0
      %p144 = por %p142, %p143
      %p145 = scmp.ne.s32.totalorder %s137, %s139
      %p146 = scmp.eq.s32.totalorder %s24, 1
      %p147 = por %p145, %p146
      %p148 = scmp.ne.s32.totalorder %s139, %s140
      %p149 = scmp.eq.s32.totalorder %s24, 0
      %p150 = por %p148, %p149
      %p151 = scmp.ne.s32.totalorder %s139, %s140
      %p152 = scmp.eq.s32.totalorder %s25, 1
      %p153 = por %p151, %p152
      %p155 = scmp.ne.s32.totalorder %s140, %s154
      %p156 = scmp.eq.s32.totalorder %s25, 0
      %p157 = por %p155, %p156
      %s159 = sadd.s32 %s158, 1
      %p162 = scmp.eq.s32.totalorder %s19, 1
      %p163 = scmp.ne.s32.totalorder %s158, %s160
      %p164 = scmp.eq.s32.totalorder %s19, 0
      %p165 = por %p163, %p164
      %p166 = scmp.ne.s32.totalorder %s158, %s160
      %p167 = scmp.eq.s32.totalorder %s24, 1
      %p168 = por %p166, %p167
      %p169 = scmp.ne.s32.totalorder %s160, %s161
      %p170 = scmp.eq.s32.totalorder %s24, 0
      %p171 = por %p169, %p170
      %p172 = scmp.ne.s32.totalorder %s160, %s161
      %p173 = scmp.eq.s32.totalorder %s25, 1
      %p174 = por %p172, %p173
      %p176 = scmp.ne.s32.totalorder %s161, %s175
      %p177 = scmp.eq.s32.totalorder %s25, 0
      %p178 = por %p176, %p177
      %s180 = sadd.s32 %s179, 1
      %p183 = scmp.eq.s32.totalorder %s19, 1
      %p184 = scmp.ne.s32.totalorder %s179, %s181
      %p185 = scmp.eq.s32.totalorder %s19, 0
      %p186 = por %p184, %p185
      %p187 = scmp.ne.s32.totalorder %s179, %s181
      %p188 = scmp.eq.s32.totalorder %s24, 1
      %p189 = por %p187, %p188
      %p190 = scmp.ne.s32.totalorder %s181, %s182
      %p191 = scmp.eq.s32.totalorder %s24, 0
      %p192 = por %p190, %p191
      %p193 = scmp.ne.s32.totalorder %s181, %s182
      %p194 = scmp.eq.s32.totalorder %s25, 1
      %p195 = por %p193, %p194
      %p197 = scmp.ne.s32.totalorder %s182, %s196
      %p198 = scmp.eq.s32.totalorder %s25, 0
      %p199 = por %p197, %p198
      %s201 = sadd.s32 %s200, 1
      %p204 = scmp.eq.s32.totalorder %s19, 1
      %p205 = scmp.ne.s32.totalorder %s200, %s202
      %p206 = scmp.eq.s32.totalorder %s19, 0
      %p207 = por %p205, %p206
      %p208 = scmp.ne.s32.totalorder %s200, %s202
      %p209 = scmp.eq.s32.totalorder %s24, 1
      %p210 = por %p208, %p209
      %p211 = scmp.ne.s32.totalorder %s202, %s203
      %p212 = scmp.eq.s32.totalorder %s24, 0
      %p213 = por %p211, %p212
      %p214 = scmp.ne.s32.totalorder %s202, %s203
      %p215 = scmp.eq.s32.totalorder %s25, 1
      %p216 = por %p214, %p215
      %p218 = scmp.ne.s32.totalorder %s203, %s217
      %p219 = scmp.eq.s32.totalorder %s25, 0
      %p220 = por %p218, %p219
      %s222 = sadd.s32 %s221, 1
      %p225 = scmp.eq.s32.totalorder %s19, 1
      %p226 = scmp.ne.s32.totalorder %s221, %s223
      %p227 = scmp.eq.s32.totalorder %s19, 0
      %p228 = por %p226, %p227
      %p229 = scmp.ne.s32.totalorder %s221, %s223
      %p230 = scmp.eq.s32.totalorder %s24, 1
      %p231 = por %p229, %p230
      %p232 = scmp.ne.s32.totalorder %s223, %s224
      %p233 = scmp.eq.s32.totalorder %s24, 0
      %p234 = por %p232, %p233
      %p235 = scmp.ne.s32.totalorder %s223, %s224
      %p236 = scmp.eq.s32.totalorder %s25, 1
      %p237 = por %p235, %p236
      %p239 = scmp.ne.s32.totalorder %s224, %s238
      %p240 = scmp.eq.s32.totalorder %s25, 0
      %p241 = por %p239, %p240
      %s243 = sadd.s32 %s242, 1
      %p246 = scmp.eq.s32.totalorder %s19, 1
      %p247 = scmp.ne.s32.totalorder %s242, %s244
      %p248 = scmp.eq.s32.totalorder %s19, 0
      %p249 = por %p247, %p248
      %p250 = scmp.ne.s32.totalorder %s242, %s244
      %p251 = scmp.eq.s32.totalorder %s24, 1
      %p252 = por %p250, %p251
      %p253 = scmp.ne.s32.totalorder %s244, %s245
      %p254 = scmp.eq.s32.totalorder %s24, 0
      %p255 = por %p253, %p254
      %p256 = scmp.ne.s32.totalorder %s244, %s245
      %p257 = scmp.eq.s32.totalorder %s25, 1
      %p258 = por %p256, %p257
      %p260 = scmp.ne.s32.totalorder %s245, %s259
      %p261 = scmp.eq.s32.totalorder %s25, 0
      %p262 = por %p260, %p261
      %s264 = sadd.s32 %s263, 1
      %p267 = scmp.eq.s32.totalorder %s19, 1
      %p268 = scmp.ne.s32.totalorder %s263, %s265
      %p269 = scmp.eq.s32.totalorder %s19, 0
      %p270 = por %p268, %p269
      %p271 = scmp.ne.s32.totalorder %s263, %s265
      %p272 = scmp.eq.s32.totalorder %s24, 1
      %p273 = por %p271, %p272
      %p274 = scmp.ne.s32.totalorder %s265, %s266
      %p275 = scmp.eq.s32.totalorder %s24, 0
      %p276 = por %p274, %p275
      %p277 = scmp.ne.s32.totalorder %s265, %s266
      %p278 = scmp.eq.s32.totalorder %s25, 1
      %p279 = por %p277, %p278
      %p281 = scmp.ne.s32.totalorder %s266, %s280
      %p282 = scmp.eq.s32.totalorder %s25, 0
      %p283 = por %p281, %p282
      %s284 = ssub.s32 %s19, %s26
      %p285 = scmp.eq.s32.totalorder %s284, 0
      %s287 = sadd.s32 %s286, 1
      %s288 = scalar_select %p285, %s286, %s287
      %p291 = pneg %p285
      %p292 = scmp.eq.s32.totalorder %s19, 1
      %p293 = por %p291, %p292
      %p294 = scmp.ne.s32.totalorder %s286, %s289
      %p295 = scmp.eq.s32.totalorder %s19, 0
      %p296 = por %p294, %p295
      %p297 = scmp.ne.s32.totalorder %s286, %s289
      %p298 = scmp.eq.s32.totalorder %s24, 1
      %p299 = por %p297, %p298
      %p300 = scmp.ne.s32.totalorder %s289, %s290
      %p301 = scmp.eq.s32.totalorder %s24, 0
      %p302 = por %p300, %p301
      %p303 = scmp.ne.s32.totalorder %s289, %s290
      %p304 = scmp.eq.s32.totalorder %s25, 1
      %p305 = por %p303, %p304
      %p307 = scmp.ne.s32.totalorder %s290, %s306
      %p308 = scmp.eq.s32.totalorder %s25, 0
      %p309 = por %p307, %p308
      %p310 = scmp.le.s32.totalorder 1, %s19
      %p311 = scmp.lt.s32.totalorder %s19, 3
      %p312 = pnand %p310, %p311
      %p313 = pneg %p312
      // Predicated region
      $region9: #{competitive_block_forward.4} parent=5 // pred_check
        _
      $region10: #{competitive_block_forward.4} parent=5 // pred_check_branch
        %315 = sbr.rel (%p312) target = $region12
      $region11: #{competitive_block_forward.4} parent=5 // pred_region
        %s316 = ssub.s32 %s19, 1
        // Predicated region
        $region13: #{competitive_block_forward.4} parent=11 // pred_check
          %p317 = pneg %p66
        $region14: #{competitive_block_forward.4} parent=11 // pred_check_branch
          %319 = sbr.rel (%p317) target = $region16
        $region15: #{competitive_block_forward.4} parent=11 // pred_region
          _
        $region16: #{competitive_block_forward.4} parent=11 // pred_fallthru
          _
        // Predicated region
        $region17: #{competitive_block_forward.4} parent=11 // pred_check
          %p320 = pneg %p87
        $region18: #{competitive_block_forward.4} parent=11 // pred_check_branch
          %322 = sbr.rel (%p320) target = $region20
        $region19: #{competitive_block_forward.4} parent=11 // pred_region
          _
        $region20: #{competitive_block_forward.4} parent=11 // pred_fallthru
          _
        // Predicated region
        $region21: #{competitive_block_forward.4} parent=11 // pred_check
          %p323 = pneg %p108
        $region22: #{competitive_block_forward.4} parent=11 // pred_check_branch
          %325 = sbr.rel (%p323) target = $region24
        $region23: #{competitive_block_forward.4} parent=11 // pred_region
          _
        $region24: #{competitive_block_forward.4} parent=11 // pred_fallthru
          _
        // Predicated region
        $region25: #{competitive_block_forward.4} parent=11 // pred_check
          %p326 = pneg %p129
        $region26: #{competitive_block_forward.4} parent=11 // pred_check_branch
          %328 = sbr.rel (%p326) target = $region28
        $region27: #{competitive_block_forward.4} parent=11 // pred_region
          _
        $region28: #{competitive_block_forward.4} parent=11 // pred_fallthru
          _
        // Predicated region
        $region29: #{competitive_block_forward.4} parent=11 // pred_check
          %p329 = pneg %p150
        $region30: #{competitive_block_forward.4} parent=11 // pred_check_branch
          %331 = sbr.rel (%p329) target = $region32
        $region31: #{competitive_block_forward.4} parent=11 // pred_region
          _
        $region32: #{competitive_block_forward.4} parent=11 // pred_fallthru
          _
        // Predicated region
        $region33: #{competitive_block_forward.4} parent=11 // pred_check
          %p332 = pneg %p171
        $region34: #{competitive_block_forward.4} parent=11 // pred_check_branch
          %334 = sbr.rel (%p332) target = $region36
        $region35: #{competitive_block_forward.4} parent=11 // pred_region
          _
        $region36: #{competitive_block_forward.4} parent=11 // pred_fallthru
          _
        // Predicated region
        $region37: #{competitive_block_forward.4} parent=11 // pred_check
          %p335 = pneg %p192
        $region38: #{competitive_block_forward.4} parent=11 // pred_check_branch
          %337 = sbr.rel (%p335) target = $region40
        $region39: #{competitive_block_forward.4} parent=11 // pred_region
          _
        $region40: #{competitive_block_forward.4} parent=11 // pred_fallthru
          _
        // Predicated region
        $region41: #{competitive_block_forward.4} parent=11 // pred_check
          %p338 = pneg %p213
        $region42: #{competitive_block_forward.4} parent=11 // pred_check_branch
          %340 = sbr.rel (%p338) target = $region44
        $region43: #{competitive_block_forward.4} parent=11 // pred_region
          _
        $region44: #{competitive_block_forward.4} parent=11 // pred_fallthru
          _
        // Predicated region
        $region45: #{competitive_block_forward.4} parent=11 // pred_check
          %p341 = pneg %p234
        $region46: #{competitive_block_forward.4} parent=11 // pred_check_branch
          %343 = sbr.rel (%p341) target = $region48
        $region47: #{competitive_block_forward.4} parent=11 // pred_region
          _
        $region48: #{competitive_block_forward.4} parent=11 // pred_fallthru
          _
        // Predicated region
        $region49: #{competitive_block_forward.4} parent=11 // pred_check
          %p344 = pneg %p255
        $region50: #{competitive_block_forward.4} parent=11 // pred_check_branch
          %346 = sbr.rel (%p344) target = $region52
        $region51: #{competitive_block_forward.4} parent=11 // pred_region
          _
        $region52: #{competitive_block_forward.4} parent=11 // pred_fallthru
          _
        // Predicated region
        $region53: #{competitive_block_forward.4} parent=11 // pred_check
          %p347 = pneg %p276
        $region54: #{competitive_block_forward.4} parent=11 // pred_check_branch
          %349 = sbr.rel (%p347) target = $region56
        $region55: #{competitive_block_forward.4} parent=11 // pred_region
          %351 = vsyncadd [#allocation3], 0
          %s353 = sshll.u32 %s11, 4
          %s354 = int_to_ptr.vmem [resolvable:$true] %s353
          %356 = dma.vmem_to_smem %s354, 16, [#allocation2], [#allocation3]
        $region56: #{competitive_block_forward.4} parent=11 // pred_fallthru
          _
      $region12: #{competitive_block_forward.4} parent=5 // pred_fallthru
        _
      %p357 = scmp.lt.s32.totalorder %s19, 2
      // Predicated region
      $region57: #{competitive_block_forward.4} parent=5 // pred_check
        %p358 = pneg %p357
      $region58: #{competitive_block_forward.4} parent=5 // pred_check_branch
        %360 = sbr.rel (%p358) target = $region60
      $region59: #{competitive_block_forward.4} parent=5 // pred_region
        // Predicated region
        $region61: #{competitive_block_forward.4} parent=59 // pred_check
          %p361 = pneg %p39
        $region62: #{competitive_block_forward.4} parent=59 // pred_check_branch
          %363 = sbr.rel (%p361) target = $region64
        $region63: #{competitive_block_forward.4} parent=59 // pred_region
          %p364 = scmp.lt.s32.totalorder %s19, 1
          %s365 = scalar_select %p364, %s19, 1
          %s366 = smul.addr %s365, 200
          %s367 = smul.addr %s366, 4
          %s368 = scalar_lea.vmem %s0, %s367
        $region64: #{competitive_block_forward.4} parent=59 // pred_fallthru
          _
      $region60: #{competitive_block_forward.4} parent=5 // pred_fallthru
        _
      %p369 = scmp.le.s32.totalorder 1, %s19
      %p370 = scmp.lt.s32.totalorder %s19, 3
      %p371 = pnand %p369, %p370
      %p372 = pneg %p371
      // Predicated region
      $region65: #{competitive_block_forward.4} parent=5 // pred_check
        _
      $region66: #{competitive_block_forward.4} parent=5 // pred_check_branch
        %374 = sbr.rel (%p371) target = $region68
      $region67: #{competitive_block_forward.4} parent=5 // pred_region
        %s375 = ssub.s32 %s19, 1
        // Predicated region
        $region69: #{competitive_block_forward.4} parent=67 // pred_check
          %p376 = pneg %p276
        $region70: #{competitive_block_forward.4} parent=67 // pred_check_branch
          %378 = sbr.rel (%p376) target = $region72
        $region71: #{competitive_block_forward.4} parent=67 // pred_region
          %380 = dma.done [#allocation3], 16
        $region72: #{competitive_block_forward.4} parent=67 // pred_fallthru
          _
        %381 = sfence
        %p382 = scmp.lt.s32.totalorder %s24, 1
        %s383 = scalar_select %p382, %s24, 1
        %s384 = smul.addr %s383, 200
        %s385 = smul.addr %s384, 4
        %s386 = scalar_lea.vmem %s0, %s385
        %p387 = pneg %p45
        %p388 = pneg %p42
        %p389 = pneg %p66
        %p390 = pneg %p63
        %p391 = pneg %p87
        %p392 = pneg %p84
        %p393 = pneg %p108
        %p394 = pneg %p105
        %p395 = pneg %p129
        %p396 = pneg %p126
        %p397 = pneg %p150
        %p398 = pneg %p147
        %p399 = pneg %p171
        %p400 = pneg %p168
        %p401 = pneg %p192
        %p402 = pneg %p189
        %p403 = pneg %p213
        %p404 = pneg %p210
        %p405 = pneg %p234
        %p406 = pneg %p231
        %p407 = pneg %p255
        %p408 = pneg %p252
        %p409 = pneg %p276
        %p410 = pneg %p273
        %p411 = pneg %p302
        %p412 = pneg %p299
        %p413 = scmp.lt.s32.totalorder %s24, 1
        %s414 = scalar_select %p413, %s24, 1
        %s415 = smul.addr %s414, 8
        %s416 = smul.addr %s415, 8
        %s417 = scalar_lea.vmem %s12, %s416
        %p418 = scmp.lt.s32.totalorder %s24, 1
        %s419 = scalar_select %p418, %s24, 1
        %s420 = smul.addr %s419, 200
        %s421 = smul.addr %s420, 4
        %s422 = scalar_lea.vmem %s0, %s421
        %p423 = scmp.lt.s32.totalorder %s24, 1
        %s424 = scalar_select %p423, %s24, 1
        %s425 = smul.addr %s424, 8
        %s426 = smul.addr %s425, 8
        %s427 = scalar_lea.vmem %s12, %s426
        %v429 = vld [vmem:[%s1] sm:$0xff]
        %v430 = vld [vmem:[%s422] sm:$0xff]
        %v431 = vld [vmem:[%s422 + $0x8] sm:$0xff]
        %v432 = vld [vmem:[%s422 + $0x10] sm:$0xff]
        %v433 = vld [vmem:[%s422 + $0x18] sm:$0xff]
        %v434 = vld [vmem:[%s422 + $0x20] sm:$0xff]
        %v435 = vld [vmem:[%s422 + $0x28] sm:$0xff]
        %v436 = vld [vmem:[%s422 + $0x30] sm:$0xff]
        %v437 = vld [vmem:[%s422 + $0x38] sm:$0xff]
        %v438 = vld [vmem:[%s422 + $0x40] sm:$0xff]
        %v439 = vld [vmem:[%s422 + $0x48] sm:$0xff]
        %v440 = vld [vmem:[%s422 + $0x50] sm:$0xff]
        %v441 = vld [vmem:[%s422 + $0x58] sm:$0xff]
        %v442 = vld [vmem:[%s422 + $0x60] sm:$0xff]
        %v443 = vld [vmem:[%s422 + $0x68] sm:$0xff]
        %v444 = vld [vmem:[%s422 + $0x70] sm:$0xff]
        %v445 = vld [vmem:[%s422 + $0x78] sm:$0xff]
        %v446 = vld [vmem:[%s422 + $0x80] sm:$0xff]
        %v447 = vld [vmem:[%s422 + $0x88] sm:$0xff]
        %v448 = vld [vmem:[%s422 + $0x90] sm:$0xff]
        %v449 = vld [vmem:[%s422 + $0x98] sm:$0xff]
        %v450 = vld [vmem:[%s422 + $0xa0] sm:$0xff]
        %v451 = vld [vmem:[%s422 + $0xa8] sm:$0xff]
        %v452 = vld [vmem:[%s422 + $0xb0] sm:$0xff]
        %v453 = vld [vmem:[%s422 + $0xb8] sm:$0xff]
        %v454 = vld [vmem:[%s422 + $0xc0] sm:$0xff]
        %v455 = vld [vmem:[%s422 + $0xc8] sm:$0xff]
        %v456 = vld [vmem:[%s422 + $0xd0] sm:$0xff]
        %v457 = vld [vmem:[%s422 + $0xd8] sm:$0xff]
        %v458 = vld [vmem:[%s422 + $0xe0] sm:$0xff]
        %v459 = vld [vmem:[%s422 + $0xe8] sm:$0xff]
        %v460 = vld [vmem:[%s422 + $0xf0] sm:$0xff]
        %v461 = vld [vmem:[%s422 + $0xf8] sm:$0xff]
        %v462 = vld [vmem:[%s422 + $0x100] sm:$0xff]
        %v463 = vld [vmem:[%s422 + $0x108] sm:$0xff]
        %v464 = vld [vmem:[%s422 + $0x110] sm:$0xff]
        %v465 = vld [vmem:[%s422 + $0x118] sm:$0xff]
        %v466 = vld [vmem:[%s422 + $0x120] sm:$0xff]
        %v467 = vld [vmem:[%s422 + $0x128] sm:$0xff]
        %v468 = vld [vmem:[%s422 + $0x130] sm:$0xff]
        %v469 = vld [vmem:[%s422 + $0x138] sm:$0xff]
        %v470 = vld [vmem:[%s422 + $0x140] sm:$0xff]
        %v471 = vld [vmem:[%s422 + $0x148] sm:$0xff]
        %v472 = vld [vmem:[%s422 + $0x150] sm:$0xff]
        %v473 = vld [vmem:[%s422 + $0x158] sm:$0xff]
        %v474 = vld [vmem:[%s422 + $0x160] sm:$0xff]
        %v475 = vld [vmem:[%s422 + $0x168] sm:$0xff]
        %v476 = vld [vmem:[%s422 + $0x170] sm:$0xff]
        %v477 = vld [vmem:[%s422 + $0x178] sm:$0xff]
        %v478 = vld [vmem:[%s422 + $0x180] sm:$0xff]
        %v479 = vld [vmem:[%s422 + $0x188] sm:$0xff]
        %v480 = vld [vmem:[%s422 + $0x190] sm:$0xff]
        %v481 = vld [vmem:[%s422 + $0x198] sm:$0xff]
        %v482 = vld [vmem:[%s422 + $0x1a0] sm:$0xff]
        %v483 = vld [vmem:[%s422 + $0x1a8] sm:$0xff]
        %v484 = vld [vmem:[%s422 + $0x1b0] sm:$0xff]
        %v485 = vld [vmem:[%s422 + $0x1b8] sm:$0xff]
        %v486 = vld [vmem:[%s422 + $0x1c0] sm:$0xff]
        %v487 = vld [vmem:[%s422 + $0x1c8] sm:$0xff]
        %v488 = vld [vmem:[%s422 + $0x1d0] sm:$0xff]
        %v489 = vld [vmem:[%s422 + $0x1d8] sm:$0xff]
        %v490 = vld [vmem:[%s422 + $0x1e0] sm:$0xff]
        %v491 = vld [vmem:[%s422 + $0x1e8] sm:$0xff]
        %v492 = vld [vmem:[%s422 + $0x1f0] sm:$0xff]
        %v493 = vld [vmem:[%s422 + $0x1f8] sm:$0xff]
        %v494 = vld [vmem:[%s422 + $0x200] sm:$0xff]
        %v495 = vld [vmem:[%s422 + $0x208] sm:$0xff]
        %v496 = vld [vmem:[%s422 + $0x210] sm:$0xff]
        %v497 = vld [vmem:[%s422 + $0x218] sm:$0xff]
        %v498 = vld [vmem:[%s422 + $0x220] sm:$0xff]
        %v499 = vld [vmem:[%s422 + $0x228] sm:$0xff]
        %v500 = vld [vmem:[%s422 + $0x230] sm:$0xff]
        %v501 = vld [vmem:[%s422 + $0x238] sm:$0xff]
        %v502 = vld [vmem:[%s422 + $0x240] sm:$0xff]
        %v503 = vld [vmem:[%s422 + $0x248] sm:$0xff]
        %v504 = vld [vmem:[%s422 + $0x250] sm:$0xff]
        %v505 = vld [vmem:[%s422 + $0x258] sm:$0xff]
        %v506 = vld [vmem:[%s422 + $0x260] sm:$0xff]
        %v507 = vld [vmem:[%s422 + $0x268] sm:$0xff]
        %v508 = vld [vmem:[%s422 + $0x270] sm:$0xff]
        %v509 = vld [vmem:[%s422 + $0x278] sm:$0xff]
        %v510 = vld [vmem:[%s422 + $0x280] sm:$0xff]
        %v511 = vld [vmem:[%s422 + $0x288] sm:$0xff]
        %v512 = vld [vmem:[%s422 + $0x290] sm:$0xff]
        %v513 = vld [vmem:[%s422 + $0x298] sm:$0xff]
        %v514 = vld [vmem:[%s422 + $0x2a0] sm:$0xff]
        %v515 = vld [vmem:[%s422 + $0x2a8] sm:$0xff]
        %v516 = vld [vmem:[%s422 + $0x2b0] sm:$0xff]
        %v517 = vld [vmem:[%s422 + $0x2b8] sm:$0xff]
        %v518 = vld [vmem:[%s422 + $0x2c0] sm:$0xff]
        %v519 = vld [vmem:[%s422 + $0x2c8] sm:$0xff]
        %v520 = vld [vmem:[%s422 + $0x2d0] sm:$0xff]
        %v521 = vld [vmem:[%s422 + $0x2d8] sm:$0xff]
        %v522 = vld [vmem:[%s422 + $0x2e0] sm:$0xff]
        %v523 = vld [vmem:[%s422 + $0x2e8] sm:$0xff]
        %v524 = vld [vmem:[%s422 + $0x2f0] sm:$0xff]
        %v525 = vld [vmem:[%s422 + $0x2f8] sm:$0xff]
        %v526 = vld [vmem:[%s422 + $0x300] sm:$0xff]
        %v527 = vld [vmem:[%s422 + $0x308] sm:$0xff]
        %v528 = vld [vmem:[%s422 + $0x310] sm:$0xff]
        %v529 = vld [vmem:[%s422 + $0x318] sm:$0xff]
        %v531 = vunpack.c.l.b16 %v429
        %v532 = vunpack.c.h.b16 %v429
        %v533 = vpack.c.b16 %v531, %v531
        %v534 = vpack.c.b16 %v532, %v532
        %v636 = vunpack.c.l.b16 %v430
        %v637 = vunpack.c.h.b16 %v430
        %v638 = vunpack.c.l.b16 %v431
        %v639 = vunpack.c.h.b16 %v431
        %v640 = vunpack.c.l.b16 %v432
        %v641 = vunpack.c.h.b16 %v432
        %v642 = vunpack.c.l.b16 %v433
        %v643 = vunpack.c.h.b16 %v433
        %v644 = vunpack.c.l.b16 %v434
        %v645 = vunpack.c.h.b16 %v434
        %v646 = vunpack.c.l.b16 %v435
        %v647 = vunpack.c.h.b16 %v435
        %v648 = vunpack.c.l.b16 %v436
        %v649 = vunpack.c.h.b16 %v436
        %v650 = vunpack.c.l.b16 %v437
        %v651 = vunpack.c.h.b16 %v437
        %v652 = vunpack.c.l.b16 %v438
        %v653 = vunpack.c.h.b16 %v438
        %v654 = vunpack.c.l.b16 %v439
        %v655 = vunpack.c.h.b16 %v439
        %v656 = vunpack.c.l.b16 %v440
        %v657 = vunpack.c.h.b16 %v440
        %v658 = vunpack.c.l.b16 %v441
        %v659 = vunpack.c.h.b16 %v441
        %v660 = vunpack.c.l.b16 %v442
        %v661 = vunpack.c.h.b16 %v442
        %v662 = vunpack.c.l.b16 %v443
        %v663 = vunpack.c.h.b16 %v443
        %v664 = vunpack.c.l.b16 %v444
        %v665 = vunpack.c.h.b16 %v444
        %v666 = vunpack.c.l.b16 %v445
        %v667 = vunpack.c.h.b16 %v445
        %v668 = vunpack.c.l.b16 %v446
        %v669 = vunpack.c.h.b16 %v446
        %v670 = vunpack.c.l.b16 %v447
        %v671 = vunpack.c.h.b16 %v447
        %v672 = vunpack.c.l.b16 %v448
        %v673 = vunpack.c.h.b16 %v448
        %v674 = vunpack.c.l.b16 %v449
        %v675 = vunpack.c.h.b16 %v449
        %v676 = vunpack.c.l.b16 %v450
        %v677 = vunpack.c.h.b16 %v450
        %v678 = vunpack.c.l.b16 %v451
        %v679 = vunpack.c.h.b16 %v451
        %v680 = vunpack.c.l.b16 %v452
        %v681 = vunpack.c.h.b16 %v452
        %v682 = vunpack.c.l.b16 %v453
        %v683 = vunpack.c.h.b16 %v453
        %v684 = vunpack.c.l.b16 %v454
        %v685 = vunpack.c.h.b16 %v454
        %v686 = vunpack.c.l.b16 %v455
        %v687 = vunpack.c.h.b16 %v455
        %v688 = vunpack.c.l.b16 %v456
        %v689 = vunpack.c.h.b16 %v456
        %v690 = vunpack.c.l.b16 %v457
        %v691 = vunpack.c.h.b16 %v457
        %v692 = vunpack.c.l.b16 %v458
        %v693 = vunpack.c.h.b16 %v458
        %v694 = vunpack.c.l.b16 %v459
        %v695 = vunpack.c.h.b16 %v459
        %v696 = vunpack.c.l.b16 %v460
        %v697 = vunpack.c.h.b16 %v460
        %v698 = vunpack.c.l.b16 %v461
        %v699 = vunpack.c.h.b16 %v461
        %v700 = vunpack.c.l.b16 %v462
        %v701 = vunpack.c.h.b16 %v462
        %v702 = vunpack.c.l.b16 %v463
        %v703 = vunpack.c.h.b16 %v463
        %v704 = vunpack.c.l.b16 %v464
        %v705 = vunpack.c.h.b16 %v464
        %v706 = vunpack.c.l.b16 %v465
        %v707 = vunpack.c.h.b16 %v465
        %v708 = vunpack.c.l.b16 %v466
        %v709 = vunpack.c.h.b16 %v466
        %v710 = vunpack.c.l.b16 %v467
        %v711 = vunpack.c.h.b16 %v467
        %v712 = vunpack.c.l.b16 %v468
        %v713 = vunpack.c.h.b16 %v468
        %v714 = vunpack.c.l.b16 %v469
        %v715 = vunpack.c.h.b16 %v469
        %v716 = vunpack.c.l.b16 %v470
        %v717 = vunpack.c.h.b16 %v470
        %v718 = vunpack.c.l.b16 %v471
        %v719 = vunpack.c.h.b16 %v471
        %v720 = vunpack.c.l.b16 %v472
        %v721 = vunpack.c.h.b16 %v472
        %v722 = vunpack.c.l.b16 %v473
        %v723 = vunpack.c.h.b16 %v473
        %v724 = vunpack.c.l.b16 %v474
        %v725 = vunpack.c.h.b16 %v474
        %v726 = vunpack.c.l.b16 %v475
        %v727 = vunpack.c.h.b16 %v475
        %v728 = vunpack.c.l.b16 %v476
        %v729 = vunpack.c.h.b16 %v476
        %v730 = vunpack.c.l.b16 %v477
        %v731 = vunpack.c.h.b16 %v477
        %v732 = vunpack.c.l.b16 %v478
        %v733 = vunpack.c.h.b16 %v478
        %v734 = vunpack.c.l.b16 %v479
        %v735 = vunpack.c.h.b16 %v479
        %v736 = vunpack.c.l.b16 %v480
        %v737 = vunpack.c.h.b16 %v480
        %v738 = vunpack.c.l.b16 %v481
        %v739 = vunpack.c.h.b16 %v481
        %v740 = vunpack.c.l.b16 %v482
        %v741 = vunpack.c.h.b16 %v482
        %v742 = vunpack.c.l.b16 %v483
        %v743 = vunpack.c.h.b16 %v483
        %v744 = vunpack.c.l.b16 %v484
        %v745 = vunpack.c.h.b16 %v484
        %v746 = vunpack.c.l.b16 %v485
        %v747 = vunpack.c.h.b16 %v485
        %v748 = vunpack.c.l.b16 %v486
        %v749 = vunpack.c.h.b16 %v486
        %v750 = vunpack.c.l.b16 %v487
        %v751 = vunpack.c.h.b16 %v487
        %v752 = vunpack.c.l.b16 %v488
        %v753 = vunpack.c.h.b16 %v488
        %v754 = vunpack.c.l.b16 %v489
        %v755 = vunpack.c.h.b16 %v489
        %v756 = vunpack.c.l.b16 %v490
        %v757 = vunpack.c.h.b16 %v490
        %v758 = vunpack.c.l.b16 %v491
        %v759 = vunpack.c.h.b16 %v491
        %v760 = vunpack.c.l.b16 %v492
        %v761 = vunpack.c.h.b16 %v492
        %v762 = vunpack.c.l.b16 %v493
        %v763 = vunpack.c.h.b16 %v493
        %v764 = vunpack.c.l.b16 %v494
        %v765 = vunpack.c.h.b16 %v494
        %v766 = vunpack.c.l.b16 %v495
        %v767 = vunpack.c.h.b16 %v495
        %v768 = vunpack.c.l.b16 %v496
        %v769 = vunpack.c.h.b16 %v496
        %v770 = vunpack.c.l.b16 %v497
        %v771 = vunpack.c.h.b16 %v497
        %v772 = vunpack.c.l.b16 %v498
        %v773 = vunpack.c.h.b16 %v498
        %v774 = vunpack.c.l.b16 %v499
        %v775 = vunpack.c.h.b16 %v499
        %v776 = vunpack.c.l.b16 %v500
        %v777 = vunpack.c.h.b16 %v500
        %v778 = vunpack.c.l.b16 %v501
        %v779 = vunpack.c.h.b16 %v501
        %v780 = vunpack.c.l.b16 %v502
        %v781 = vunpack.c.h.b16 %v502
        %v782 = vunpack.c.l.b16 %v503
        %v783 = vunpack.c.h.b16 %v503
        %v784 = vunpack.c.l.b16 %v504
        %v785 = vunpack.c.h.b16 %v504
        %v786 = vunpack.c.l.b16 %v505
        %v787 = vunpack.c.h.b16 %v505
        %v788 = vunpack.c.l.b16 %v506
        %v789 = vunpack.c.h.b16 %v506
        %v790 = vunpack.c.l.b16 %v507
        %v791 = vunpack.c.h.b16 %v507
        %v792 = vunpack.c.l.b16 %v508
        %v793 = vunpack.c.h.b16 %v508
        %v794 = vunpack.c.l.b16 %v509
        %v795 = vunpack.c.h.b16 %v509
        %v796 = vunpack.c.l.b16 %v510
        %v797 = vunpack.c.h.b16 %v510
        %v798 = vunpack.c.l.b16 %v511
        %v799 = vunpack.c.h.b16 %v511
        %v800 = vunpack.c.l.b16 %v512
        %v801 = vunpack.c.h.b16 %v512
        %v802 = vunpack.c.l.b16 %v513
        %v803 = vunpack.c.h.b16 %v513
        %v804 = vunpack.c.l.b16 %v514
        %v805 = vunpack.c.h.b16 %v514
        %v806 = vunpack.c.l.b16 %v515
        %v807 = vunpack.c.h.b16 %v515
        %v808 = vunpack.c.l.b16 %v516
        %v809 = vunpack.c.h.b16 %v516
        %v810 = vunpack.c.l.b16 %v517
        %v811 = vunpack.c.h.b16 %v517
        %v812 = vunpack.c.l.b16 %v518
        %v813 = vunpack.c.h.b16 %v518
        %v814 = vunpack.c.l.b16 %v519
        %v815 = vunpack.c.h.b16 %v519
        %v816 = vunpack.c.l.b16 %v520
        %v817 = vunpack.c.h.b16 %v520
        %v818 = vunpack.c.l.b16 %v521
        %v819 = vunpack.c.h.b16 %v521
        %v820 = vunpack.c.l.b16 %v522
        %v821 = vunpack.c.h.b16 %v522
        %v822 = vunpack.c.l.b16 %v523
        %v823 = vunpack.c.h.b16 %v523
        %v824 = vunpack.c.l.b16 %v524
        %v825 = vunpack.c.h.b16 %v524
        %v826 = vunpack.c.l.b16 %v525
        %v827 = vunpack.c.h.b16 %v525
        %v828 = vunpack.c.l.b16 %v526
        %v829 = vunpack.c.h.b16 %v526
        %v830 = vunpack.c.l.b16 %v527
        %v831 = vunpack.c.h.b16 %v527
        %v832 = vunpack.c.l.b16 %v528
        %v833 = vunpack.c.h.b16 %v528
        %v834 = vunpack.c.l.b16 %v529
        %v835 = vunpack.c.h.b16 %v529
        %v836 = vpack.c.b16 %v644, %v636
        %v837 = vpack.c.b16 %v645, %v637
        %v838 = vpack.c.b16 %v646, %v638
        %v839 = vpack.c.b16 %v647, %v639
        %v840 = vpack.c.b16 %v648, %v640
        %v841 = vpack.c.b16 %v649, %v641
        %v842 = vpack.c.b16 %v650, %v642
        %v843 = vpack.c.b16 %v651, %v643
        %v844 = vpack.c.b16 %v660, %v652
        %v845 = vpack.c.b16 %v661, %v653
        %v846 = vpack.c.b16 %v662, %v654
        %v847 = vpack.c.b16 %v663, %v655
        %v848 = vpack.c.b16 %v664, %v656
        %v849 = vpack.c.b16 %v665, %v657
        %v850 = vpack.c.b16 %v666, %v658
        %v851 = vpack.c.b16 %v667, %v659
        %v852 = vpack.c.b16 %v676, %v668
        %v853 = vpack.c.b16 %v677, %v669
        %v854 = vpack.c.b16 %v678, %v670
        %v855 = vpack.c.b16 %v679, %v671
        %v856 = vpack.c.b16 %v680, %v672
        %v857 = vpack.c.b16 %v681, %v673
        %v858 = vpack.c.b16 %v682, %v674
        %v859 = vpack.c.b16 %v683, %v675
        %v860 = vpack.c.b16 %v692, %v684
        %v861 = vpack.c.b16 %v693, %v685
        %v862 = vpack.c.b16 %v694, %v686
        %v863 = vpack.c.b16 %v695, %v687
        %v864 = vpack.c.b16 %v696, %v688
        %v865 = vpack.c.b16 %v697, %v689
        %v866 = vpack.c.b16 %v698, %v690
        %v867 = vpack.c.b16 %v699, %v691
        %v868 = vpack.c.b16 %v708, %v700
        %v869 = vpack.c.b16 %v709, %v701
        %v870 = vpack.c.b16 %v710, %v702
        %v871 = vpack.c.b16 %v711, %v703
        %v872 = vpack.c.b16 %v712, %v704
        %v873 = vpack.c.b16 %v713, %v705
        %v874 = vpack.c.b16 %v714, %v706
        %v875 = vpack.c.b16 %v715, %v707
        %v876 = vpack.c.b16 %v724, %v716
        %v877 = vpack.c.b16 %v725, %v717
        %v878 = vpack.c.b16 %v726, %v718
        %v879 = vpack.c.b16 %v727, %v719
        %v880 = vpack.c.b16 %v728, %v720
        %v881 = vpack.c.b16 %v729, %v721
        %v882 = vpack.c.b16 %v730, %v722
        %v883 = vpack.c.b16 %v731, %v723
        %v884 = vpack.c.b16 %v740, %v732
        %v885 = vpack.c.b16 %v741, %v733
        %v886 = vpack.c.b16 %v742, %v734
        %v887 = vpack.c.b16 %v743, %v735
        %v888 = vpack.c.b16 %v744, %v736
        %v889 = vpack.c.b16 %v745, %v737
        %v890 = vpack.c.b16 %v746, %v738
        %v891 = vpack.c.b16 %v747, %v739
        %v892 = vpack.c.b16 %v756, %v748
        %v893 = vpack.c.b16 %v757, %v749
        %v894 = vpack.c.b16 %v758, %v750
        %v895 = vpack.c.b16 %v759, %v751
        %v896 = vpack.c.b16 %v760, %v752
        %v897 = vpack.c.b16 %v761, %v753
        %v898 = vpack.c.b16 %v762, %v754
        %v899 = vpack.c.b16 %v763, %v755
        %v900 = vpack.c.b16 %v772, %v764
        %v901 = vpack.c.b16 %v773, %v765
        %v902 = vpack.c.b16 %v774, %v766
        %v903 = vpack.c.b16 %v775, %v767
        %v904 = vpack.c.b16 %v776, %v768
        %v905 = vpack.c.b16 %v777, %v769
        %v906 = vpack.c.b16 %v778, %v770
        %v907 = vpack.c.b16 %v779, %v771
        %v908 = vpack.c.b16 %v788, %v780
        %v909 = vpack.c.b16 %v789, %v781
        %v910 = vpack.c.b16 %v790, %v782
        %v911 = vpack.c.b16 %v791, %v783
        %v912 = vpack.c.b16 %v792, %v784
        %v913 = vpack.c.b16 %v793, %v785
        %v914 = vpack.c.b16 %v794, %v786
        %v915 = vpack.c.b16 %v795, %v787
        %v916 = vpack.c.b16 %v804, %v796
        %v917 = vpack.c.b16 %v805, %v797
        %v918 = vpack.c.b16 %v806, %v798
        %v919 = vpack.c.b16 %v807, %v799
        %v920 = vpack.c.b16 %v808, %v800
        %v921 = vpack.c.b16 %v809, %v801
        %v922 = vpack.c.b16 %v810, %v802
        %v923 = vpack.c.b16 %v811, %v803
        %v924 = vpack.c.b16 %v820, %v812
        %v925 = vpack.c.b16 %v821, %v813
        %v926 = vpack.c.b16 %v822, %v814
        %v927 = vpack.c.b16 %v823, %v815
        %v928 = vpack.c.b16 %v824, %v816
        %v929 = vpack.c.b16 %v825, %v817
        %v930 = vpack.c.b16 %v826, %v818
        %v931 = vpack.c.b16 %v827, %v819
        %v932 = vpack.c.b16 %v828, %v828
        %v933 = vpack.c.b16 %v829, %v829
        %v934 = vpack.c.b16 %v830, %v830
        %v935 = vpack.c.b16 %v831, %v831
        %v936 = vpack.c.b16 %v832, %v832
        %v937 = vpack.c.b16 %v833, %v833
        %v938 = vpack.c.b16 %v834, %v834
        %v939 = vpack.c.b16 %v835, %v835
        %vm1036 = vcmask 588800
        %v1038 = vsel %vm1036, %v534, 0
        %vm1040 = vcmask 1043456
        %v1042 = vsel %vm1040, %v932, 0
        %v1045 = vsel %vm1040, %v933, 0
        %v1048 = vsel %vm1040, %v934, 0
        %v1051 = vsel %vm1040, %v935, 0
        %v1054 = vsel %vm1040, %v936, 0
        %v1057 = vsel %vm1040, %v937, 0
        %v1060 = vsel %vm1040, %v938, 0
        %v1063 = vsel %vm1040, %v939, 0
        %1065 = vmatpush.bf16.msra.mxu0 %v892
        %1066 = vmatpush.bf16.msra.mxu0 %v884
        %1067 = vmatpush.bf16.msra.mxu0 %v876
        %1068 = vmatpush.bf16.msra.mxu0 %v868
        %1069 = vmatpush.bf16.msra.mxu0 %v860
        %1070 = vmatpush.bf16.msra.mxu0 %v852
        %1071 = vmatpush.bf16.msra.mxu0 %v844
        %1072 = vmatpush.bf16.msra.mxu0 %v836
        %1073 = vmatmul.bf16.gmra.mxu0 %v533
        %v1074 = vpop.f32.mrf.mxu0
        %v1075 = vadd.f32 0.0, %v1074
        %v1076 = vpop.f32.mrf.mxu0
        %1077 = vdwg.mxu0
        %1078 = vmatpush.bf16.msra.mxu0 0
        %1079 = vmatpush.bf16.msra.mxu0 0
        %1080 = vmatpush.bf16.msra.mxu0 0
        %1081 = vmatpush.bf16.msra.mxu0 %v1042
        %1082 = vmatpush.bf16.msra.mxu0 %v924
        %1083 = vmatpush.bf16.msra.mxu0 %v916
        %1084 = vmatpush.bf16.msra.mxu0 %v908
        %1085 = vmatpush.bf16.msra.mxu0 %v900
        %1086 = vmatmul.bf16.gmra.mxu0 %v1038
        %v1087 = vpop.f32.mrf.mxu0
        %v1088 = vadd.f32 %v1075, %v1087
        %v1089 = vpop.f32.mrf.mxu0
        %1090 = vdwg.mxu0
        %1091 = vmatpush.bf16.msra.mxu0 %v893
        %1092 = vmatpush.bf16.msra.mxu0 %v885
        %1093 = vmatpush.bf16.msra.mxu0 %v877
        %1094 = vmatpush.bf16.msra.mxu0 %v869
        %1095 = vmatpush.bf16.msra.mxu0 %v861
        %1096 = vmatpush.bf16.msra.mxu0 %v853
        %1097 = vmatpush.bf16.msra.mxu0 %v845
        %1098 = vmatpush.bf16.msra.mxu0 %v837
        %1099 = vmatmul.bf16.gmra.mxu0 %v533
        %v1100 = vpop.f32.mrf.mxu0
        %v1101 = vadd.f32 0.0, %v1100
        %v1102 = vpop.f32.mrf.mxu0
        %1103 = vdwg.mxu0
        %1104 = vmatpush.bf16.msra.mxu0 0
        %1105 = vmatpush.bf16.msra.mxu0 0
        %1106 = vmatpush.bf16.msra.mxu0 0
        %1107 = vmatpush.bf16.msra.mxu0 %v1045
        %1108 = vmatpush.bf16.msra.mxu0 %v925
        %1109 = vmatpush.bf16.msra.mxu0 %v917
        %1110 = vmatpush.bf16.msra.mxu0 %v909
        %1111 = vmatpush.bf16.msra.mxu0 %v901
        %1112 = vmatmul.bf16.gmra.mxu0 %v1038
        %v1113 = vpop.f32.mrf.mxu0
        %v1114 = vadd.f32 %v1101, %v1113
        %v1115 = vpop.f32.mrf.mxu0
        %1116 = vdwg.mxu0
        %1117 = vmatpush.bf16.msra.mxu0 %v894
        %1118 = vmatpush.bf16.msra.mxu0 %v886
        %1119 = vmatpush.bf16.msra.mxu0 %v878
        %1120 = vmatpush.bf16.msra.mxu0 %v870
        %1121 = vmatpush.bf16.msra.mxu0 %v862
        %1122 = vmatpush.bf16.msra.mxu0 %v854
        %1123 = vmatpush.bf16.msra.mxu0 %v846
        %1124 = vmatpush.bf16.msra.mxu0 %v838
        %1125 = vmatmul.bf16.gmra.mxu0 %v533
        %v1126 = vpop.f32.mrf.mxu0
        %v1127 = vadd.f32 0.0, %v1126
        %v1128 = vpop.f32.mrf.mxu0
        %1129 = vdwg.mxu0
        %1130 = vmatpush.bf16.msra.mxu0 0
        %1131 = vmatpush.bf16.msra.mxu0 0
        %1132 = vmatpush.bf16.msra.mxu0 0
        %1133 = vmatpush.bf16.msra.mxu0 %v1048
        %1134 = vmatpush.bf16.msra.mxu0 %v926
        %1135 = vmatpush.bf16.msra.mxu0 %v918
        %1136 = vmatpush.bf16.msra.mxu0 %v910
        %1137 = vmatpush.bf16.msra.mxu0 %v902
        %1138 = vmatmul.bf16.gmra.mxu0 %v1038
        %v1139 = vpop.f32.mrf.mxu0
        %v1140 = vadd.f32 %v1127, %v1139
        %v1141 = vpop.f32.mrf.mxu0
        %1142 = vdwg.mxu0
        %1143 = vmatpush.bf16.msra.mxu0 %v895
        %1144 = vmatpush.bf16.msra.mxu0 %v887
        %1145 = vmatpush.bf16.msra.mxu0 %v879
        %1146 = vmatpush.bf16.msra.mxu0 %v871
        %1147 = vmatpush.bf16.msra.mxu0 %v863
        %1148 = vmatpush.bf16.msra.mxu0 %v855
        %1149 = vmatpush.bf16.msra.mxu0 %v847
        %1150 = vmatpush.bf16.msra.mxu0 %v839
        %1151 = vmatmul.bf16.gmra.mxu0 %v533
        %v1152 = vpop.f32.mrf.mxu0
        %v1153 = vadd.f32 0.0, %v1152
        %v1154 = vpop.f32.mrf.mxu0
        %1155 = vdwg.mxu0
        %1156 = vmatpush.bf16.msra.mxu0 0
        %1157 = vmatpush.bf16.msra.mxu0 0
        %1158 = vmatpush.bf16.msra.mxu0 0
        %1159 = vmatpush.bf16.msra.mxu0 %v1051
        %1160 = vmatpush.bf16.msra.mxu0 %v927
        %1161 = vmatpush.bf16.msra.mxu0 %v919
        %1162 = vmatpush.bf16.msra.mxu0 %v911
        %1163 = vmatpush.bf16.msra.mxu0 %v903
        %1164 = vmatmul.bf16.gmra.mxu0 %v1038
        %v1165 = vpop.f32.mrf.mxu0
        %v1166 = vadd.f32 %v1153, %v1165
        %v1167 = vpop.f32.mrf.mxu0
        %1168 = vdwg.mxu0
        %1169 = vmatpush.bf16.msra.mxu0 %v896
        %1170 = vmatpush.bf16.msra.mxu0 %v888
        %1171 = vmatpush.bf16.msra.mxu0 %v880
        %1172 = vmatpush.bf16.msra.mxu0 %v872
        %1173 = vmatpush.bf16.msra.mxu0 %v864
        %1174 = vmatpush.bf16.msra.mxu0 %v856
        %1175 = vmatpush.bf16.msra.mxu0 %v848
        %1176 = vmatpush.bf16.msra.mxu0 %v840
        %1177 = vmatmul.bf16.gmra.mxu0 %v533
        %v1178 = vpop.f32.mrf.mxu0
        %v1179 = vadd.f32 0.0, %v1178
        %v1180 = vpop.f32.mrf.mxu0
        %1181 = vdwg.mxu0
        %1182 = vmatpush.bf16.msra.mxu0 0
        %1183 = vmatpush.bf16.msra.mxu0 0
        %1184 = vmatpush.bf16.msra.mxu0 0
        %1185 = vmatpush.bf16.msra.mxu0 %v1054
        %1186 = vmatpush.bf16.msra.mxu0 %v928
        %1187 = vmatpush.bf16.msra.mxu0 %v920
        %1188 = vmatpush.bf16.msra.mxu0 %v912
        %1189 = vmatpush.bf16.msra.mxu0 %v904
        %1190 = vmatmul.bf16.gmra.mxu0 %v1038
        %v1191 = vpop.f32.mrf.mxu0
        %v1192 = vadd.f32 %v1179, %v1191
        %v1193 = vpop.f32.mrf.mxu0
        %1194 = vdwg.mxu0
        %1195 = vmatpush.bf16.msra.mxu0 %v897
        %1196 = vmatpush.bf16.msra.mxu0 %v889
        %1197 = vmatpush.bf16.msra.mxu0 %v881
        %1198 = vmatpush.bf16.msra.mxu0 %v873
        %1199 = vmatpush.bf16.msra.mxu0 %v865
        %1200 = vmatpush.bf16.msra.mxu0 %v857
        %1201 = vmatpush.bf16.msra.mxu0 %v849
        %1202 = vmatpush.bf16.msra.mxu0 %v841
        %1203 = vmatmul.bf16.gmra.mxu0 %v533
        %v1204 = vpop.f32.mrf.mxu0
        %v1205 = vadd.f32 0.0, %v1204
        %v1206 = vpop.f32.mrf.mxu0
        %1207 = vdwg.mxu0
        %1208 = vmatpush.bf16.msra.mxu0 0
        %1209 = vmatpush.bf16.msra.mxu0 0
        %1210 = vmatpush.bf16.msra.mxu0 0
        %1211 = vmatpush.bf16.msra.mxu0 %v1057
        %1212 = vmatpush.bf16.msra.mxu0 %v929
        %1213 = vmatpush.bf16.msra.mxu0 %v921
        %1214 = vmatpush.bf16.msra.mxu0 %v913
        %1215 = vmatpush.bf16.msra.mxu0 %v905
        %1216 = vmatmul.bf16.gmra.mxu0 %v1038
        %v1217 = vpop.f32.mrf.mxu0
        %v1218 = vadd.f32 %v1205, %v1217
        %v1219 = vpop.f32.mrf.mxu0
        %1220 = vdwg.mxu0
        %1221 = vmatpush.bf16.msra.mxu0 %v898
        %1222 = vmatpush.bf16.msra.mxu0 %v890
        %1223 = vmatpush.bf16.msra.mxu0 %v882
        %1224 = vmatpush.bf16.msra.mxu0 %v874
        %1225 = vmatpush.bf16.msra.mxu0 %v866
        %1226 = vmatpush.bf16.msra.mxu0 %v858
        %1227 = vmatpush.bf16.msra.mxu0 %v850
        %1228 = vmatpush.bf16.msra.mxu0 %v842
        %1229 = vmatmul.bf16.gmra.mxu0 %v533
        %v1230 = vpop.f32.mrf.mxu0
        %v1231 = vadd.f32 0.0, %v1230
        %v1232 = vpop.f32.mrf.mxu0
        %1233 = vdwg.mxu0
        %1234 = vmatpush.bf16.msra.mxu0 0
        %1235 = vmatpush.bf16.msra.mxu0 0
        %1236 = vmatpush.bf16.msra.mxu0 0
        %1237 = vmatpush.bf16.msra.mxu0 %v1060
        %1238 = vmatpush.bf16.msra.mxu0 %v930
        %1239 = vmatpush.bf16.msra.mxu0 %v922
        %1240 = vmatpush.bf16.msra.mxu0 %v914
        %1241 = vmatpush.bf16.msra.mxu0 %v906
        %1242 = vmatmul.bf16.gmra.mxu0 %v1038
        %v1243 = vpop.f32.mrf.mxu0
        %v1244 = vadd.f32 %v1231, %v1243
        %v1245 = vpop.f32.mrf.mxu0
        %1246 = vdwg.mxu0
        %1247 = vmatpush.bf16.msra.mxu0 %v899
        %1248 = vmatpush.bf16.msra.mxu0 %v891
        %1249 = vmatpush.bf16.msra.mxu0 %v883
        %1250 = vmatpush.bf16.msra.mxu0 %v875
        %1251 = vmatpush.bf16.msra.mxu0 %v867
        %1252 = vmatpush.bf16.msra.mxu0 %v859
        %1253 = vmatpush.bf16.msra.mxu0 %v851
        %1254 = vmatpush.bf16.msra.mxu0 %v843
        %1255 = vmatmul.bf16.gmra.mxu0 %v533
        %v1256 = vpop.f32.mrf.mxu0
        %v1257 = vadd.f32 0.0, %v1256
        %v1258 = vpop.f32.mrf.mxu0
        %1259 = vdwg.mxu0
        %1260 = vmatpush.bf16.msra.mxu0 0
        %1261 = vmatpush.bf16.msra.mxu0 0
        %1262 = vmatpush.bf16.msra.mxu0 0
        %1263 = vmatpush.bf16.msra.mxu0 %v1063
        %1264 = vmatpush.bf16.msra.mxu0 %v931
        %1265 = vmatpush.bf16.msra.mxu0 %v923
        %1266 = vmatpush.bf16.msra.mxu0 %v915
        %1267 = vmatpush.bf16.msra.mxu0 %v907
        %1268 = vmatmul.bf16.gmra.mxu0 %v1038
        %v1269 = vpop.f32.mrf.mxu0
        %v1270 = vadd.f32 %v1257, %v1269
        %v1271 = vpop.f32.mrf.mxu0
        %1272 = vdwg.mxu0
        %v1273 = vld [vmem:[%s2] sm:$0xff]
        %v1274 = vld [vmem:[%s2 + $0x8] sm:$0xff]
        %v1275 = vld [vmem:[%s2 + $0x10] sm:$0xff]
        %v1276 = vld [vmem:[%s2 + $0x18] sm:$0xff]
        %v1277 = vld [vmem:[%s2 + $0x20] sm:$0xff]
        %v1278 = vld [vmem:[%s2 + $0x28] sm:$0xff]
        %v1279 = vld [vmem:[%s2 + $0x30] sm:$0xff]
        %v1280 = vld [vmem:[%s2 + $0x38] sm:$0xff]
        %v1281 = vld [vmem:[%s2 + $0x40] sm:$0xff]
        %v1282 = vld [vmem:[%s2 + $0x48] sm:$0xff]
        %v1283 = vld [vmem:[%s2 + $0x50] sm:$0xff]
        %v1284 = vld [vmem:[%s2 + $0x58] sm:$0xff]
        %v1285 = vld [vmem:[%s2 + $0x60] sm:$0xff]
        %v1286 = vld [vmem:[%s2 + $0x68] sm:$0xff]
        %v1287 = vld [vmem:[%s2 + $0x70] sm:$0xff]
        %v1288 = vld [vmem:[%s2 + $0x78] sm:$0xff]
        %v1289 = vld [vmem:[%s2 + $0x80] sm:$0xff]
        %v1290 = vld [vmem:[%s2 + $0x88] sm:$0xff]
        %v1291 = vld [vmem:[%s2 + $0x90] sm:$0xff]
        %v1292 = vld [vmem:[%s2 + $0x98] sm:$0xff]
        %v1293 = vld [vmem:[%s2 + $0xa0] sm:$0xff]
        %v1294 = vld [vmem:[%s2 + $0xa8] sm:$0xff]
        %v1295 = vld [vmem:[%s2 + $0xb0] sm:$0xff]
        %v1296 = vld [vmem:[%s2 + $0xb8] sm:$0xff]
        %v1297 = vld [vmem:[%s2 + $0xc0] sm:$0xff]
        %v1298 = vld [vmem:[%s2 + $0xc8] sm:$0xff]
        %v1299 = vld [vmem:[%s2 + $0xd0] sm:$0xff]
        %v1300 = vld [vmem:[%s2 + $0xd8] sm:$0xff]
        %v1301 = vld [vmem:[%s2 + $0xe0] sm:$0xff]
        %v1302 = vld [vmem:[%s2 + $0xe8] sm:$0xff]
        %v1303 = vld [vmem:[%s2 + $0xf0] sm:$0xff]
        %v1304 = vld [vmem:[%s2 + $0xf8] sm:$0xff]
        %v1305 = vld [vmem:[%s2 + $0x100] sm:$0xff]
        %v1306 = vld [vmem:[%s2 + $0x108] sm:$0xff]
        %v1307 = vld [vmem:[%s2 + $0x110] sm:$0xff]
        %v1308 = vld [vmem:[%s2 + $0x118] sm:$0xff]
        %v1309 = vld [vmem:[%s2 + $0x120] sm:$0xff]
        %v1310 = vld [vmem:[%s2 + $0x128] sm:$0xff]
        %v1311 = vld [vmem:[%s2 + $0x130] sm:$0xff]
        %v1312 = vld [vmem:[%s2 + $0x138] sm:$0xff]
        %v1313 = vld [vmem:[%s2 + $0x140] sm:$0xff]
        %v1314 = vld [vmem:[%s2 + $0x148] sm:$0xff]
        %v1315 = vld [vmem:[%s2 + $0x150] sm:$0xff]
        %v1316 = vld [vmem:[%s2 + $0x158] sm:$0xff]
        %v1317 = vld [vmem:[%s2 + $0x160] sm:$0xff]
        %v1318 = vld [vmem:[%s2 + $0x168] sm:$0xff]
        %v1319 = vld [vmem:[%s2 + $0x170] sm:$0xff]
        %v1320 = vld [vmem:[%s2 + $0x178] sm:$0xff]
        %v1321 = vld [vmem:[%s2 + $0x180] sm:$0xff]
        %v1322 = vld [vmem:[%s2 + $0x188] sm:$0xff]
        %v1323 = vld [vmem:[%s2 + $0x190] sm:$0xff]
        %v1324 = vld [vmem:[%s2 + $0x198] sm:$0xff]
        %v1325 = vld [vmem:[%s2 + $0x1a0] sm:$0xff]
        %v1326 = vld [vmem:[%s2 + $0x1a8] sm:$0xff]
        %v1327 = vld [vmem:[%s2 + $0x1b0] sm:$0xff]
        %v1328 = vld [vmem:[%s2 + $0x1b8] sm:$0xff]
        %v1329 = vld [vmem:[%s2 + $0x1c0] sm:$0xff]
        %v1330 = vld [vmem:[%s2 + $0x1c8] sm:$0xff]
        %v1331 = vld [vmem:[%s2 + $0x1d0] sm:$0xff]
        %v1332 = vld [vmem:[%s2 + $0x1d8] sm:$0xff]
        %v1333 = vld [vmem:[%s2 + $0x1e0] sm:$0xff]
        %v1334 = vld [vmem:[%s2 + $0x1e8] sm:$0xff]
        %v1335 = vld [vmem:[%s2 + $0x1f0] sm:$0xff]
        %v1336 = vld [vmem:[%s2 + $0x1f8] sm:$0xff]
        %v1337 = vld [vmem:[%s2 + $0x200] sm:$0xff]
        %v1338 = vld [vmem:[%s2 + $0x208] sm:$0xff]
        %v1339 = vld [vmem:[%s2 + $0x210] sm:$0xff]
        %v1340 = vld [vmem:[%s2 + $0x218] sm:$0xff]
        %v1341 = vld [vmem:[%s2 + $0x220] sm:$0xff]
        %v1342 = vld [vmem:[%s2 + $0x228] sm:$0xff]
        %v1343 = vld [vmem:[%s2 + $0x230] sm:$0xff]
        %v1344 = vld [vmem:[%s2 + $0x238] sm:$0xff]
        %v1345 = vld [vmem:[%s2 + $0x240] sm:$0xff]
        %v1346 = vld [vmem:[%s2 + $0x248] sm:$0xff]
        %v1347 = vld [vmem:[%s2 + $0x250] sm:$0xff]
        %v1348 = vld [vmem:[%s2 + $0x258] sm:$0xff]
        %v1349 = vld [vmem:[%s2 + $0x260] sm:$0xff]
        %v1350 = vld [vmem:[%s2 + $0x268] sm:$0xff]
        %v1351 = vld [vmem:[%s2 + $0x270] sm:$0xff]
        %v1352 = vld [vmem:[%s2 + $0x278] sm:$0xff]
        %v1353 = vld [vmem:[%s2 + $0x280] sm:$0xff]
        %v1354 = vld [vmem:[%s2 + $0x288] sm:$0xff]
        %v1355 = vld [vmem:[%s2 + $0x290] sm:$0xff]
        %v1356 = vld [vmem:[%s2 + $0x298] sm:$0xff]
        %v1357 = vld [vmem:[%s2 + $0x2a0] sm:$0xff]
        %v1358 = vld [vmem:[%s2 + $0x2a8] sm:$0xff]
        %v1359 = vld [vmem:[%s2 + $0x2b0] sm:$0xff]
        %v1360 = vld [vmem:[%s2 + $0x2b8] sm:$0xff]
        %v1361 = vld [vmem:[%s2 + $0x2c0] sm:$0xff]
        %v1362 = vld [vmem:[%s2 + $0x2c8] sm:$0xff]
        %v1363 = vld [vmem:[%s2 + $0x2d0] sm:$0xff]
        %v1364 = vld [vmem:[%s2 + $0x2d8] sm:$0xff]
        %v1365 = vld [vmem:[%s2 + $0x2e0] sm:$0xff]
        %v1366 = vld [vmem:[%s2 + $0x2e8] sm:$0xff]
        %v1367 = vld [vmem:[%s2 + $0x2f0] sm:$0xff]
        %v1368 = vld [vmem:[%s2 + $0x2f8] sm:$0xff]
        %v1369 = vld [vmem:[%s2 + $0x300] sm:$0xff]
        %v1370 = vld [vmem:[%s2 + $0x308] sm:$0xff]
        %v1371 = vld [vmem:[%s2 + $0x310] sm:$0xff]
        %v1372 = vld [vmem:[%s2 + $0x318] sm:$0xff]
        %v1373 = vld [vmem:[%s2 + $0x320] sm:$0xff]
        %v1374 = vld [vmem:[%s2 + $0x328] sm:$0xff]
        %v1375 = vld [vmem:[%s2 + $0x330] sm:$0xff]
        %v1376 = vld [vmem:[%s2 + $0x338] sm:$0xff]
        %v1377 = vld [vmem:[%s2 + $0x340] sm:$0xff]
        %v1378 = vld [vmem:[%s2 + $0x348] sm:$0xff]
        %v1379 = vld [vmem:[%s2 + $0x350] sm:$0xff]
        %v1380 = vld [vmem:[%s2 + $0x358] sm:$0xff]
        %v1381 = vld [vmem:[%s2 + $0x360] sm:$0xff]
        %v1382 = vld [vmem:[%s2 + $0x368] sm:$0xff]
        %v1383 = vld [vmem:[%s2 + $0x370] sm:$0xff]
        %v1384 = vld [vmem:[%s2 + $0x378] sm:$0xff]
        %v1385 = vld [vmem:[%s2 + $0x380] sm:$0xff]
        %v1386 = vld [vmem:[%s2 + $0x388] sm:$0xff]
        %v1387 = vld [vmem:[%s2 + $0x390] sm:$0xff]
        %v1388 = vld [vmem:[%s2 + $0x398] sm:$0xff]
        %v1389 = vld [vmem:[%s2 + $0x3a0] sm:$0xff]
        %v1390 = vld [vmem:[%s2 + $0x3a8] sm:$0xff]
        %v1391 = vld [vmem:[%s2 + $0x3b0] sm:$0xff]
        %v1392 = vld [vmem:[%s2 + $0x3b8] sm:$0xff]
        %v1393 = vld [vmem:[%s2 + $0x3c0] sm:$0xff]
        %v1394 = vld [vmem:[%s2 + $0x3c8] sm:$0xff]
        %v1395 = vld [vmem:[%s2 + $0x3d0] sm:$0xff]
        %v1396 = vld [vmem:[%s2 + $0x3d8] sm:$0xff]
        %v1397 = vld [vmem:[%s2 + $0x3e0] sm:$0xff]
        %v1398 = vld [vmem:[%s2 + $0x3e8] sm:$0xff]
        %v1399 = vld [vmem:[%s2 + $0x3f0] sm:$0xff]
        %v1400 = vld [vmem:[%s2 + $0x3f8] sm:$0xff]
        %1401 = vmatpush.msra.mxu0 %v1288
        %1402 = vmatpush.msra.mxu0 %v1287
        %1403 = vmatpush.msra.mxu0 %v1286
        %1404 = vmatpush.msra.mxu0 %v1285
        %1405 = vmatpush.msra.mxu0 %v1284
        %1406 = vmatpush.msra.mxu0 %v1283
        %1407 = vmatpush.msra.mxu0 %v1282
        %1408 = vmatpush.msra.mxu0 %v1281
        %1409 = vmatpush.msra.mxu0 %v1280
        %1410 = vmatpush.msra.mxu0 %v1279
        %1411 = vmatpush.msra.mxu0 %v1278
        %1412 = vmatpush.msra.mxu0 %v1277
        %1413 = vmatpush.msra.mxu0 %v1276
        %1414 = vmatpush.msra.mxu0 %v1275
        %1415 = vmatpush.msra.mxu0 %v1274
        %1416 = vmatpush.msra.mxu0 %v1273
        %1417 = vmatmul.f32.gmra.mxu0 %v1088
        %v1418 = vpop.f32.mrf.mxu0
        %v1419 = vadd.f32 0.0, %v1418
        %1420 = vdwg.mxu0
        %1421 = vmatpush.msra.mxu0 %v1304
        %1422 = vmatpush.msra.mxu0 %v1303
        %1423 = vmatpush.msra.mxu0 %v1302
        %1424 = vmatpush.msra.mxu0 %v1301
        %1425 = vmatpush.msra.mxu0 %v1300
        %1426 = vmatpush.msra.mxu0 %v1299
        %1427 = vmatpush.msra.mxu0 %v1298
        %1428 = vmatpush.msra.mxu0 %v1297
        %1429 = vmatpush.msra.mxu0 %v1296
        %1430 = vmatpush.msra.mxu0 %v1295
        %1431 = vmatpush.msra.mxu0 %v1294
        %1432 = vmatpush.msra.mxu0 %v1293
        %1433 = vmatpush.msra.mxu0 %v1292
        %1434 = vmatpush.msra.mxu0 %v1291
        %1435 = vmatpush.msra.mxu0 %v1290
        %1436 = vmatpush.msra.mxu0 %v1289
        %1437 = vmatmul.f32.gmra.mxu0 %v1114
        %v1438 = vpop.f32.mrf.mxu0
        %v1439 = vadd.f32 %v1419, %v1438
        %1440 = vdwg.mxu0
        %1441 = vmatpush.msra.mxu0 %v1320
        %1442 = vmatpush.msra.mxu0 %v1319
        %1443 = vmatpush.msra.mxu0 %v1318
        %1444 = vmatpush.msra.mxu0 %v1317
        %1445 = vmatpush.msra.mxu0 %v1316
        %1446 = vmatpush.msra.mxu0 %v1315
        %1447 = vmatpush.msra.mxu0 %v1314
        %1448 = vmatpush.msra.mxu0 %v1313
        %1449 = vmatpush.msra.mxu0 %v1312
        %1450 = vmatpush.msra.mxu0 %v1311
        %1451 = vmatpush.msra.mxu0 %v1310
        %1452 = vmatpush.msra.mxu0 %v1309
        %1453 = vmatpush.msra.mxu0 %v1308
        %1454 = vmatpush.msra.mxu0 %v1307
        %1455 = vmatpush.msra.mxu0 %v1306
        %1456 = vmatpush.msra.mxu0 %v1305
        %1457 = vmatmul.f32.gmra.mxu0 %v1140
        %v1458 = vpop.f32.mrf.mxu0
        %v1459 = vadd.f32 %v1439, %v1458
        %1460 = vdwg.mxu0
        %1461 = vmatpush.msra.mxu0 %v1336
        %1462 = vmatpush.msra.mxu0 %v1335
        %1463 = vmatpush.msra.mxu0 %v1334
        %1464 = vmatpush.msra.mxu0 %v1333
        %1465 = vmatpush.msra.mxu0 %v1332
        %1466 = vmatpush.msra.mxu0 %v1331
        %1467 = vmatpush.msra.mxu0 %v1330
        %1468 = vmatpush.msra.mxu0 %v1329
        %1469 = vmatpush.msra.mxu0 %v1328
        %1470 = vmatpush.msra.mxu0 %v1327
        %1471 = vmatpush.msra.mxu0 %v1326
        %1472 = vmatpush.msra.mxu0 %v1325
        %1473 = vmatpush.msra.mxu0 %v1324
        %1474 = vmatpush.msra.mxu0 %v1323
        %1475 = vmatpush.msra.mxu0 %v1322
        %1476 = vmatpush.msra.mxu0 %v1321
        %1477 = vmatmul.f32.gmra.mxu0 %v1166
        %v1478 = vpop.f32.mrf.mxu0
        %v1479 = vadd.f32 %v1459, %v1478
        %1480 = vdwg.mxu0
        %1481 = vmatpush.msra.mxu0 %v1352
        %1482 = vmatpush.msra.mxu0 %v1351
        %1483 = vmatpush.msra.mxu0 %v1350
        %1484 = vmatpush.msra.mxu0 %v1349
        %1485 = vmatpush.msra.mxu0 %v1348
        %1486 = vmatpush.msra.mxu0 %v1347
        %1487 = vmatpush.msra.mxu0 %v1346
        %1488 = vmatpush.msra.mxu0 %v1345
        %1489 = vmatpush.msra.mxu0 %v1344
        %1490 = vmatpush.msra.mxu0 %v1343
        %1491 = vmatpush.msra.mxu0 %v1342
        %1492 = vmatpush.msra.mxu0 %v1341
        %1493 = vmatpush.msra.mxu0 %v1340
        %1494 = vmatpush.msra.mxu0 %v1339
        %1495 = vmatpush.msra.mxu0 %v1338
        %1496 = vmatpush.msra.mxu0 %v1337
        %1497 = vmatmul.f32.gmra.mxu0 %v1192
        %v1498 = vpop.f32.mrf.mxu0
        %v1499 = vadd.f32 %v1479, %v1498
        %1500 = vdwg.mxu0
        %1501 = vmatpush.msra.mxu0 %v1368
        %1502 = vmatpush.msra.mxu0 %v1367
        %1503 = vmatpush.msra.mxu0 %v1366
        %1504 = vmatpush.msra.mxu0 %v1365
        %1505 = vmatpush.msra.mxu0 %v1364
        %1506 = vmatpush.msra.mxu0 %v1363
        %1507 = vmatpush.msra.mxu0 %v1362
        %1508 = vmatpush.msra.mxu0 %v1361
        %1509 = vmatpush.msra.mxu0 %v1360
        %1510 = vmatpush.msra.mxu0 %v1359
        %1511 = vmatpush.msra.mxu0 %v1358
        %1512 = vmatpush.msra.mxu0 %v1357
        %1513 = vmatpush.msra.mxu0 %v1356
        %1514 = vmatpush.msra.mxu0 %v1355
        %1515 = vmatpush.msra.mxu0 %v1354
        %1516 = vmatpush.msra.mxu0 %v1353
        %1517 = vmatmul.f32.gmra.mxu0 %v1218
        %v1518 = vpop.f32.mrf.mxu0
        %v1519 = vadd.f32 %v1499, %v1518
        %1520 = vdwg.mxu0
        %1521 = vmatpush.msra.mxu0 %v1384
        %1522 = vmatpush.msra.mxu0 %v1383
        %1523 = vmatpush.msra.mxu0 %v1382
        %1524 = vmatpush.msra.mxu0 %v1381
        %1525 = vmatpush.msra.mxu0 %v1380
        %1526 = vmatpush.msra.mxu0 %v1379
        %1527 = vmatpush.msra.mxu0 %v1378
        %1528 = vmatpush.msra.mxu0 %v1377
        %1529 = vmatpush.msra.mxu0 %v1376
        %1530 = vmatpush.msra.mxu0 %v1375
        %1531 = vmatpush.msra.mxu0 %v1374
        %1532 = vmatpush.msra.mxu0 %v1373
        %1533 = vmatpush.msra.mxu0 %v1372
        %1534 = vmatpush.msra.mxu0 %v1371
        %1535 = vmatpush.msra.mxu0 %v1370
        %1536 = vmatpush.msra.mxu0 %v1369
        %1537 = vmatmul.f32.gmra.mxu0 %v1244
        %v1538 = vpop.f32.mrf.mxu0
        %v1539 = vadd.f32 %v1519, %v1538
        %1540 = vdwg.mxu0
        %1541 = vmatpush.msra.mxu0 %v1400
        %1542 = vmatpush.msra.mxu0 %v1399
        %1543 = vmatpush.msra.mxu0 %v1398
        %1544 = vmatpush.msra.mxu0 %v1397
        %1545 = vmatpush.msra.mxu0 %v1396
        %1546 = vmatpush.msra.mxu0 %v1395
        %1547 = vmatpush.msra.mxu0 %v1394
        %1548 = vmatpush.msra.mxu0 %v1393
        %1549 = vmatpush.msra.mxu0 %v1392
        %1550 = vmatpush.msra.mxu0 %v1391
        %1551 = vmatpush.msra.mxu0 %v1390
        %1552 = vmatpush.msra.mxu0 %v1389
        %1553 = vmatpush.msra.mxu0 %v1388
        %1554 = vmatpush.msra.mxu0 %v1387
        %1555 = vmatpush.msra.mxu0 %v1386
        %1556 = vmatpush.msra.mxu0 %v1385
        %1557 = vmatmul.f32.gmra.mxu0 %v1270
        %v1558 = vpop.f32.mrf.mxu0
        %v1559 = vadd.f32 %v1539, %v1558
        %1560 = vdwg.mxu0
        %v1561 = vld [vmem:[%s5] sm:$0xff]
        %v1562 = vld [vmem:[%s6] sm:$0xff]
        %1564 = vset.pattern.permute.xlu0 0
        %1565 = vperm.xlu0 %1564, %v1562
        %v1566 = vpop.permute.xlu0 %1565
        %vm1568 = vcmask 64512
        %v1570 = vsel %vm1568, %v1561, 0
        %1572 = vmatpush.msra.mxu0 0.0
        %1573 = vmatpush.msra.mxu0 0.0
        %1574 = vmatpush.msra.mxu0 0.0
        %1575 = vmatpush.msra.mxu0 0.0
        %1576 = vmatpush.msra.mxu0 0.0
        %1577 = vmatpush.msra.mxu0 0.0
        %1578 = vmatpush.msra.mxu0 0.0
        %1579 = vmatpush.msra.mxu0 0.0
        %1580 = vmatpush.msra.mxu0 0.0
        %1581 = vmatpush.msra.mxu0 0.0
        %1582 = vmatpush.msra.mxu0 0.0
        %1583 = vmatpush.msra.mxu0 0.0
        %1584 = vmatpush.msra.mxu0 0.0
        %1585 = vmatpush.msra.mxu0 0.0
        %1586 = vmatpush.msra.mxu0 0.0
        %1587 = vmatpush.msra.mxu0 %v1559
        %1588 = vmatmul.f32.gmra.mxu0 %v1570
        %v1589 = vpop.f32.mrf.mxu0
        %v1590 = vadd.f32 %v1566, %v1589
        %1591 = vdwg.mxu0
        %v1592 = vadd.f32 %v1590, 3.0
        %v1593 = vmax.f32 %v1592, 0.0
        %v1594 = vmin.f32 %v1593, 6.0
        %v1595 = vmul.f32 %v1594, 0.16666667
        %v1596 = vmul.f32 %v1590, %v1595
        %v1597 = vld [vmem:[%s7] sm:$0xff]
        %v1598 = vld [vmem:[%s8] sm:$0xff]
        %1600 = vset.pattern.permute.xlu0 0
        %1601 = vperm.xlu0 %1600, %v1598
        %v1602 = vpop.permute.xlu0 %1601
        %v1605 = vsel %vm1568, %v1597, 0
        %1607 = vmatpush.msra.mxu0 0.0
        %1608 = vmatpush.msra.mxu0 0.0
        %1609 = vmatpush.msra.mxu0 0.0
        %1610 = vmatpush.msra.mxu0 0.0
        %1611 = vmatpush.msra.mxu0 0.0
        %1612 = vmatpush.msra.mxu0 0.0
        %1613 = vmatpush.msra.mxu0 0.0
        %1614 = vmatpush.msra.mxu0 0.0
        %1615 = vmatpush.msra.mxu0 0.0
        %1616 = vmatpush.msra.mxu0 0.0
        %1617 = vmatpush.msra.mxu0 0.0
        %1618 = vmatpush.msra.mxu0 0.0
        %1619 = vmatpush.msra.mxu0 0.0
        %1620 = vmatpush.msra.mxu0 0.0
        %1621 = vmatpush.msra.mxu0 0.0
        %1622 = vmatpush.msra.mxu0 %v1596
        %1623 = vmatmul.f32.gmra.mxu0 %v1605
        %v1624 = vpop.f32.mrf.mxu0
        %v1625 = vadd.f32 %v1602, %v1624
        %1626 = vdwg.mxu0
        %v1627 = vxor.u32 %v1625, 2147483648
        %v1628 = vmul.f32 %v1627, 1.442695
        %v1629 = vpow.pop %v1628
        %v1630 = vadd.f32 %v1629, 1.0
        %v1631 = vrcp.pop %v1630
        %v1632 = vmul.f32 %v1630, %v1631
        %v1633 = vsub.f32 1.0, %v1632
        %v1634 = vmul.f32 %v1631, %v1633
        %v1635 = vadd.f32 %v1631, %v1634
        %vm1636 = vweird.f32 %v1630
        %vm1637 = vweird.f32 %v1631
        %vm1638 = vmor %vm1636, %vm1637
        %v1639 = vsel %vm1638, %v1631, %v1635
        %v1640 = vand.u32 2147483647, %v1630
        %vm1641 = vcmp.eq.f32.partialorder %v1640, 8.507059e+37
        %v1642 = vand.u32 %v1630, 2147483648
        %v1643 = vor.u32 1.1754944e-38, %v1642
        %v1644 = vsel %vm1641, %v1643, %v1639
        %v1645 = vmul.f32 1.0, %v1644
        %v1646 = vld [vmem:[%s9] sm:$0xff]
        %v1647 = vld [vmem:[%s10] sm:$0xff]
        %1649 = vset.pattern.permute.xlu0 0
        %1650 = vperm.xlu0 %1649, %v1647
        %v1651 = vpop.permute.xlu0 %1650
        %1654 = vrot.lane.b32.xlu0 %v1596, 96
        %v1655 = vpop.permute.xlu0 %1654
        %v1658 = vsel %vm1568, %v1646, 0
        %1660 = vmatpush.msra.mxu0 0.0
        %1661 = vmatpush.msra.mxu0 0.0
        %1662 = vmatpush.msra.mxu0 0.0
        %1663 = vmatpush.msra.mxu0 0.0
        %1664 = vmatpush.msra.mxu0 0.0
        %1665 = vmatpush.msra.mxu0 0.0
        %1666 = vmatpush.msra.mxu0 0.0
        %1667 = vmatpush.msra.mxu0 0.0
        %1668 = vmatpush.msra.mxu0 0.0
        %1669 = vmatpush.msra.mxu0 0.0
        %1670 = vmatpush.msra.mxu0 0.0
        %1671 = vmatpush.msra.mxu0 0.0
        %1672 = vmatpush.msra.mxu0 0.0
        %1673 = vmatpush.msra.mxu0 0.0
        %1674 = vmatpush.msra.mxu0 0.0
        %1675 = vmatpush.msra.mxu0 %v1655
        %1676 = vmatmul.f32.gmra.mxu0 %v1658
        %v1677 = vpop.f32.mrf.mxu0
        %v1678 = vadd.f32 %v1651, %v1677
        %1679 = vdwg.mxu0
        %v1680 = vxor.u32 %v1678, 2147483648
        %v1681 = vmul.f32 %v1680, 1.442695
        %v1682 = vpow.pop %v1681
        %v1683 = vadd.f32 %v1682, 1.0
        %v1684 = vrcp.pop %v1683
        %v1685 = vmul.f32 %v1683, %v1684
        %v1686 = vsub.f32 1.0, %v1685
        %v1687 = vmul.f32 %v1684, %v1686
        %v1688 = vadd.f32 %v1684, %v1687
        %vm1689 = vweird.f32 %v1683
        %vm1690 = vweird.f32 %v1684
        %vm1691 = vmor %vm1689, %vm1690
        %v1692 = vsel %vm1691, %v1684, %v1688
        %v1693 = vand.u32 2147483647, %v1683
        %vm1694 = vcmp.eq.f32.partialorder %v1693, 8.507059e+37
        %v1695 = vand.u32 %v1683, 2147483648
        %v1696 = vor.u32 1.1754944e-38, %v1695
        %v1697 = vsel %vm1694, %v1696, %v1692
        %v1698 = vmul.f32 1.0, %v1697
        %v1699 = vld [vmem:[%s3] sm:$0xff]
        %v1700 = vld [vmem:[%s3 + $0x8] sm:$0xff]
        %v1701 = vld [vmem:[%s3 + $0x10] sm:$0xff]
        %v1702 = vld [vmem:[%s3 + $0x18] sm:$0xff]
        %v1703 = vld [vmem:[%s3 + $0x20] sm:$0xff]
        %v1704 = vld [vmem:[%s3 + $0x28] sm:$0xff]
        %v1705 = vld [vmem:[%s3 + $0x30] sm:$0xff]
        %v1706 = vld [vmem:[%s3 + $0x38] sm:$0xff]
        %v1707 = vld [vmem:[%s3 + $0x40] sm:$0xff]
        %v1708 = vld [vmem:[%s3 + $0x48] sm:$0xff]
        %v1709 = vld [vmem:[%s3 + $0x50] sm:$0xff]
        %v1710 = vld [vmem:[%s3 + $0x58] sm:$0xff]
        %v1711 = vld [vmem:[%s3 + $0x60] sm:$0xff]
        %v1712 = vld [vmem:[%s3 + $0x68] sm:$0xff]
        %v1713 = vld [vmem:[%s3 + $0x70] sm:$0xff]
        %v1714 = vld [vmem:[%s3 + $0x78] sm:$0xff]
        %v1715 = vld [vmem:[%s3 + $0x80] sm:$0xff]
        %v1716 = vld [vmem:[%s3 + $0x88] sm:$0xff]
        %v1717 = vld [vmem:[%s3 + $0x90] sm:$0xff]
        %v1718 = vld [vmem:[%s3 + $0x98] sm:$0xff]
        %v1719 = vld [vmem:[%s3 + $0xa0] sm:$0xff]
        %v1720 = vld [vmem:[%s3 + $0xa8] sm:$0xff]
        %v1721 = vld [vmem:[%s3 + $0xb0] sm:$0xff]
        %v1722 = vld [vmem:[%s3 + $0xb8] sm:$0xff]
        %v1723 = vld [vmem:[%s3 + $0xc0] sm:$0xff]
        %v1724 = vld [vmem:[%s3 + $0xc8] sm:$0xff]
        %v1725 = vld [vmem:[%s3 + $0xd0] sm:$0xff]
        %v1726 = vld [vmem:[%s3 + $0xd8] sm:$0xff]
        %v1727 = vld [vmem:[%s3 + $0xe0] sm:$0xff]
        %v1728 = vld [vmem:[%s3 + $0xe8] sm:$0xff]
        %v1729 = vld [vmem:[%s3 + $0xf0] sm:$0xff]
        %v1730 = vld [vmem:[%s3 + $0xf8] sm:$0xff]
        %vm1731 = vcmask 261120
        %v1733 = vsel %vm1731, %v1645, 0
        %1735 = vmatpush.msra.mxu0 0.0
        %1736 = vmatpush.msra.mxu0 0.0
        %1737 = vmatpush.msra.mxu0 0.0
        %1738 = vmatpush.msra.mxu0 0.0
        %1739 = vmatpush.msra.mxu0 0.0
        %1740 = vmatpush.msra.mxu0 0.0
        %1741 = vmatpush.msra.mxu0 0.0
        %1742 = vmatpush.msra.mxu0 0.0
        %1743 = vmatpush.msra.mxu0 0.0
        %1744 = vmatpush.msra.mxu0 0.0
        %1745 = vmatpush.msra.mxu0 0.0
        %1746 = vmatpush.msra.mxu0 0.0
        %1747 = vmatpush.msra.mxu0 %v1723
        %1748 = vmatpush.msra.mxu0 %v1715
        %1749 = vmatpush.msra.mxu0 %v1707
        %1750 = vmatpush.msra.mxu0 %v1699
        %1751 = vmatmul.f32.gmra.mxu0 %v1733
        %v1752 = vpop.f32.mrf.mxu0
        %v1753 = vadd.f32 0.0, %v1752
        %1754 = vdwg.mxu0
        %1755 = vmatpush.msra.mxu0 0.0
        %1756 = vmatpush.msra.mxu0 0.0
        %1757 = vmatpush.msra.mxu0 0.0
        %1758 = vmatpush.msra.mxu0 0.0
        %1759 = vmatpush.msra.mxu0 0.0
        %1760 = vmatpush.msra.mxu0 0.0
        %1761 = vmatpush.msra.mxu0 0.0
        %1762 = vmatpush.msra.mxu0 0.0
        %1763 = vmatpush.msra.mxu0 0.0
        %1764 = vmatpush.msra.mxu0 0.0
        %1765 = vmatpush.msra.mxu0 0.0
        %1766 = vmatpush.msra.mxu0 0.0
        %1767 = vmatpush.msra.mxu0 %v1724
        %1768 = vmatpush.msra.mxu0 %v1716
        %1769 = vmatpush.msra.mxu0 %v1708
        %1770 = vmatpush.msra.mxu0 %v1700
        %1771 = vmatmul.f32.gmra.mxu0 %v1733
        %v1772 = vpop.f32.mrf.mxu0
        %v1773 = vadd.f32 0.0, %v1772
        %1774 = vdwg.mxu0
        %1775 = vmatpush.msra.mxu0 0.0
        %1776 = vmatpush.msra.mxu0 0.0
        %1777 = vmatpush.msra.mxu0 0.0
        %1778 = vmatpush.msra.mxu0 0.0
        %1779 = vmatpush.msra.mxu0 0.0
        %1780 = vmatpush.msra.mxu0 0.0
        %1781 = vmatpush.msra.mxu0 0.0
        %1782 = vmatpush.msra.mxu0 0.0
        %1783 = vmatpush.msra.mxu0 0.0
        %1784 = vmatpush.msra.mxu0 0.0
        %1785 = vmatpush.msra.mxu0 0.0
        %1786 = vmatpush.msra.mxu0 0.0
        %1787 = vmatpush.msra.mxu0 %v1725
        %1788 = vmatpush.msra.mxu0 %v1717
        %1789 = vmatpush.msra.mxu0 %v1709
        %1790 = vmatpush.msra.mxu0 %v1701
        %1791 = vmatmul.f32.gmra.mxu0 %v1733
        %v1792 = vpop.f32.mrf.mxu0
        %v1793 = vadd.f32 0.0, %v1792
        %1794 = vdwg.mxu0
        %1795 = vmatpush.msra.mxu0 0.0
        %1796 = vmatpush.msra.mxu0 0.0
        %1797 = vmatpush.msra.mxu0 0.0
        %1798 = vmatpush.msra.mxu0 0.0
        %1799 = vmatpush.msra.mxu0 0.0
        %1800 = vmatpush.msra.mxu0 0.0
        %1801 = vmatpush.msra.mxu0 0.0
        %1802 = vmatpush.msra.mxu0 0.0
        %1803 = vmatpush.msra.mxu0 0.0
        %1804 = vmatpush.msra.mxu0 0.0
        %1805 = vmatpush.msra.mxu0 0.0
        %1806 = vmatpush.msra.mxu0 0.0
        %1807 = vmatpush.msra.mxu0 %v1726
        %1808 = vmatpush.msra.mxu0 %v1718
        %1809 = vmatpush.msra.mxu0 %v1710
        %1810 = vmatpush.msra.mxu0 %v1702
        %1811 = vmatmul.f32.gmra.mxu0 %v1733
        %v1812 = vpop.f32.mrf.mxu0
        %v1813 = vadd.f32 0.0, %v1812
        %1814 = vdwg.mxu0
        %1815 = vmatpush.msra.mxu0 0.0
        %1816 = vmatpush.msra.mxu0 0.0
        %1817 = vmatpush.msra.mxu0 0.0
        %1818 = vmatpush.msra.mxu0 0.0
        %1819 = vmatpush.msra.mxu0 0.0
        %1820 = vmatpush.msra.mxu0 0.0
        %1821 = vmatpush.msra.mxu0 0.0
        %1822 = vmatpush.msra.mxu0 0.0
        %1823 = vmatpush.msra.mxu0 0.0
        %1824 = vmatpush.msra.mxu0 0.0
        %1825 = vmatpush.msra.mxu0 0.0
        %1826 = vmatpush.msra.mxu0 0.0
        %1827 = vmatpush.msra.mxu0 %v1727
        %1828 = vmatpush.msra.mxu0 %v1719
        %1829 = vmatpush.msra.mxu0 %v1711
        %1830 = vmatpush.msra.mxu0 %v1703
        %1831 = vmatmul.f32.gmra.mxu0 %v1733
        %v1832 = vpop.f32.mrf.mxu0
        %v1833 = vadd.f32 0.0, %v1832
        %1834 = vdwg.mxu0
        %1835 = vmatpush.msra.mxu0 0.0
        %1836 = vmatpush.msra.mxu0 0.0
        %1837 = vmatpush.msra.mxu0 0.0
        %1838 = vmatpush.msra.mxu0 0.0
        %1839 = vmatpush.msra.mxu0 0.0
        %1840 = vmatpush.msra.mxu0 0.0
        %1841 = vmatpush.msra.mxu0 0.0
        %1842 = vmatpush.msra.mxu0 0.0
        %1843 = vmatpush.msra.mxu0 0.0
        %1844 = vmatpush.msra.mxu0 0.0
        %1845 = vmatpush.msra.mxu0 0.0
        %1846 = vmatpush.msra.mxu0 0.0
        %1847 = vmatpush.msra.mxu0 %v1728
        %1848 = vmatpush.msra.mxu0 %v1720
        %1849 = vmatpush.msra.mxu0 %v1712
        %1850 = vmatpush.msra.mxu0 %v1704
        %1851 = vmatmul.f32.gmra.mxu0 %v1733
        %v1852 = vpop.f32.mrf.mxu0
        %v1853 = vadd.f32 0.0, %v1852
        %1854 = vdwg.mxu0
        %1855 = vmatpush.msra.mxu0 0.0
        %1856 = vmatpush.msra.mxu0 0.0
        %1857 = vmatpush.msra.mxu0 0.0
        %1858 = vmatpush.msra.mxu0 0.0
        %1859 = vmatpush.msra.mxu0 0.0
        %1860 = vmatpush.msra.mxu0 0.0
        %1861 = vmatpush.msra.mxu0 0.0
        %1862 = vmatpush.msra.mxu0 0.0
        %1863 = vmatpush.msra.mxu0 0.0
        %1864 = vmatpush.msra.mxu0 0.0
        %1865 = vmatpush.msra.mxu0 0.0
        %1866 = vmatpush.msra.mxu0 0.0
        %1867 = vmatpush.msra.mxu0 %v1729
        %1868 = vmatpush.msra.mxu0 %v1721
        %1869 = vmatpush.msra.mxu0 %v1713
        %1870 = vmatpush.msra.mxu0 %v1705
        %1871 = vmatmul.f32.gmra.mxu0 %v1733
        %v1872 = vpop.f32.mrf.mxu0
        %v1873 = vadd.f32 0.0, %v1872
        %1874 = vdwg.mxu0
        %1875 = vmatpush.msra.mxu0 0.0
        %1876 = vmatpush.msra.mxu0 0.0
        %1877 = vmatpush.msra.mxu0 0.0
        %1878 = vmatpush.msra.mxu0 0.0
        %1879 = vmatpush.msra.mxu0 0.0
        %1880 = vmatpush.msra.mxu0 0.0
        %1881 = vmatpush.msra.mxu0 0.0
        %1882 = vmatpush.msra.mxu0 0.0
        %1883 = vmatpush.msra.mxu0 0.0
        %1884 = vmatpush.msra.mxu0 0.0
        %1885 = vmatpush.msra.mxu0 0.0
        %1886 = vmatpush.msra.mxu0 0.0
        %1887 = vmatpush.msra.mxu0 %v1730
        %1888 = vmatpush.msra.mxu0 %v1722
        %1889 = vmatpush.msra.mxu0 %v1714
        %1890 = vmatpush.msra.mxu0 %v1706
        %1891 = vmatmul.f32.gmra.mxu0 %v1733
        %v1892 = vpop.f32.mrf.mxu0
        %v1893 = vadd.f32 0.0, %v1892
        %1894 = vdwg.mxu0
        %v1895 = vld [vmem:[%s4] sm:$0xff]
        %v1896 = vld [vmem:[%s4 + $0x8] sm:$0xff]
        %v1897 = vld [vmem:[%s4 + $0x10] sm:$0xff]
        %v1898 = vld [vmem:[%s4 + $0x18] sm:$0xff]
        %v1899 = vld [vmem:[%s4 + $0x20] sm:$0xff]
        %v1900 = vld [vmem:[%s4 + $0x28] sm:$0xff]
        %v1901 = vld [vmem:[%s4 + $0x30] sm:$0xff]
        %v1902 = vld [vmem:[%s4 + $0x38] sm:$0xff]
        %v1903 = vld [vmem:[%s4 + $0x40] sm:$0xff]
        %v1904 = vld [vmem:[%s4 + $0x48] sm:$0xff]
        %v1905 = vld [vmem:[%s4 + $0x50] sm:$0xff]
        %v1906 = vld [vmem:[%s4 + $0x58] sm:$0xff]
        %v1907 = vld [vmem:[%s4 + $0x60] sm:$0xff]
        %v1908 = vld [vmem:[%s4 + $0x68] sm:$0xff]
        %v1909 = vld [vmem:[%s4 + $0x70] sm:$0xff]
        %v1910 = vld [vmem:[%s4 + $0x78] sm:$0xff]
        %v1911 = vld [vmem:[%s4 + $0x80] sm:$0xff]
        %v1912 = vld [vmem:[%s4 + $0x88] sm:$0xff]
        %v1913 = vld [vmem:[%s4 + $0x90] sm:$0xff]
        %v1914 = vld [vmem:[%s4 + $0x98] sm:$0xff]
        %v1915 = vld [vmem:[%s4 + $0xa0] sm:$0xff]
        %v1916 = vld [vmem:[%s4 + $0xa8] sm:$0xff]
        %v1917 = vld [vmem:[%s4 + $0xb0] sm:$0xff]
        %v1918 = vld [vmem:[%s4 + $0xb8] sm:$0xff]
        %v1919 = vld [vmem:[%s4 + $0xc0] sm:$0xff]
        %v1920 = vld [vmem:[%s4 + $0xc8] sm:$0xff]
        %v1921 = vld [vmem:[%s4 + $0xd0] sm:$0xff]
        %v1922 = vld [vmem:[%s4 + $0xd8] sm:$0xff]
        %v1923 = vld [vmem:[%s4 + $0xe0] sm:$0xff]
        %v1924 = vld [vmem:[%s4 + $0xe8] sm:$0xff]
        %v1925 = vld [vmem:[%s4 + $0xf0] sm:$0xff]
        %v1926 = vld [vmem:[%s4 + $0xf8] sm:$0xff]
        %v1928 = vsel %vm1731, %v1698, 0
        %1930 = vmatpush.msra.mxu0 0.0
        %1931 = vmatpush.msra.mxu0 0.0
        %1932 = vmatpush.msra.mxu0 0.0
        %1933 = vmatpush.msra.mxu0 0.0
        %1934 = vmatpush.msra.mxu0 0.0
        %1935 = vmatpush.msra.mxu0 0.0
        %1936 = vmatpush.msra.mxu0 0.0
        %1937 = vmatpush.msra.mxu0 0.0
        %1938 = vmatpush.msra.mxu0 0.0
        %1939 = vmatpush.msra.mxu0 0.0
        %1940 = vmatpush.msra.mxu0 0.0
        %1941 = vmatpush.msra.mxu0 0.0
        %1942 = vmatpush.msra.mxu0 %v1919
        %1943 = vmatpush.msra.mxu0 %v1911
        %1944 = vmatpush.msra.mxu0 %v1903
        %1945 = vmatpush.msra.mxu0 %v1895
        %1946 = vmatmul.f32.gmra.mxu0 %v1928
        %v1947 = vpop.f32.mrf.mxu0
        %v1948 = vadd.f32 0.0, %v1947
        %1949 = vdwg.mxu0
        %1950 = vmatpush.msra.mxu0 0.0
        %1951 = vmatpush.msra.mxu0 0.0
        %1952 = vmatpush.msra.mxu0 0.0
        %1953 = vmatpush.msra.mxu0 0.0
        %1954 = vmatpush.msra.mxu0 0.0
        %1955 = vmatpush.msra.mxu0 0.0
        %1956 = vmatpush.msra.mxu0 0.0
        %1957 = vmatpush.msra.mxu0 0.0
        %1958 = vmatpush.msra.mxu0 0.0
        %1959 = vmatpush.msra.mxu0 0.0
        %1960 = vmatpush.msra.mxu0 0.0
        %1961 = vmatpush.msra.mxu0 0.0
        %1962 = vmatpush.msra.mxu0 %v1920
        %1963 = vmatpush.msra.mxu0 %v1912
        %1964 = vmatpush.msra.mxu0 %v1904
        %1965 = vmatpush.msra.mxu0 %v1896
        %1966 = vmatmul.f32.gmra.mxu0 %v1928
        %v1967 = vpop.f32.mrf.mxu0
        %v1968 = vadd.f32 0.0, %v1967
        %1969 = vdwg.mxu0
        %1970 = vmatpush.msra.mxu0 0.0
        %1971 = vmatpush.msra.mxu0 0.0
        %1972 = vmatpush.msra.mxu0 0.0
        %1973 = vmatpush.msra.mxu0 0.0
        %1974 = vmatpush.msra.mxu0 0.0
        %1975 = vmatpush.msra.mxu0 0.0
        %1976 = vmatpush.msra.mxu0 0.0
        %1977 = vmatpush.msra.mxu0 0.0
        %1978 = vmatpush.msra.mxu0 0.0
        %1979 = vmatpush.msra.mxu0 0.0
        %1980 = vmatpush.msra.mxu0 0.0
        %1981 = vmatpush.msra.mxu0 0.0
        %1982 = vmatpush.msra.mxu0 %v1921
        %1983 = vmatpush.msra.mxu0 %v1913
        %1984 = vmatpush.msra.mxu0 %v1905
        %1985 = vmatpush.msra.mxu0 %v1897
        %1986 = vmatmul.f32.gmra.mxu0 %v1928
        %v1987 = vpop.f32.mrf.mxu0
        %v1988 = vadd.f32 0.0, %v1987
        %1989 = vdwg.mxu0
        %1990 = vmatpush.msra.mxu0 0.0
        %1991 = vmatpush.msra.mxu0 0.0
        %1992 = vmatpush.msra.mxu0 0.0
        %1993 = vmatpush.msra.mxu0 0.0
        %1994 = vmatpush.msra.mxu0 0.0
        %1995 = vmatpush.msra.mxu0 0.0
        %1996 = vmatpush.msra.mxu0 0.0
        %1997 = vmatpush.msra.mxu0 0.0
        %1998 = vmatpush.msra.mxu0 0.0
        %1999 = vmatpush.msra.mxu0 0.0
        %2000 = vmatpush.msra.mxu0 0.0
        %2001 = vmatpush.msra.mxu0 0.0
        %2002 = vmatpush.msra.mxu0 %v1922
        %2003 = vmatpush.msra.mxu0 %v1914
        %2004 = vmatpush.msra.mxu0 %v1906
        %2005 = vmatpush.msra.mxu0 %v1898
        %2006 = vmatmul.f32.gmra.mxu0 %v1928
        %v2007 = vpop.f32.mrf.mxu0
        %v2008 = vadd.f32 0.0, %v2007
        %2009 = vdwg.mxu0
        %2010 = vmatpush.msra.mxu0 0.0
        %2011 = vmatpush.msra.mxu0 0.0
        %2012 = vmatpush.msra.mxu0 0.0
        %2013 = vmatpush.msra.mxu0 0.0
        %2014 = vmatpush.msra.mxu0 0.0
        %2015 = vmatpush.msra.mxu0 0.0
        %2016 = vmatpush.msra.mxu0 0.0
        %2017 = vmatpush.msra.mxu0 0.0
        %2018 = vmatpush.msra.mxu0 0.0
        %2019 = vmatpush.msra.mxu0 0.0
        %2020 = vmatpush.msra.mxu0 0.0
        %2021 = vmatpush.msra.mxu0 0.0
        %2022 = vmatpush.msra.mxu0 %v1923
        %2023 = vmatpush.msra.mxu0 %v1915
        %2024 = vmatpush.msra.mxu0 %v1907
        %2025 = vmatpush.msra.mxu0 %v1899
        %2026 = vmatmul.f32.gmra.mxu0 %v1928
        %v2027 = vpop.f32.mrf.mxu0
        %v2028 = vadd.f32 0.0, %v2027
        %2029 = vdwg.mxu0
        %2030 = vmatpush.msra.mxu0 0.0
        %2031 = vmatpush.msra.mxu0 0.0
        %2032 = vmatpush.msra.mxu0 0.0
        %2033 = vmatpush.msra.mxu0 0.0
        %2034 = vmatpush.msra.mxu0 0.0
        %2035 = vmatpush.msra.mxu0 0.0
        %2036 = vmatpush.msra.mxu0 0.0
        %2037 = vmatpush.msra.mxu0 0.0
        %2038 = vmatpush.msra.mxu0 0.0
        %2039 = vmatpush.msra.mxu0 0.0
        %2040 = vmatpush.msra.mxu0 0.0
        %2041 = vmatpush.msra.mxu0 0.0
        %2042 = vmatpush.msra.mxu0 %v1924
        %2043 = vmatpush.msra.mxu0 %v1916
        %2044 = vmatpush.msra.mxu0 %v1908
        %2045 = vmatpush.msra.mxu0 %v1900
        %2046 = vmatmul.f32.gmra.mxu0 %v1928
        %v2047 = vpop.f32.mrf.mxu0
        %v2048 = vadd.f32 0.0, %v2047
        %2049 = vdwg.mxu0
        %2050 = vmatpush.msra.mxu0 0.0
        %2051 = vmatpush.msra.mxu0 0.0
        %2052 = vmatpush.msra.mxu0 0.0
        %2053 = vmatpush.msra.mxu0 0.0
        %2054 = vmatpush.msra.mxu0 0.0
        %2055 = vmatpush.msra.mxu0 0.0
        %2056 = vmatpush.msra.mxu0 0.0
        %2057 = vmatpush.msra.mxu0 0.0
        %2058 = vmatpush.msra.mxu0 0.0
        %2059 = vmatpush.msra.mxu0 0.0
        %2060 = vmatpush.msra.mxu0 0.0
        %2061 = vmatpush.msra.mxu0 0.0
        %2062 = vmatpush.msra.mxu0 %v1925
        %2063 = vmatpush.msra.mxu0 %v1917
        %2064 = vmatpush.msra.mxu0 %v1909
        %2065 = vmatpush.msra.mxu0 %v1901
        %2066 = vmatmul.f32.gmra.mxu0 %v1928
        %v2067 = vpop.f32.mrf.mxu0
        %v2068 = vadd.f32 0.0, %v2067
        %2069 = vdwg.mxu0
        %2070 = vmatpush.msra.mxu0 0.0
        %2071 = vmatpush.msra.mxu0 0.0
        %2072 = vmatpush.msra.mxu0 0.0
        %2073 = vmatpush.msra.mxu0 0.0
        %2074 = vmatpush.msra.mxu0 0.0
        %2075 = vmatpush.msra.mxu0 0.0
        %2076 = vmatpush.msra.mxu0 0.0
        %2077 = vmatpush.msra.mxu0 0.0
        %2078 = vmatpush.msra.mxu0 0.0
        %2079 = vmatpush.msra.mxu0 0.0
        %2080 = vmatpush.msra.mxu0 0.0
        %2081 = vmatpush.msra.mxu0 0.0
        %2082 = vmatpush.msra.mxu0 %v1926
        %2083 = vmatpush.msra.mxu0 %v1918
        %2084 = vmatpush.msra.mxu0 %v1910
        %2085 = vmatpush.msra.mxu0 %v1902
        %2086 = vmatmul.f32.gmra.mxu0 %v1928
        %v2087 = vpop.f32.mrf.mxu0
        %v2088 = vadd.f32 0.0, %v2087
        %2089 = vdwg.mxu0
        %v2090 = vmul.f32 %v1753, %v1948
        %v2091 = vmul.f32 %v1773, %v1968
        %v2092 = vmul.f32 %v1793, %v1988
        %v2093 = vmul.f32 %v1813, %v2008
        %v2094 = vmul.f32 %v1833, %v2028
        %v2095 = vmul.f32 %v1853, %v2048
        %v2096 = vmul.f32 %v1873, %v2068
        %v2097 = vmul.f32 %v1893, %v2088
        %v2098 = vmul.f32 %v1088, %v2090
        %v2099 = vmul.f32 %v1114, %v2091
        %v2100 = vmul.f32 %v1140, %v2092
        %v2101 = vmul.f32 %v1166, %v2093
        %v2102 = vmul.f32 %v1192, %v2094
        %v2103 = vmul.f32 %v1218, %v2095
        %v2104 = vmul.f32 %v1244, %v2096
        %v2105 = vmul.f32 %v1270, %v2097
        %s2106 = sld [smem:[#allocation2]]
        %s2107 = sld [smem:[#allocation2 + $0x1]]
        %v2108 = vstv %s2107
        %v2109 = vsub.f32 %v2098, %v2108
        %v2110 = vsub.f32 %v2099, %v2108
        %v2111 = vsub.f32 %v2100, %v2108
        %v2112 = vsub.f32 %v2101, %v2108
        %v2113 = vsub.f32 %v2102, %v2108
        %v2114 = vsub.f32 %v2103, %v2108
        %v2115 = vsub.f32 %v2104, %v2108
        %v2116 = vsub.f32 %v2105, %v2108
        %v2117 = vstv %s2106
        %v2118 = vmul.f32 %v2109, %v2117
        %v2119 = vmul.f32 %v2110, %v2117
        %v2120 = vmul.f32 %v2111, %v2117
        %v2121 = vmul.f32 %v2112, %v2117
        %v2122 = vmul.f32 %v2113, %v2117
        %v2123 = vmul.f32 %v2114, %v2117
        %v2124 = vmul.f32 %v2115, %v2117
        %v2125 = vmul.f32 %v2116, %v2117
        %v2126 = vrot.slane %v2118, 4
        %v2127 = vmax.f32 %v2118, %v2126
        %v2128 = vrot.slane %v2127, 2
        %v2129 = vmax.f32 %v2127, %v2128
        %v2130 = vrot.slane %v2129, 1
        %v2131 = vmax.f32 %v2129, %v2130
        %v2132 = vrot.slane %v2119, 4
        %v2133 = vmax.f32 %v2119, %v2132
        %v2134 = vrot.slane %v2133, 2
        %v2135 = vmax.f32 %v2133, %v2134
        %v2136 = vrot.slane %v2135, 1
        %v2137 = vmax.f32 %v2135, %v2136
        %v2138 = vrot.slane %v2120, 4
        %v2139 = vmax.f32 %v2120, %v2138
        %v2140 = vrot.slane %v2139, 2
        %v2141 = vmax.f32 %v2139, %v2140
        %v2142 = vrot.slane %v2141, 1
        %v2143 = vmax.f32 %v2141, %v2142
        %v2144 = vrot.slane %v2121, 4
        %v2145 = vmax.f32 %v2121, %v2144
        %v2146 = vrot.slane %v2145, 2
        %v2147 = vmax.f32 %v2145, %v2146
        %v2148 = vrot.slane %v2147, 1
        %v2149 = vmax.f32 %v2147, %v2148
        %v2150 = vrot.slane %v2122, 4
        %v2151 = vmax.f32 %v2122, %v2150
        %v2152 = vrot.slane %v2151, 2
        %v2153 = vmax.f32 %v2151, %v2152
        %v2154 = vrot.slane %v2153, 1
        %v2155 = vmax.f32 %v2153, %v2154
        %v2156 = vrot.slane %v2123, 4
        %v2157 = vmax.f32 %v2123, %v2156
        %v2158 = vrot.slane %v2157, 2
        %v2159 = vmax.f32 %v2157, %v2158
        %v2160 = vrot.slane %v2159, 1
        %v2161 = vmax.f32 %v2159, %v2160
        %v2162 = vrot.slane %v2124, 4
        %v2163 = vmax.f32 %v2124, %v2162
        %v2164 = vrot.slane %v2163, 2
        %v2165 = vmax.f32 %v2163, %v2164
        %v2166 = vrot.slane %v2165, 1
        %v2167 = vmax.f32 %v2165, %v2166
        %v2168 = vrot.slane %v2125, 4
        %v2169 = vmax.f32 %v2125, %v2168
        %v2170 = vrot.slane %v2169, 2
        %v2171 = vmax.f32 %v2169, %v2170
        %v2172 = vrot.slane %v2171, 1
        %v2173 = vmax.f32 %v2171, %v2172
        %v2174 = vsub.f32 %v2118, %v2131
        %v2175 = vsub.f32 %v2119, %v2137
        %v2176 = vsub.f32 %v2120, %v2143
        %v2177 = vsub.f32 %v2121, %v2149
        %v2178 = vsub.f32 %v2122, %v2155
        %v2179 = vsub.f32 %v2123, %v2161
        %v2180 = vsub.f32 %v2124, %v2167
        %v2181 = vsub.f32 %v2125, %v2173
        %v2182 = vmul.f32 %v2174, 1.442695
        %v2183 = vpow.pop %v2182
        %v2184 = vmul.f32 %v2175, 1.442695
        %v2185 = vpow.pop %v2184
        %v2186 = vmul.f32 %v2176, 1.442695
        %v2187 = vpow.pop %v2186
        %v2188 = vmul.f32 %v2177, 1.442695
        %v2189 = vpow.pop %v2188
        %v2190 = vmul.f32 %v2178, 1.442695
        %v2191 = vpow.pop %v2190
        %v2192 = vmul.f32 %v2179, 1.442695
        %v2193 = vpow.pop %v2192
        %v2194 = vmul.f32 %v2180, 1.442695
        %v2195 = vpow.pop %v2194
        %v2196 = vmul.f32 %v2181, 1.442695
        %v2197 = vpow.pop %v2196
        %v2198 = vrot.slane %v2183, 4
        %v2199 = vadd.f32 %v2183, %v2198
        %v2200 = vrot.slane %v2199, 2
        %v2201 = vadd.f32 %v2199, %v2200
        %v2202 = vrot.slane %v2201, 1
        %v2203 = vadd.f32 %v2201, %v2202
        %v2204 = vrot.slane %v2185, 4
        %v2205 = vadd.f32 %v2185, %v2204
        %v2206 = vrot.slane %v2205, 2
        %v2207 = vadd.f32 %v2205, %v2206
        %v2208 = vrot.slane %v2207, 1
        %v2209 = vadd.f32 %v2207, %v2208
        %v2210 = vrot.slane %v2187, 4
        %v2211 = vadd.f32 %v2187, %v2210
        %v2212 = vrot.slane %v2211, 2
        %v2213 = vadd.f32 %v2211, %v2212
        %v2214 = vrot.slane %v2213, 1
        %v2215 = vadd.f32 %v2213, %v2214
        %v2216 = vrot.slane %v2189, 4
        %v2217 = vadd.f32 %v2189, %v2216
        %v2218 = vrot.slane %v2217, 2
        %v2219 = vadd.f32 %v2217, %v2218
        %v2220 = vrot.slane %v2219, 1
        %v2221 = vadd.f32 %v2219, %v2220
        %v2222 = vrot.slane %v2191, 4
        %v2223 = vadd.f32 %v2191, %v2222
        %v2224 = vrot.slane %v2223, 2
        %v2225 = vadd.f32 %v2223, %v2224
        %v2226 = vrot.slane %v2225, 1
        %v2227 = vadd.f32 %v2225, %v2226
        %v2228 = vrot.slane %v2193, 4
        %v2229 = vadd.f32 %v2193, %v2228
        %v2230 = vrot.slane %v2229, 2
        %v2231 = vadd.f32 %v2229, %v2230
        %v2232 = vrot.slane %v2231, 1
        %v2233 = vadd.f32 %v2231, %v2232
        %v2234 = vrot.slane %v2195, 4
        %v2235 = vadd.f32 %v2195, %v2234
        %v2236 = vrot.slane %v2235, 2
        %v2237 = vadd.f32 %v2235, %v2236
        %v2238 = vrot.slane %v2237, 1
        %v2239 = vadd.f32 %v2237, %v2238
        %v2240 = vrot.slane %v2197, 4
        %v2241 = vadd.f32 %v2197, %v2240
        %v2242 = vrot.slane %v2241, 2
        %v2243 = vadd.f32 %v2241, %v2242
        %v2244 = vrot.slane %v2243, 1
        %v2245 = vadd.f32 %v2243, %v2244
        %v2246 = vrcp.pop %v2203
        %v2247 = vmul.f32 %v2203, %v2246
        %v2248 = vsub.f32 1.0, %v2247
        %v2249 = vmul.f32 %v2246, %v2248
        %v2250 = vadd.f32 %v2246, %v2249
        %vm2251 = vweird.f32 %v2203
        %vm2252 = vweird.f32 %v2246
        %vm2253 = vmor %vm2251, %vm2252
        %v2254 = vsel %vm2253, %v2246, %v2250
        %v2255 = vand.u32 2147483647, %v2203
        %vm2256 = vcmp.eq.f32.partialorder %v2255, 8.507059e+37
        %v2257 = vand.u32 %v2203, 2147483648
        %v2258 = vor.u32 1.1754944e-38, %v2257
        %v2259 = vsel %vm2256, %v2258, %v2254
        %v2260 = vmul.f32 %v2183, %v2259
        %v2261 = vrcp.pop %v2209
        %v2262 = vmul.f32 %v2209, %v2261
        %v2263 = vsub.f32 1.0, %v2262
        %v2264 = vmul.f32 %v2261, %v2263
        %v2265 = vadd.f32 %v2261, %v2264
        %vm2266 = vweird.f32 %v2209
        %vm2267 = vweird.f32 %v2261
        %vm2268 = vmor %vm2266, %vm2267
        %v2269 = vsel %vm2268, %v2261, %v2265
        %v2270 = vand.u32 2147483647, %v2209
        %vm2271 = vcmp.eq.f32.partialorder %v2270, 8.507059e+37
        %v2272 = vand.u32 %v2209, 2147483648
        %v2273 = vor.u32 1.1754944e-38, %v2272
        %v2274 = vsel %vm2271, %v2273, %v2269
        %v2275 = vmul.f32 %v2185, %v2274
        %v2276 = vrcp.pop %v2215
        %v2277 = vmul.f32 %v2215, %v2276
        %v2278 = vsub.f32 1.0, %v2277
        %v2279 = vmul.f32 %v2276, %v2278
        %v2280 = vadd.f32 %v2276, %v2279
        %vm2281 = vweird.f32 %v2215
        %vm2282 = vweird.f32 %v2276
        %vm2283 = vmor %vm2281, %vm2282
        %v2284 = vsel %vm2283, %v2276, %v2280
        %v2285 = vand.u32 2147483647, %v2215
        %vm2286 = vcmp.eq.f32.partialorder %v2285, 8.507059e+37
        %v2287 = vand.u32 %v2215, 2147483648
        %v2288 = vor.u32 1.1754944e-38, %v2287
        %v2289 = vsel %vm2286, %v2288, %v2284
        %v2290 = vmul.f32 %v2187, %v2289
        %v2291 = vrcp.pop %v2221
        %v2292 = vmul.f32 %v2221, %v2291
        %v2293 = vsub.f32 1.0, %v2292
        %v2294 = vmul.f32 %v2291, %v2293
        %v2295 = vadd.f32 %v2291, %v2294
        %vm2296 = vweird.f32 %v2221
        %vm2297 = vweird.f32 %v2291
        %vm2298 = vmor %vm2296, %vm2297
        %v2299 = vsel %vm2298, %v2291, %v2295
        %v2300 = vand.u32 2147483647, %v2221
        %vm2301 = vcmp.eq.f32.partialorder %v2300, 8.507059e+37
        %v2302 = vand.u32 %v2221, 2147483648
        %v2303 = vor.u32 1.1754944e-38, %v2302
        %v2304 = vsel %vm2301, %v2303, %v2299
        %v2305 = vmul.f32 %v2189, %v2304
        %v2306 = vrcp.pop %v2227
        %v2307 = vmul.f32 %v2227, %v2306
        %v2308 = vsub.f32 1.0, %v2307
        %v2309 = vmul.f32 %v2306, %v2308
        %v2310 = vadd.f32 %v2306, %v2309
        %vm2311 = vweird.f32 %v2227
        %vm2312 = vweird.f32 %v2306
        %vm2313 = vmor %vm2311, %vm2312
        %v2314 = vsel %vm2313, %v2306, %v2310
        %v2315 = vand.u32 2147483647, %v2227
        %vm2316 = vcmp.eq.f32.partialorder %v2315, 8.507059e+37
        %v2317 = vand.u32 %v2227, 2147483648
        %v2318 = vor.u32 1.1754944e-38, %v2317
        %v2319 = vsel %vm2316, %v2318, %v2314
        %v2320 = vmul.f32 %v2191, %v2319
        %v2321 = vrcp.pop %v2233
        %v2322 = vmul.f32 %v2233, %v2321
        %v2323 = vsub.f32 1.0, %v2322
        %v2324 = vmul.f32 %v2321, %v2323
        %v2325 = vadd.f32 %v2321, %v2324
        %vm2326 = vweird.f32 %v2233
        %vm2327 = vweird.f32 %v2321
        %vm2328 = vmor %vm2326, %vm2327
        %v2329 = vsel %vm2328, %v2321, %v2325
        %v2330 = vand.u32 2147483647, %v2233
        %vm2331 = vcmp.eq.f32.partialorder %v2330, 8.507059e+37
        %v2332 = vand.u32 %v2233, 2147483648
        %v2333 = vor.u32 1.1754944e-38, %v2332
        %v2334 = vsel %vm2331, %v2333, %v2329
        %v2335 = vmul.f32 %v2193, %v2334
        %v2336 = vrcp.pop %v2239
        %v2337 = vmul.f32 %v2239, %v2336
        %v2338 = vsub.f32 1.0, %v2337
        %v2339 = vmul.f32 %v2336, %v2338
        %v2340 = vadd.f32 %v2336, %v2339
        %vm2341 = vweird.f32 %v2239
        %vm2342 = vweird.f32 %v2336
        %vm2343 = vmor %vm2341, %vm2342
        %v2344 = vsel %vm2343, %v2336, %v2340
        %v2345 = vand.u32 2147483647, %v2239
        %vm2346 = vcmp.eq.f32.partialorder %v2345, 8.507059e+37
        %v2347 = vand.u32 %v2239, 2147483648
        %v2348 = vor.u32 1.1754944e-38, %v2347
        %v2349 = vsel %vm2346, %v2348, %v2344
        %v2350 = vmul.f32 %v2195, %v2349
        %v2351 = vrcp.pop %v2245
        %v2352 = vmul.f32 %v2245, %v2351
        %v2353 = vsub.f32 1.0, %v2352
        %v2354 = vmul.f32 %v2351, %v2353
        %v2355 = vadd.f32 %v2351, %v2354
        %vm2356 = vweird.f32 %v2245
        %vm2357 = vweird.f32 %v2351
        %vm2358 = vmor %vm2356, %vm2357
        %v2359 = vsel %vm2358, %v2351, %v2355
        %v2360 = vand.u32 2147483647, %v2245
        %vm2361 = vcmp.eq.f32.partialorder %v2360, 8.507059e+37
        %v2362 = vand.u32 %v2245, 2147483648
        %v2363 = vor.u32 1.1754944e-38, %v2362
        %v2364 = vsel %vm2361, %v2363, %v2359
        %v2365 = vmul.f32 %v2197, %v2364
        %2366 = vst [vmem:[%s427] sm:$0xff] %v2260
        %2367 = vst [vmem:[%s427 + $0x8] sm:$0xff] %v2275
        %2368 = vst [vmem:[%s427 + $0x10] sm:$0xff] %v2290
        %2369 = vst [vmem:[%s427 + $0x18] sm:$0xff] %v2305
        %2370 = vst [vmem:[%s427 + $0x20] sm:$0xff] %v2320
        %2371 = vst [vmem:[%s427 + $0x28] sm:$0xff] %v2335
        %2372 = vst [vmem:[%s427 + $0x30] sm:$0xff] %v2350
        %2373 = vst [vmem:[%s427 + $0x38] sm:$0xff] %v2365
        %p2374 = scmp.lt.s32.totalorder %s24, 1
        %s2375 = scalar_select %p2374, %s24, 1
        %s2376 = smul.addr %s2375, 8
        %s2377 = smul.addr %s2376, 8
        %s2378 = scalar_lea.vmem %s12, %s2377
        // Predicated region
        $region73: #{competitive_block_forward.4} parent=67 // pred_check
          %p2379 = pneg %p299
        $region74: #{competitive_block_forward.4} parent=67 // pred_check_branch
          %2381 = sbr.rel (%p2379) target = $region76
        $region75: #{competitive_block_forward.4} parent=67 // pred_region
          _
        $region76: #{competitive_block_forward.4} parent=67 // pred_fallthru
          _
      $region68: #{competitive_block_forward.4} parent=5 // pred_fallthru
        _
      %p2382 = scmp.le.s32.totalorder 2, %s19
      // Predicated region
      $region77: #{competitive_block_forward.4} parent=5 // pred_check
        %p2383 = pneg %p2382
      $region78: #{competitive_block_forward.4} parent=5 // pred_check_branch
        %2385 = sbr.rel (%p2383) target = $region80
      $region79: #{competitive_block_forward.4} parent=5 // pred_region
        %s2386 = ssub.s32 %s19, 2
        // Predicated region
        $region81: #{competitive_block_forward.4} parent=79 // pred_check
          %p2387 = pneg %p305
        $region82: #{competitive_block_forward.4} parent=79 // pred_check_branch
          %2389 = sbr.rel (%p2387) target = $region84
        $region83: #{competitive_block_forward.4} parent=79 // pred_region
          %p2390 = scmp.lt.s32.totalorder %s25, 1
          %s2391 = scalar_select %p2390, %s25, 1
          %s2392 = smul.addr %s2391, 8
          %s2393 = smul.addr %s2392, 8
          %s2394 = scalar_lea.vmem %s12, %s2393
        $region84: #{competitive_block_forward.4} parent=79 // pred_fallthru
          _
      $region80: #{competitive_block_forward.4} parent=5 // pred_fallthru
        _
    $region6: #{competitive_block_forward.4} parent=1 // loop_footer
      %s23 = sadd.s32 1, %s19
    $region7: #{competitive_block_forward.4} parent=1 // loop_footer_branch
      %18 = sbr.rel target = $region3
    $region8: #{competitive_block_forward.4} parent=1 // loop_exit
      _
    %2395 = vsyncpa [#allocation3], 1
    %s2396 = scalar_lea.sflag [#allocation3], 1
    %2397 = vsyncpa %s2396, 1

// kernel: competitive_block_forward.5
$region0: #{competitive_block_forward.5}
  #allocation0 [shape = 'u32[]', space=smem, size = 0x4, offset = 0x4, fixed_abs, tag = 'smem constant byte address 0x4 - core index']
  #allocation1 [shape = 'u32[72,128]{1,0:T(1,128)}', space=vmem, size = 0x9000, scoped, tag = 'internal scratch']
  %s0 = inlined_call_operand.vmem [shape: bf16[2,200,784], index: 0, kind: input, shape index: {}]
  %s1 = inlined_call_operand.vmem [shape: bf16[32,200], index: 1, kind: input, shape index: {}]
  %s2 = inlined_call_operand.vmem [shape: f32[32,1], index: 2, kind: input, shape index: {}]
  %s3 = inlined_call_operand.vmem [shape: f32[12,32], index: 3, kind: input, shape index: {}]
  %s4 = inlined_call_operand.vmem [shape: f32[12,1], index: 4, kind: input, shape index: {}]
  %s5 = inlined_call_operand.vmem [shape: f32[2,12,196], index: 5, kind: output, shape index: {}]
  %s6 = sld [smem:[#allocation0]]
  $region53: #{competitive_block_forward.5} parent=0
    _
  %s8 = ssub.s32 1, %s6
  %s9 = scalar_select 0, %s8, %s6
  loop: start=0, step=1, limit=4
  $region2: #{competitive_block_forward.5} parent=0 // loop_pre_header
    _
  $region3: #{competitive_block_forward.5} parent=0 // loop_header
    %s11 = sphi 0, %s15
    %p12 = scmp.ge.s32.totalorder %s11, 4
    %s21 = sphi 0, %s23
    %s24 = sphi 0, %s21
    %s25 = sphi 0, %s24
    %s41 = sphi 0, %s25
    %s45 = sphi 0, %s45
    %s47 = sphi 0, %s45
    %s48 = sphi 0, %s47
    %s62 = sphi 0, %s48
    %s66 = sphi 0, %s66
    %s68 = sphi 0, %s66
    %s69 = sphi 0, %s68
    %s83 = sphi 0, %s69
    %s87 = sphi 0, %s87
    %s89 = sphi 0, %s87
    %s90 = sphi 0, %s89
    %s104 = sphi 0, %s90
    %s108 = sphi 0, %s108
    %s110 = sphi 0, %s108
    %s111 = sphi 0, %s110
    %s125 = sphi 0, %s111
    %s131 = sphi 0, %s133
    %s134 = sphi 0, %s131
    %s135 = sphi 0, %s134
    %s151 = sphi 0, %s135
  $region4: #{competitive_block_forward.5} parent=0 // loop_header_branch
    %14 = sbr.rel (%p12) target = $region8
  $region5: #{competitive_block_forward.5} parent=0 // loop_body
    %s16 = ssub.s32 %s11, 1
    %s17 = ssub.s32 %s11, 2
    %s18 = sadd.s32 %s11, 1
    %s19 = ssub.s32 %s11, %s18
    %p20 = scmp.eq.s32.totalorder %s19, 0
    %s22 = sadd.s32 %s21, 1
    %s23 = scalar_select %p20, %s21, %s22
    %p26 = pneg %p20
    %p27 = scmp.eq.s32.totalorder %s11, 1
    %p28 = por %p26, %p27
    %p29 = scmp.ne.s32.totalorder %s21, %s24
    %p30 = scmp.eq.s32.totalorder %s11, 0
    %p31 = por %p29, %p30
    %p32 = scmp.ne.s32.totalorder %s21, %s24
    %p33 = scmp.eq.s32.totalorder %s16, 1
    %p34 = por %p32, %p33
    %p35 = scmp.ne.s32.totalorder %s24, %s25
    %p36 = scmp.eq.s32.totalorder %s16, 0
    %p37 = por %p35, %p36
    %p38 = scmp.ne.s32.totalorder %s24, %s25
    %p39 = scmp.eq.s32.totalorder %s17, 1
    %p40 = por %p38, %p39
    %p42 = scmp.ne.s32.totalorder %s25, %s41
    %p43 = scmp.eq.s32.totalorder %s17, 0
    %p44 = por %p42, %p43
    %s46 = sadd.s32 %s45, 1
    %p49 = scmp.eq.s32.totalorder %s11, 1
    %p50 = scmp.ne.s32.totalorder %s45, %s47
    %p51 = scmp.eq.s32.totalorder %s11, 0
    %p52 = por %p50, %p51
    %p53 = scmp.ne.s32.totalorder %s45, %s47
    %p54 = scmp.eq.s32.totalorder %s16, 1
    %p55 = por %p53, %p54
    %p56 = scmp.ne.s32.totalorder %s47, %s48
    %p57 = scmp.eq.s32.totalorder %s16, 0
    %p58 = por %p56, %p57
    %p59 = scmp.ne.s32.totalorder %s47, %s48
    %p60 = scmp.eq.s32.totalorder %s17, 1
    %p61 = por %p59, %p60
    %p63 = scmp.ne.s32.totalorder %s48, %s62
    %p64 = scmp.eq.s32.totalorder %s17, 0
    %p65 = por %p63, %p64
    %s67 = sadd.s32 %s66, 1
    %p70 = scmp.eq.s32.totalorder %s11, 1
    %p71 = scmp.ne.s32.totalorder %s66, %s68
    %p72 = scmp.eq.s32.totalorder %s11, 0
    %p73 = por %p71, %p72
    %p74 = scmp.ne.s32.totalorder %s66, %s68
    %p75 = scmp.eq.s32.totalorder %s16, 1
    %p76 = por %p74, %p75
    %p77 = scmp.ne.s32.totalorder %s68, %s69
    %p78 = scmp.eq.s32.totalorder %s16, 0
    %p79 = por %p77, %p78
    %p80 = scmp.ne.s32.totalorder %s68, %s69
    %p81 = scmp.eq.s32.totalorder %s17, 1
    %p82 = por %p80, %p81
    %p84 = scmp.ne.s32.totalorder %s69, %s83
    %p85 = scmp.eq.s32.totalorder %s17, 0
    %p86 = por %p84, %p85
    %s88 = sadd.s32 %s87, 1
    %p91 = scmp.eq.s32.totalorder %s11, 1
    %p92 = scmp.ne.s32.totalorder %s87, %s89
    %p93 = scmp.eq.s32.totalorder %s11, 0
    %p94 = por %p92, %p93
    %p95 = scmp.ne.s32.totalorder %s87, %s89
    %p96 = scmp.eq.s32.totalorder %s16, 1
    %p97 = por %p95, %p96
    %p98 = scmp.ne.s32.totalorder %s89, %s90
    %p99 = scmp.eq.s32.totalorder %s16, 0
    %p100 = por %p98, %p99
    %p101 = scmp.ne.s32.totalorder %s89, %s90
    %p102 = scmp.eq.s32.totalorder %s17, 1
    %p103 = por %p101, %p102
    %p105 = scmp.ne.s32.totalorder %s90, %s104
    %p106 = scmp.eq.s32.totalorder %s17, 0
    %p107 = por %p105, %p106
    %s109 = sadd.s32 %s108, 1
    %p112 = scmp.eq.s32.totalorder %s11, 1
    %p113 = scmp.ne.s32.totalorder %s108, %s110
    %p114 = scmp.eq.s32.totalorder %s11, 0
    %p115 = por %p113, %p114
    %p116 = scmp.ne.s32.totalorder %s108, %s110
    %p117 = scmp.eq.s32.totalorder %s16, 1
    %p118 = por %p116, %p117
    %p119 = scmp.ne.s32.totalorder %s110, %s111
    %p120 = scmp.eq.s32.totalorder %s16, 0
    %p121 = por %p119, %p120
    %p122 = scmp.ne.s32.totalorder %s110, %s111
    %p123 = scmp.eq.s32.totalorder %s17, 1
    %p124 = por %p122, %p123
    %p126 = scmp.ne.s32.totalorder %s111, %s125
    %p127 = scmp.eq.s32.totalorder %s17, 0
    %p128 = por %p126, %p127
    %s129 = ssub.s32 %s11, %s18
    %p130 = scmp.eq.s32.totalorder %s129, 0
    %s132 = sadd.s32 %s131, 1
    %s133 = scalar_select %p130, %s131, %s132
    %p136 = pneg %p130
    %p137 = scmp.eq.s32.totalorder %s11, 1
    %p138 = por %p136, %p137
    %p139 = scmp.ne.s32.totalorder %s131, %s134
    %p140 = scmp.eq.s32.totalorder %s11, 0
    %p141 = por %p139, %p140
    %p142 = scmp.ne.s32.totalorder %s131, %s134
    %p143 = scmp.eq.s32.totalorder %s16, 1
    %p144 = por %p142, %p143
    %p145 = scmp.ne.s32.totalorder %s134, %s135
    %p146 = scmp.eq.s32.totalorder %s16, 0
    %p147 = por %p145, %p146
    %p148 = scmp.ne.s32.totalorder %s134, %s135
    %p149 = scmp.eq.s32.totalorder %s17, 1
    %p150 = por %p148, %p149
    %p152 = scmp.ne.s32.totalorder %s135, %s151
    %p153 = scmp.eq.s32.totalorder %s17, 0
    %p154 = por %p152, %p153
    %p155 = scmp.le.s32.totalorder 1, %s11
    %p156 = scmp.lt.s32.totalorder %s11, 3
    %p157 = pnand %p155, %p156
    %p158 = pneg %p157
    // Predicated region
    $region9: #{competitive_block_forward.5} parent=5 // pred_check
      _
    $region10: #{competitive_block_forward.5} parent=5 // pred_check_branch
      %160 = sbr.rel (%p157) target = $region12
    $region11: #{competitive_block_forward.5} parent=5 // pred_region
      %s161 = ssub.s32 %s11, 1
      // Predicated region
      $region13: #{competitive_block_forward.5} parent=11 // pred_check
        %p162 = pneg %p58
      $region14: #{competitive_block_forward.5} parent=11 // pred_check_branch
        %164 = sbr.rel (%p162) target = $region16
      $region15: #{competitive_block_forward.5} parent=11 // pred_region
        _
      $region16: #{competitive_block_forward.5} parent=11 // pred_fallthru
        _
      // Predicated region
      $region17: #{competitive_block_forward.5} parent=11 // pred_check
        %p165 = pneg %p79
      $region18: #{competitive_block_forward.5} parent=11 // pred_check_branch
        %167 = sbr.rel (%p165) target = $region20
      $region19: #{competitive_block_forward.5} parent=11 // pred_region
        _
      $region20: #{competitive_block_forward.5} parent=11 // pred_fallthru
        _
      // Predicated region
      $region21: #{competitive_block_forward.5} parent=11 // pred_check
        %p168 = pneg %p100
      $region22: #{competitive_block_forward.5} parent=11 // pred_check_branch
        %170 = sbr.rel (%p168) target = $region24
      $region23: #{competitive_block_forward.5} parent=11 // pred_region
        _
      $region24: #{competitive_block_forward.5} parent=11 // pred_fallthru
        _
      // Predicated region
      $region25: #{competitive_block_forward.5} parent=11 // pred_check
        %p171 = pneg %p121
      $region26: #{competitive_block_forward.5} parent=11 // pred_check_branch
        %173 = sbr.rel (%p171) target = $region28
      $region27: #{competitive_block_forward.5} parent=11 // pred_region
        _
      $region28: #{competitive_block_forward.5} parent=11 // pred_fallthru
        _
    $region12: #{competitive_block_forward.5} parent=5 // pred_fallthru
      _
    %p174 = scmp.lt.s32.totalorder %s11, 2
    // Predicated region
    $region29: #{competitive_block_forward.5} parent=5 // pred_check
      %p175 = pneg %p174
    $region30: #{competitive_block_forward.5} parent=5 // pred_check_branch
      %177 = sbr.rel (%p175) target = $region32
    $region31: #{competitive_block_forward.5} parent=5 // pred_region
      // Predicated region
      $region33: #{competitive_block_forward.5} parent=31 // pred_check
        %p178 = pneg %p31
      $region34: #{competitive_block_forward.5} parent=31 // pred_check_branch
        %180 = sbr.rel (%p178) target = $region36
      $region35: #{competitive_block_forward.5} parent=31 // pred_region
        %p181 = scmp.lt.s32.totalorder %s11, 1
        %s182 = scalar_select %p181, %s11, 1
        %s183 = smul.addr %s182, 175
        %s184 = smul.addr %s183, 4
        %s185 = scalar_lea.vmem %s0, %s184
      $region36: #{competitive_block_forward.5} parent=31 // pred_fallthru
        _
    $region32: #{competitive_block_forward.5} parent=5 // pred_fallthru
      _
    %p186 = scmp.le.s32.totalorder 1, %s11
    %p187 = scmp.lt.s32.totalorder %s11, 3
    %p188 = pnand %p186, %p187
    %p189 = pneg %p188
    // Predicated region
    $region37: #{competitive_block_forward.5} parent=5 // pred_check
      _
    $region38: #{competitive_block_forward.5} parent=5 // pred_check_branch
      %191 = sbr.rel (%p188) target = $region40
    $region39: #{competitive_block_forward.5} parent=5 // pred_region
      %s192 = ssub.s32 %s11, 1
      %p193 = scmp.lt.s32.totalorder %s16, 1
      %s194 = scalar_select %p193, %s16, 1
      %s195 = smul.addr %s194, 175
      %s196 = smul.addr %s195, 4
      %s197 = scalar_lea.vmem %s0, %s196
      %p198 = pneg %p37
      %p199 = pneg %p34
      %p200 = pneg %p58
      %p201 = pneg %p55
      %p202 = pneg %p79
      %p203 = pneg %p76
      %p204 = pneg %p100
      %p205 = pneg %p97
      %p206 = pneg %p121
      %p207 = pneg %p118
      %p208 = pneg %p147
      %p209 = pneg %p144
      %p210 = scmp.lt.s32.totalorder %s16, 1
      %s211 = scalar_select %p210, %s16, 1
      %s212 = smul.addr %s211, 4
      %s213 = smul.addr %s212, 8
      %s214 = scalar_lea.vmem %s5, %s213
      %p215 = scmp.lt.s32.totalorder %s16, 1
      %s216 = scalar_select %p215, %s16, 1
      %s217 = smul.addr %s216, 175
      %s218 = smul.addr %s217, 4
      %s219 = scalar_lea.vmem %s0, %s218
      %p220 = scmp.lt.s32.totalorder %s16, 1
      %s221 = scalar_select %p220, %s16, 1
      %s222 = smul.addr %s221, 4
      %s223 = smul.addr %s222, 8
      %s224 = scalar_lea.vmem %s5, %s223
      %v226 = vld [vmem:[%s1] sm:$0xff]
      %v227 = vld [vmem:[%s1 + $0x8] sm:$0xff]
      %v228 = vld [vmem:[%s1 + $0x10] sm:$0xff]
      %v229 = vld [vmem:[%s1 + $0x18] sm:$0xff]
      %v230 = vld [vmem:[%s219] sm:$0xff]
      %v231 = vld [vmem:[%s219 + $0x8] sm:$0xff]
      %v232 = vld [vmem:[%s219 + $0x10] sm:$0xff]
      %v233 = vld [vmem:[%s219 + $0x18] sm:$0xf]
      %v234 = vld [vmem:[%s219 + $0x1c] sm:$0xff]
      %v235 = vld [vmem:[%s219 + $0x24] sm:$0xff]
      %v236 = vld [vmem:[%s219 + $0x2c] sm:$0xff]
      %v237 = vld [vmem:[%s219 + $0x34] sm:$0xf]
      %v238 = vld [vmem:[%s219 + $0x38] sm:$0xff]
      %v239 = vld [vmem:[%s219 + $0x40] sm:$0xff]
      %v240 = vld [vmem:[%s219 + $0x48] sm:$0xff]
      %v241 = vld [vmem:[%s219 + $0x50] sm:$0xf]
      %v242 = vld [vmem:[%s219 + $0x54] sm:$0xff]
      %v243 = vld [vmem:[%s219 + $0x5c] sm:$0xff]
      %v244 = vld [vmem:[%s219 + $0x64] sm:$0xff]
      %v245 = vld [vmem:[%s219 + $0x6c] sm:$0xf]
      %v246 = vld [vmem:[%s219 + $0x70] sm:$0xff]
      %v247 = vld [vmem:[%s219 + $0x78] sm:$0xff]
      %v248 = vld [vmem:[%s219 + $0x80] sm:$0xff]
      %v249 = vld [vmem:[%s219 + $0x88] sm:$0xf]
      %v250 = vld [vmem:[%s219 + $0x8c] sm:$0xff]
      %v251 = vld [vmem:[%s219 + $0x94] sm:$0xff]
      %v252 = vld [vmem:[%s219 + $0x9c] sm:$0xff]
      %v253 = vld [vmem:[%s219 + $0xa4] sm:$0xf]
      %v254 = vld [vmem:[%s219 + $0xa8] sm:$0xff]
      %v255 = vld [vmem:[%s219 + $0xb0] sm:$0xff]
      %v256 = vld [vmem:[%s219 + $0xb8] sm:$0xff]
      %v257 = vld [vmem:[%s219 + $0xc0] sm:$0xf]
      %v258 = vld [vmem:[%s219 + $0xc4] sm:$0xff]
      %v259 = vld [vmem:[%s219 + $0xcc] sm:$0xff]
      %v260 = vld [vmem:[%s219 + $0xd4] sm:$0xff]
      %v261 = vld [vmem:[%s219 + $0xdc] sm:$0xf]
      %v262 = vld [vmem:[%s219 + $0xe0] sm:$0xff]
      %v263 = vld [vmem:[%s219 + $0xe8] sm:$0xff]
      %v264 = vld [vmem:[%s219 + $0xf0] sm:$0xff]
      %v265 = vld [vmem:[%s219 + $0xf8] sm:$0xf]
      %v266 = vld [vmem:[%s219 + $0xfc] sm:$0xff]
      %v267 = vld [vmem:[%s219 + $0x104] sm:$0xff]
      %v268 = vld [vmem:[%s219 + $0x10c] sm:$0xff]
      %v269 = vld [vmem:[%s219 + $0x114] sm:$0xf]
      %v270 = vld [vmem:[%s219 + $0x118] sm:$0xff]
      %v271 = vld [vmem:[%s219 + $0x120] sm:$0xff]
      %v272 = vld [vmem:[%s219 + $0x128] sm:$0xff]
      %v273 = vld [vmem:[%s219 + $0x130] sm:$0xf]
      %v274 = vld [vmem:[%s219 + $0x134] sm:$0xff]
      %v275 = vld [vmem:[%s219 + $0x13c] sm:$0xff]
      %v276 = vld [vmem:[%s219 + $0x144] sm:$0xff]
      %v277 = vld [vmem:[%s219 + $0x14c] sm:$0xf]
      %v278 = vld [vmem:[%s219 + $0x150] sm:$0xff]
      %v279 = vld [vmem:[%s219 + $0x158] sm:$0xff]
      %v280 = vld [vmem:[%s219 + $0x160] sm:$0xff]
      %v281 = vld [vmem:[%s219 + $0x168] sm:$0xf]
      %v282 = vld [vmem:[%s219 + $0x16c] sm:$0xff]
      %v283 = vld [vmem:[%s219 + $0x174] sm:$0xff]
      %v284 = vld [vmem:[%s219 + $0x17c] sm:$0xff]
      %v285 = vld [vmem:[%s219 + $0x184] sm:$0xf]
      %v286 = vld [vmem:[%s219 + $0x188] sm:$0xff]
      %v287 = vld [vmem:[%s219 + $0x190] sm:$0xff]
      %v288 = vld [vmem:[%s219 + $0x198] sm:$0xff]
      %v289 = vld [vmem:[%s219 + $0x1a0] sm:$0xf]
      %v290 = vld [vmem:[%s219 + $0x1a4] sm:$0xff]
      %v291 = vld [vmem:[%s219 + $0x1ac] sm:$0xff]
      %v292 = vld [vmem:[%s219 + $0x1b4] sm:$0xff]
      %v293 = vld [vmem:[%s219 + $0x1bc] sm:$0xf]
      %v294 = vld [vmem:[%s219 + $0x1c0] sm:$0xff]
      %v295 = vld [vmem:[%s219 + $0x1c8] sm:$0xff]
      %v296 = vld [vmem:[%s219 + $0x1d0] sm:$0xff]
      %v297 = vld [vmem:[%s219 + $0x1d8] sm:$0xf]
      %v298 = vld [vmem:[%s219 + $0x1dc] sm:$0xff]
      %v299 = vld [vmem:[%s219 + $0x1e4] sm:$0xff]
      %v300 = vld [vmem:[%s219 + $0x1ec] sm:$0xff]
      %v301 = vld [vmem:[%s219 + $0x1f4] sm:$0xf]
      %v302 = vld [vmem:[%s219 + $0x1f8] sm:$0xff]
      %v303 = vld [vmem:[%s219 + $0x200] sm:$0xff]
      %v304 = vld [vmem:[%s219 + $0x208] sm:$0xff]
      %v305 = vld [vmem:[%s219 + $0x210] sm:$0xf]
      %v306 = vld [vmem:[%s219 + $0x214] sm:$0xff]
      %v307 = vld [vmem:[%s219 + $0x21c] sm:$0xff]
      %v308 = vld [vmem:[%s219 + $0x224] sm:$0xff]
      %v309 = vld [vmem:[%s219 + $0x22c] sm:$0xf]
      %v310 = vld [vmem:[%s219 + $0x230] sm:$0xff]
      %v311 = vld [vmem:[%s219 + $0x238] sm:$0xff]
      %v312 = vld [vmem:[%s219 + $0x240] sm:$0xff]
      %v313 = vld [vmem:[%s219 + $0x248] sm:$0xf]
      %v314 = vld [vmem:[%s219 + $0x24c] sm:$0xff]
      %v315 = vld [vmem:[%s219 + $0x254] sm:$0xff]
      %v316 = vld [vmem:[%s219 + $0x25c] sm:$0xff]
      %v317 = vld [vmem:[%s219 + $0x264] sm:$0xf]
      %v318 = vld [vmem:[%s219 + $0x268] sm:$0xff]
      %v319 = vld [vmem:[%s219 + $0x270] sm:$0xff]
      %v320 = vld [vmem:[%s219 + $0x278] sm:$0xff]
      %v321 = vld [vmem:[%s219 + $0x280] sm:$0xf]
      %v322 = vld [vmem:[%s219 + $0x284] sm:$0xff]
      %v323 = vld [vmem:[%s219 + $0x28c] sm:$0xff]
      %v324 = vld [vmem:[%s219 + $0x294] sm:$0xff]
      %v325 = vld [vmem:[%s219 + $0x29c] sm:$0xf]
      %v326 = vld [vmem:[%s219 + $0x2a0] sm:$0xff]
      %v327 = vld [vmem:[%s219 + $0x2a8] sm:$0xff]
      %v328 = vld [vmem:[%s219 + $0x2b0] sm:$0xff]
      %v329 = vld [vmem:[%s219 + $0x2b8] sm:$0xf]
      %v330 = vld [vmem:[%s2] sm:$0xff]
      %v331 = vld [vmem:[%s2 + $0x8] sm:$0xff]
      %v332 = vld [vmem:[%s2 + $0x10] sm:$0xff]
      %v333 = vld [vmem:[%s2 + $0x18] sm:$0xff]
      %335 = vset.pattern.permute.xlu0 0
      %336 = vperm.xlu0 %335, %v330
      %v337 = vpop.permute.xlu0 %336
      %340 = vset.pattern.permute.xlu0 0
      %341 = vperm.xlu0 %340, %v331
      %v342 = vpop.permute.xlu0 %341
      %345 = vset.pattern.permute.xlu0 0
      %346 = vperm.xlu0 %345, %v332
      %v347 = vpop.permute.xlu0 %346
      %350 = vset.pattern.permute.xlu0 0
      %351 = vperm.xlu0 %350, %v333
      %v352 = vpop.permute.xlu0 %351
      %v358 = vunpack.c.l.b16 %v226
      %v359 = vunpack.c.h.b16 %v226
      %v360 = vunpack.c.l.b16 %v227
      %v361 = vunpack.c.h.b16 %v227
      %v362 = vunpack.c.l.b16 %v228
      %v363 = vunpack.c.h.b16 %v228
      %v364 = vunpack.c.l.b16 %v229
      %v365 = vunpack.c.h.b16 %v229
      %v366 = vpack.c.b16 %v360, %v358
      %v367 = vpack.c.b16 %v361, %v359
      %v368 = vpack.c.b16 %v364, %v362
      %v369 = vpack.c.b16 %v365, %v363
      %v472 = vunpack.c.l.b16 %v230
      %v473 = vunpack.c.h.b16 %v230
      %v474 = vunpack.c.l.b16 %v231
      %v475 = vunpack.c.h.b16 %v231
      %v476 = vunpack.c.l.b16 %v232
      %v477 = vunpack.c.h.b16 %v232
      %v478 = vunpack.c.l.b16 %v233
      %v479 = vunpack.c.l.b16 %v234
      %v480 = vunpack.c.h.b16 %v234
      %v481 = vunpack.c.l.b16 %v235
      %v482 = vunpack.c.h.b16 %v235
      %v483 = vunpack.c.l.b16 %v236
      %v484 = vunpack.c.h.b16 %v236
      %v485 = vunpack.c.l.b16 %v237
      %v486 = vunpack.c.l.b16 %v238
      %v487 = vunpack.c.h.b16 %v238
      %v488 = vunpack.c.l.b16 %v239
      %v489 = vunpack.c.h.b16 %v239
      %v490 = vunpack.c.l.b16 %v240
      %v491 = vunpack.c.h.b16 %v240
      %v492 = vunpack.c.l.b16 %v241
      %v493 = vunpack.c.l.b16 %v242
      %v494 = vunpack.c.h.b16 %v242
      %v495 = vunpack.c.l.b16 %v243
      %v496 = vunpack.c.h.b16 %v243
      %v497 = vunpack.c.l.b16 %v244
      %v498 = vunpack.c.h.b16 %v244
      %v499 = vunpack.c.l.b16 %v245
      %v500 = vunpack.c.l.b16 %v246
      %v501 = vunpack.c.h.b16 %v246
      %v502 = vunpack.c.l.b16 %v247
      %v503 = vunpack.c.h.b16 %v247
      %v504 = vunpack.c.l.b16 %v248
      %v505 = vunpack.c.h.b16 %v248
      %v506 = vunpack.c.l.b16 %v249
      %v507 = vunpack.c.l.b16 %v250
      %v508 = vunpack.c.h.b16 %v250
      %v509 = vunpack.c.l.b16 %v251
      %v510 = vunpack.c.h.b16 %v251
      %v511 = vunpack.c.l.b16 %v252
      %v512 = vunpack.c.h.b16 %v252
      %v513 = vunpack.c.l.b16 %v253
      %v514 = vunpack.c.l.b16 %v254
      %v515 = vunpack.c.h.b16 %v254
      %v516 = vunpack.c.l.b16 %v255
      %v517 = vunpack.c.h.b16 %v255
      %v518 = vunpack.c.l.b16 %v256
      %v519 = vunpack.c.h.b16 %v256
      %v520 = vunpack.c.l.b16 %v257
      %v521 = vunpack.c.l.b16 %v258
      %v522 = vunpack.c.h.b16 %v258
      %v523 = vunpack.c.l.b16 %v259
      %v524 = vunpack.c.h.b16 %v259
      %v525 = vunpack.c.l.b16 %v260
      %v526 = vunpack.c.h.b16 %v260
      %v527 = vunpack.c.l.b16 %v261
      %v528 = vunpack.c.l.b16 %v262
      %v529 = vunpack.c.h.b16 %v262
      %v530 = vunpack.c.l.b16 %v263
      %v531 = vunpack.c.h.b16 %v263
      %v532 = vunpack.c.l.b16 %v264
      %v533 = vunpack.c.h.b16 %v264
      %v534 = vunpack.c.l.b16 %v265
      %v535 = vunpack.c.l.b16 %v266
      %v536 = vunpack.c.h.b16 %v266
      %v537 = vunpack.c.l.b16 %v267
      %v538 = vunpack.c.h.b16 %v267
      %v539 = vunpack.c.l.b16 %v268
      %v540 = vunpack.c.h.b16 %v268
      %v541 = vunpack.c.l.b16 %v269
      %v542 = vunpack.c.l.b16 %v270
      %v543 = vunpack.c.h.b16 %v270
      %v544 = vunpack.c.l.b16 %v271
      %v545 = vunpack.c.h.b16 %v271
      %v546 = vunpack.c.l.b16 %v272
      %v547 = vunpack.c.h.b16 %v272
      %v548 = vunpack.c.l.b16 %v273
      %v549 = vunpack.c.l.b16 %v274
      %v550 = vunpack.c.h.b16 %v274
      %v551 = vunpack.c.l.b16 %v275
      %v552 = vunpack.c.h.b16 %v275
      %v553 = vunpack.c.l.b16 %v276
      %v554 = vunpack.c.h.b16 %v276
      %v555 = vunpack.c.l.b16 %v277
      %v556 = vunpack.c.l.b16 %v278
      %v557 = vunpack.c.h.b16 %v278
      %v558 = vunpack.c.l.b16 %v279
      %v559 = vunpack.c.h.b16 %v279
      %v560 = vunpack.c.l.b16 %v280
      %v561 = vunpack.c.h.b16 %v280
      %v562 = vunpack.c.l.b16 %v281
      %v563 = vunpack.c.l.b16 %v282
      %v564 = vunpack.c.h.b16 %v282
      %v565 = vunpack.c.l.b16 %v283
      %v566 = vunpack.c.h.b16 %v283
      %v567 = vunpack.c.l.b16 %v284
      %v568 = vunpack.c.h.b16 %v284
      %v569 = vunpack.c.l.b16 %v285
      %v570 = vunpack.c.l.b16 %v286
      %v571 = vunpack.c.h.b16 %v286
      %v572 = vunpack.c.l.b16 %v287
      %v573 = vunpack.c.h.b16 %v287
      %v574 = vunpack.c.l.b16 %v288
      %v575 = vunpack.c.h.b16 %v288
      %v576 = vunpack.c.l.b16 %v289
      %v577 = vunpack.c.l.b16 %v290
      %v578 = vunpack.c.h.b16 %v290
      %v579 = vunpack.c.l.b16 %v291
      %v580 = vunpack.c.h.b16 %v291
      %v581 = vunpack.c.l.b16 %v292
      %v582 = vunpack.c.h.b16 %v292
      %v583 = vunpack.c.l.b16 %v293
      %v584 = vunpack.c.l.b16 %v294
      %v585 = vunpack.c.h.b16 %v294
      %v586 = vunpack.c.l.b16 %v295
      %v587 = vunpack.c.h.b16 %v295
      %v588 = vunpack.c.l.b16 %v296
      %v589 = vunpack.c.h.b16 %v296
      %v590 = vunpack.c.l.b16 %v297
      %v591 = vunpack.c.l.b16 %v298
      %v592 = vunpack.c.h.b16 %v298
      %v593 = vunpack.c.l.b16 %v299
      %v594 = vunpack.c.h.b16 %v299
      %v595 = vunpack.c.l.b16 %v300
      %v596 = vunpack.c.h.b16 %v300
      %v597 = vunpack.c.l.b16 %v301
      %v598 = vunpack.c.l.b16 %v302
      %v599 = vunpack.c.h.b16 %v302
      %v600 = vunpack.c.l.b16 %v303
      %v601 = vunpack.c.h.b16 %v303
      %v602 = vunpack.c.l.b16 %v304
      %v603 = vunpack.c.h.b16 %v304
      %v604 = vunpack.c.l.b16 %v305
      %v605 = vunpack.c.l.b16 %v306
      %v606 = vunpack.c.h.b16 %v306
      %v607 = vunpack.c.l.b16 %v307
      %v608 = vunpack.c.h.b16 %v307
      %v609 = vunpack.c.l.b16 %v308
      %v610 = vunpack.c.h.b16 %v308
      %v611 = vunpack.c.l.b16 %v309
      %v612 = vunpack.c.l.b16 %v310
      %v613 = vunpack.c.h.b16 %v310
      %v614 = vunpack.c.l.b16 %v311
      %v615 = vunpack.c.h.b16 %v311
      %v616 = vunpack.c.l.b16 %v312
      %v617 = vunpack.c.h.b16 %v312
      %v618 = vunpack.c.l.b16 %v313
      %v619 = vunpack.c.l.b16 %v314
      %v620 = vunpack.c.h.b16 %v314
      %v621 = vunpack.c.l.b16 %v315
      %v622 = vunpack.c.h.b16 %v315
      %v623 = vunpack.c.l.b16 %v316
      %v624 = vunpack.c.h.b16 %v316
      %v625 = vunpack.c.l.b16 %v317
      %v626 = vunpack.c.l.b16 %v318
      %v627 = vunpack.c.h.b16 %v318
      %v628 = vunpack.c.l.b16 %v319
      %v629 = vunpack.c.h.b16 %v319
      %v630 = vunpack.c.l.b16 %v320
      %v631 = vunpack.c.h.b16 %v320
      %v632 = vunpack.c.l.b16 %v321
      %v633 = vunpack.c.l.b16 %v322
      %v634 = vunpack.c.h.b16 %v322
      %v635 = vunpack.c.l.b16 %v323
      %v636 = vunpack.c.h.b16 %v323
      %v637 = vunpack.c.l.b16 %v324
      %v638 = vunpack.c.h.b16 %v324
      %v639 = vunpack.c.l.b16 %v325
      %v640 = vunpack.c.l.b16 %v326
      %v641 = vunpack.c.h.b16 %v326
      %v642 = vunpack.c.l.b16 %v327
      %v643 = vunpack.c.h.b16 %v327
      %v644 = vunpack.c.l.b16 %v328
      %v645 = vunpack.c.h.b16 %v328
      %v646 = vunpack.c.l.b16 %v329
      %v647 = vpack.c.b16 %v479, %v472
      %v648 = vpack.c.b16 %v480, %v473
      %v649 = vpack.c.b16 %v481, %v474
      %v650 = vpack.c.b16 %v482, %v475
      %v651 = vpack.c.b16 %v483, %v476
      %v652 = vpack.c.b16 %v484, %v477
      %v653 = vpack.c.b16 %v485, %v478
      %v654 = vpack.c.b16 %v493, %v486
      %v655 = vpack.c.b16 %v494, %v487
      %v656 = vpack.c.b16 %v495, %v488
      %v657 = vpack.c.b16 %v496, %v489
      %v658 = vpack.c.b16 %v497, %v490
      %v659 = vpack.c.b16 %v498, %v491
      %v660 = vpack.c.b16 %v499, %v492
      %v661 = vpack.c.b16 %v507, %v500
      %v662 = vpack.c.b16 %v508, %v501
      %v663 = vpack.c.b16 %v509, %v502
      %v664 = vpack.c.b16 %v510, %v503
      %v665 = vpack.c.b16 %v511, %v504
      %v666 = vpack.c.b16 %v512, %v505
      %v667 = vpack.c.b16 %v513, %v506
      %v668 = vpack.c.b16 %v521, %v514
      %v669 = vpack.c.b16 %v522, %v515
      %v670 = vpack.c.b16 %v523, %v516
      %v671 = vpack.c.b16 %v524, %v517
      %v672 = vpack.c.b16 %v525, %v518
      %v673 = vpack.c.b16 %v526, %v519
      %v674 = vpack.c.b16 %v527, %v520
      %v675 = vpack.c.b16 %v535, %v528
      %v676 = vpack.c.b16 %v536, %v529
      %v677 = vpack.c.b16 %v537, %v530
      %v678 = vpack.c.b16 %v538, %v531
      %v679 = vpack.c.b16 %v539, %v532
      %v680 = vpack.c.b16 %v540, %v533
      %v681 = vpack.c.b16 %v541, %v534
      %v682 = vpack.c.b16 %v549, %v542
      %v683 = vpack.c.b16 %v550, %v543
      %v684 = vpack.c.b16 %v551, %v544
      %v685 = vpack.c.b16 %v552, %v545
      %v686 = vpack.c.b16 %v553, %v546
      %v687 = vpack.c.b16 %v554, %v547
      %v688 = vpack.c.b16 %v555, %v548
      %v689 = vpack.c.b16 %v563, %v556
      %v690 = vpack.c.b16 %v564, %v557
      %v691 = vpack.c.b16 %v565, %v558
      %v692 = vpack.c.b16 %v566, %v559
      %v693 = vpack.c.b16 %v567, %v560
      %v694 = vpack.c.b16 %v568, %v561
      %v695 = vpack.c.b16 %v569, %v562
      %v696 = vpack.c.b16 %v577, %v570
      %v697 = vpack.c.b16 %v578, %v571
      %v698 = vpack.c.b16 %v579, %v572
      %v699 = vpack.c.b16 %v580, %v573
      %v700 = vpack.c.b16 %v581, %v574
      %v701 = vpack.c.b16 %v582, %v575
      %v702 = vpack.c.b16 %v583, %v576
      %v703 = vpack.c.b16 %v591, %v584
      %v704 = vpack.c.b16 %v592, %v585
      %v705 = vpack.c.b16 %v593, %v586
      %v706 = vpack.c.b16 %v594, %v587
      %v707 = vpack.c.b16 %v595, %v588
      %v708 = vpack.c.b16 %v596, %v589
      %v709 = vpack.c.b16 %v597, %v590
      %v710 = vpack.c.b16 %v605, %v598
      %v711 = vpack.c.b16 %v606, %v599
      %v712 = vpack.c.b16 %v607, %v600
      %v713 = vpack.c.b16 %v608, %v601
      %v714 = vpack.c.b16 %v609, %v602
      %v715 = vpack.c.b16 %v610, %v603
      %v716 = vpack.c.b16 %v611, %v604
      %v717 = vpack.c.b16 %v619, %v612
      %v718 = vpack.c.b16 %v620, %v613
      %v719 = vpack.c.b16 %v621, %v614
      %v720 = vpack.c.b16 %v622, %v615
      %v721 = vpack.c.b16 %v623, %v616
      %v722 = vpack.c.b16 %v624, %v617
      %v723 = vpack.c.b16 %v625, %v618
      %v724 = vpack.c.b16 %v633, %v626
      %v725 = vpack.c.b16 %v634, %v627
      %v726 = vpack.c.b16 %v635, %v628
      %v727 = vpack.c.b16 %v636, %v629
      %v728 = vpack.c.b16 %v637, %v630
      %v729 = vpack.c.b16 %v638, %v631
      %v730 = vpack.c.b16 %v639, %v632
      %v731 = vpack.c.b16 %v640, %v640
      %v732 = vpack.c.b16 %v641, %v641
      %v733 = vpack.c.b16 %v642, %v642
      %v734 = vpack.c.b16 %v643, %v643
      %v735 = vpack.c.b16 %v644, %v644
      %v736 = vpack.c.b16 %v645, %v645
      %v737 = vpack.c.b16 %v646, %v646
      %vm822 = vcmask 588800
      %v824 = vsel %vm822, %v367, 0
      %v827 = vsel %vm822, %v369, 0
      %vm829 = vcmask 1043456
      %v831 = vsel %vm829, %v731, 0
      %v834 = vsel %vm829, %v732, 0
      %v837 = vsel %vm829, %v733, 0
      %v840 = vsel %vm829, %v734, 0
      %v843 = vsel %vm829, %v735, 0
      %v846 = vsel %vm829, %v736, 0
      %v849 = vsel %vm829, %v737, 0
      %851 = vmatpush.bf16.msra.mxu0 %v696
      %852 = vmatpush.bf16.msra.mxu0 %v689
      %853 = vmatpush.bf16.msra.mxu0 %v682
      %854 = vmatpush.bf16.msra.mxu0 %v675
      %855 = vmatpush.bf16.msra.mxu0 %v668
      %856 = vmatpush.bf16.msra.mxu0 %v661
      %857 = vmatpush.bf16.msra.mxu0 %v654
      %858 = vmatpush.bf16.msra.mxu0 %v647
      %859 = vmatmul.bf16.gmra.mxu0 %v366
      %v860 = vpop.f32.mrf.mxu0
      %v861 = vadd.f32 %v337, %v860
      %v862 = vpop.f32.mrf.mxu0
      %v863 = vadd.f32 %v342, %v862
      %864 = vmatmul.bf16.gmra.mxu0 %v368
      %v865 = vpop.f32.mrf.mxu0
      %v866 = vadd.f32 %v347, %v865
      %v867 = vpop.f32.mrf.mxu0
      %v868 = vadd.f32 %v352, %v867
      %869 = vdwg.mxu0
      %870 = vmatpush.bf16.msra.mxu0 0
      %871 = vmatpush.bf16.msra.mxu0 0
      %872 = vmatpush.bf16.msra.mxu0 0
      %873 = vmatpush.bf16.msra.mxu0 %v831
      %874 = vmatpush.bf16.msra.mxu0 %v724
      %875 = vmatpush.bf16.msra.mxu0 %v717
      %876 = vmatpush.bf16.msra.mxu0 %v710
      %877 = vmatpush.bf16.msra.mxu0 %v703
      %878 = vmatmul.bf16.gmra.mxu0 %v824
      %v879 = vpop.f32.mrf.mxu0
      %v880 = vadd.f32 %v861, %v879
      %v881 = vpop.f32.mrf.mxu0
      %v882 = vadd.f32 %v863, %v881
      %883 = vmatmul.bf16.gmra.mxu0 %v827
      %v884 = vpop.f32.mrf.mxu0
      %v885 = vadd.f32 %v866, %v884
      %v886 = vpop.f32.mrf.mxu0
      %v887 = vadd.f32 %v868, %v886
      %888 = vdwg.mxu0
      %889 = vmatpush.bf16.msra.mxu0 %v697
      %890 = vmatpush.bf16.msra.mxu0 %v690
      %891 = vmatpush.bf16.msra.mxu0 %v683
      %892 = vmatpush.bf16.msra.mxu0 %v676
      %893 = vmatpush.bf16.msra.mxu0 %v669
      %894 = vmatpush.bf16.msra.mxu0 %v662
      %895 = vmatpush.bf16.msra.mxu0 %v655
      %896 = vmatpush.bf16.msra.mxu0 %v648
      %897 = vmatmul.bf16.gmra.mxu0 %v366
      %v898 = vpop.f32.mrf.mxu0
      %v899 = vadd.f32 %v337, %v898
      %v900 = vpop.f32.mrf.mxu0
      %v901 = vadd.f32 %v342, %v900
      %902 = vmatmul.bf16.gmra.mxu0 %v368
      %v903 = vpop.f32.mrf.mxu0
      %v904 = vadd.f32 %v347, %v903
      %v905 = vpop.f32.mrf.mxu0
      %v906 = vadd.f32 %v352, %v905
      %907 = vdwg.mxu0
      %908 = vmatpush.bf16.msra.mxu0 0
      %909 = vmatpush.bf16.msra.mxu0 0
      %910 = vmatpush.bf16.msra.mxu0 0
      %911 = vmatpush.bf16.msra.mxu0 %v834
      %912 = vmatpush.bf16.msra.mxu0 %v725
      %913 = vmatpush.bf16.msra.mxu0 %v718
      %914 = vmatpush.bf16.msra.mxu0 %v711
      %915 = vmatpush.bf16.msra.mxu0 %v704
      %916 = vmatmul.bf16.gmra.mxu0 %v824
      %v917 = vpop.f32.mrf.mxu0
      %v918 = vadd.f32 %v899, %v917
      %v919 = vpop.f32.mrf.mxu0
      %v920 = vadd.f32 %v901, %v919
      %921 = vmatmul.bf16.gmra.mxu0 %v827
      %v922 = vpop.f32.mrf.mxu0
      %v923 = vadd.f32 %v904, %v922
      %v924 = vpop.f32.mrf.mxu0
      %v925 = vadd.f32 %v906, %v924
      %926 = vdwg.mxu0
      %927 = vmatpush.bf16.msra.mxu0 %v698
      %928 = vmatpush.bf16.msra.mxu0 %v691
      %929 = vmatpush.bf16.msra.mxu0 %v684
      %930 = vmatpush.bf16.msra.mxu0 %v677
      %931 = vmatpush.bf16.msra.mxu0 %v670
      %932 = vmatpush.bf16.msra.mxu0 %v663
      %933 = vmatpush.bf16.msra.mxu0 %v656
      %934 = vmatpush.bf16.msra.mxu0 %v649
      %935 = vmatmul.bf16.gmra.mxu0 %v366
      %v936 = vpop.f32.mrf.mxu0
      %v937 = vadd.f32 %v337, %v936
      %v938 = vpop.f32.mrf.mxu0
      %v939 = vadd.f32 %v342, %v938
      %940 = vmatmul.bf16.gmra.mxu0 %v368
      %v941 = vpop.f32.mrf.mxu0
      %v942 = vadd.f32 %v347, %v941
      %v943 = vpop.f32.mrf.mxu0
      %v944 = vadd.f32 %v352, %v943
      %945 = vdwg.mxu0
      %946 = vmatpush.bf16.msra.mxu0 0
      %947 = vmatpush.bf16.msra.mxu0 0
      %948 = vmatpush.bf16.msra.mxu0 0
      %949 = vmatpush.bf16.msra.mxu0 %v837
      %950 = vmatpush.bf16.msra.mxu0 %v726
      %951 = vmatpush.bf16.msra.mxu0 %v719
      %952 = vmatpush.bf16.msra.mxu0 %v712
      %953 = vmatpush.bf16.msra.mxu0 %v705
      %954 = vmatmul.bf16.gmra.mxu0 %v824
      %v955 = vpop.f32.mrf.mxu0
      %v956 = vadd.f32 %v937, %v955
      %v957 = vpop.f32.mrf.mxu0
      %v958 = vadd.f32 %v939, %v957
      %959 = vmatmul.bf16.gmra.mxu0 %v827
      %v960 = vpop.f32.mrf.mxu0
      %v961 = vadd.f32 %v942, %v960
      %v962 = vpop.f32.mrf.mxu0
      %v963 = vadd.f32 %v944, %v962
      %964 = vdwg.mxu0
      %965 = vmatpush.bf16.msra.mxu0 %v699
      %966 = vmatpush.bf16.msra.mxu0 %v692
      %967 = vmatpush.bf16.msra.mxu0 %v685
      %968 = vmatpush.bf16.msra.mxu0 %v678
      %969 = vmatpush.bf16.msra.mxu0 %v671
      %970 = vmatpush.bf16.msra.mxu0 %v664
      %971 = vmatpush.bf16.msra.mxu0 %v657
      %972 = vmatpush.bf16.msra.mxu0 %v650
      %973 = vmatmul.bf16.gmra.mxu0 %v366
      %v974 = vpop.f32.mrf.mxu0
      %v975 = vadd.f32 %v337, %v974
      %v976 = vpop.f32.mrf.mxu0
      %v977 = vadd.f32 %v342, %v976
      %978 = vmatmul.bf16.gmra.mxu0 %v368
      %v979 = vpop.f32.mrf.mxu0
      %v980 = vadd.f32 %v347, %v979
      %v981 = vpop.f32.mrf.mxu0
      %v982 = vadd.f32 %v352, %v981
      %983 = vdwg.mxu0
      %984 = vmatpush.bf16.msra.mxu0 0
      %985 = vmatpush.bf16.msra.mxu0 0
      %986 = vmatpush.bf16.msra.mxu0 0
      %987 = vmatpush.bf16.msra.mxu0 %v840
      %988 = vmatpush.bf16.msra.mxu0 %v727
      %989 = vmatpush.bf16.msra.mxu0 %v720
      %990 = vmatpush.bf16.msra.mxu0 %v713
      %991 = vmatpush.bf16.msra.mxu0 %v706
      %992 = vmatmul.bf16.gmra.mxu0 %v824
      %v993 = vpop.f32.mrf.mxu0
      %v994 = vadd.f32 %v975, %v993
      %v995 = vpop.f32.mrf.mxu0
      %v996 = vadd.f32 %v977, %v995
      %997 = vmatmul.bf16.gmra.mxu0 %v827
      %v998 = vpop.f32.mrf.mxu0
      %v999 = vadd.f32 %v980, %v998
      %v1000 = vpop.f32.mrf.mxu0
      %v1001 = vadd.f32 %v982, %v1000
      %1002 = vdwg.mxu0
      %1003 = vmatpush.bf16.msra.mxu0 %v700
      %1004 = vmatpush.bf16.msra.mxu0 %v693
      %1005 = vmatpush.bf16.msra.mxu0 %v686
      %1006 = vmatpush.bf16.msra.mxu0 %v679
      %1007 = vmatpush.bf16.msra.mxu0 %v672
      %1008 = vmatpush.bf16.msra.mxu0 %v665
      %1009 = vmatpush.bf16.msra.mxu0 %v658
      %1010 = vmatpush.bf16.msra.mxu0 %v651
      %1011 = vmatmul.bf16.gmra.mxu0 %v366
      %v1012 = vpop.f32.mrf.mxu0
      %v1013 = vadd.f32 %v337, %v1012
      %v1014 = vpop.f32.mrf.mxu0
      %v1015 = vadd.f32 %v342, %v1014
      %1016 = vmatmul.bf16.gmra.mxu0 %v368
      %v1017 = vpop.f32.mrf.mxu0
      %v1018 = vadd.f32 %v347, %v1017
      %v1019 = vpop.f32.mrf.mxu0
      %v1020 = vadd.f32 %v352, %v1019
      %1021 = vdwg.mxu0
      %1022 = vmatpush.bf16.msra.mxu0 0
      %1023 = vmatpush.bf16.msra.mxu0 0
      %1024 = vmatpush.bf16.msra.mxu0 0
      %1025 = vmatpush.bf16.msra.mxu0 %v843
      %1026 = vmatpush.bf16.msra.mxu0 %v728
      %1027 = vmatpush.bf16.msra.mxu0 %v721
      %1028 = vmatpush.bf16.msra.mxu0 %v714
      %1029 = vmatpush.bf16.msra.mxu0 %v707
      %1030 = vmatmul.bf16.gmra.mxu0 %v824
      %v1031 = vpop.f32.mrf.mxu0
      %v1032 = vadd.f32 %v1013, %v1031
      %v1033 = vpop.f32.mrf.mxu0
      %v1034 = vadd.f32 %v1015, %v1033
      %1035 = vmatmul.bf16.gmra.mxu0 %v827
      %v1036 = vpop.f32.mrf.mxu0
      %v1037 = vadd.f32 %v1018, %v1036
      %v1038 = vpop.f32.mrf.mxu0
      %v1039 = vadd.f32 %v1020, %v1038
      %1040 = vdwg.mxu0
      %1041 = vmatpush.bf16.msra.mxu0 %v701
      %1042 = vmatpush.bf16.msra.mxu0 %v694
      %1043 = vmatpush.bf16.msra.mxu0 %v687
      %1044 = vmatpush.bf16.msra.mxu0 %v680
      %1045 = vmatpush.bf16.msra.mxu0 %v673
      %1046 = vmatpush.bf16.msra.mxu0 %v666
      %1047 = vmatpush.bf16.msra.mxu0 %v659
      %1048 = vmatpush.bf16.msra.mxu0 %v652
      %1049 = vmatmul.bf16.gmra.mxu0 %v366
      %v1050 = vpop.f32.mrf.mxu0
      %v1051 = vadd.f32 %v337, %v1050
      %v1052 = vpop.f32.mrf.mxu0
      %v1053 = vadd.f32 %v342, %v1052
      %1054 = vmatmul.bf16.gmra.mxu0 %v368
      %v1055 = vpop.f32.mrf.mxu0
      %v1056 = vadd.f32 %v347, %v1055
      %v1057 = vpop.f32.mrf.mxu0
      %v1058 = vadd.f32 %v352, %v1057
      %1059 = vdwg.mxu0
      %1060 = vmatpush.bf16.msra.mxu0 0
      %1061 = vmatpush.bf16.msra.mxu0 0
      %1062 = vmatpush.bf16.msra.mxu0 0
      %1063 = vmatpush.bf16.msra.mxu0 %v846
      %1064 = vmatpush.bf16.msra.mxu0 %v729
      %1065 = vmatpush.bf16.msra.mxu0 %v722
      %1066 = vmatpush.bf16.msra.mxu0 %v715
      %1067 = vmatpush.bf16.msra.mxu0 %v708
      %1068 = vmatmul.bf16.gmra.mxu0 %v824
      %v1069 = vpop.f32.mrf.mxu0
      %v1070 = vadd.f32 %v1051, %v1069
      %v1071 = vpop.f32.mrf.mxu0
      %v1072 = vadd.f32 %v1053, %v1071
      %1073 = vmatmul.bf16.gmra.mxu0 %v827
      %v1074 = vpop.f32.mrf.mxu0
      %v1075 = vadd.f32 %v1056, %v1074
      %v1076 = vpop.f32.mrf.mxu0
      %v1077 = vadd.f32 %v1058, %v1076
      %1078 = vdwg.mxu0
      %1079 = vmatpush.bf16.msra.mxu0 %v702
      %1080 = vmatpush.bf16.msra.mxu0 %v695
      %1081 = vmatpush.bf16.msra.mxu0 %v688
      %1082 = vmatpush.bf16.msra.mxu0 %v681
      %1083 = vmatpush.bf16.msra.mxu0 %v674
      %1084 = vmatpush.bf16.msra.mxu0 %v667
      %1085 = vmatpush.bf16.msra.mxu0 %v660
      %1086 = vmatpush.bf16.msra.mxu0 %v653
      %1087 = vmatmul.bf16.gmra.mxu0 %v366
      %v1088 = vpop.f32.mrf.mxu0
      %v1089 = vadd.f32 %v337, %v1088
      %v1090 = vpop.f32.mrf.mxu0
      %v1091 = vadd.f32 %v342, %v1090
      %1092 = vmatmul.bf16.gmra.mxu0 %v368
      %v1093 = vpop.f32.mrf.mxu0
      %v1094 = vadd.f32 %v347, %v1093
      %v1095 = vpop.f32.mrf.mxu0
      %v1096 = vadd.f32 %v352, %v1095
      %1097 = vdwg.mxu0
      %1098 = vmatpush.bf16.msra.mxu0 0
      %1099 = vmatpush.bf16.msra.mxu0 0
      %1100 = vmatpush.bf16.msra.mxu0 0
      %1101 = vmatpush.bf16.msra.mxu0 %v849
      %1102 = vmatpush.bf16.msra.mxu0 %v730
      %1103 = vmatpush.bf16.msra.mxu0 %v723
      %1104 = vmatpush.bf16.msra.mxu0 %v716
      %1105 = vmatpush.bf16.msra.mxu0 %v709
      %1106 = vmatmul.bf16.gmra.mxu0 %v824
      %v1107 = vpop.f32.mrf.mxu0
      %v1108 = vadd.f32 %v1089, %v1107
      %v1109 = vpop.f32.mrf.mxu0
      %v1110 = vadd.f32 %v1091, %v1109
      %1111 = vmatmul.bf16.gmra.mxu0 %v827
      %v1112 = vpop.f32.mrf.mxu0
      %v1113 = vadd.f32 %v1094, %v1112
      %v1114 = vpop.f32.mrf.mxu0
      %v1115 = vadd.f32 %v1096, %v1114
      %1116 = vdwg.mxu0
      %1129 = vrot.lane.b32.xlu0 %v918, 60
      %v1130 = vpop.permute.xlu0 %1129
      %1131 = vrot.lane.b32.xlu0 %v956, 60
      %v1132 = vpop.permute.xlu0 %1131
      %1133 = vrot.lane.b32.xlu0 %v994, 60
      %v1134 = vpop.permute.xlu0 %1133
      %1135 = vrot.lane.b32.xlu0 %v920, 60
      %v1136 = vpop.permute.xlu0 %1135
      %1137 = vrot.lane.b32.xlu0 %v958, 60
      %v1138 = vpop.permute.xlu0 %1137
      %1139 = vrot.lane.b32.xlu0 %v996, 60
      %v1140 = vpop.permute.xlu0 %1139
      %1141 = vrot.lane.b32.xlu0 %v923, 60
      %v1142 = vpop.permute.xlu0 %1141
      %1143 = vrot.lane.b32.xlu0 %v961, 60
      %v1144 = vpop.permute.xlu0 %1143
      %1145 = vrot.lane.b32.xlu0 %v999, 60
      %v1146 = vpop.permute.xlu0 %1145
      %1147 = vrot.lane.b32.xlu0 %v925, 60
      %v1148 = vpop.permute.xlu0 %1147
      %1149 = vrot.lane.b32.xlu0 %v963, 60
      %v1150 = vpop.permute.xlu0 %1149
      %1151 = vrot.lane.b32.xlu0 %v1001, 60
      %v1152 = vpop.permute.xlu0 %1151
      %vm1153 = vcmask 490496
      %v1154 = vsel %vm1153, %v1130, %v1132
      %v1155 = vsel %vm1153, %v1132, %v1134
      %v1156 = vsel %vm1153, %v1136, %v1138
      %v1157 = vsel %vm1153, %v1138, %v1140
      %v1158 = vsel %vm1153, %v1142, %v1144
      %v1159 = vsel %vm1153, %v1144, %v1146
      %v1160 = vsel %vm1153, %v1148, %v1150
      %v1161 = vsel %vm1153, %v1150, %v1152
      %v1170 = vmax.f32 %v880, %v1154
      %v1171 = vmax.f32 %v918, %v1155
      %v1172 = vmax.f32 %v882, %v1156
      %v1173 = vmax.f32 %v920, %v1157
      %v1174 = vmax.f32 %v885, %v1158
      %v1175 = vmax.f32 %v923, %v1159
      %v1176 = vmax.f32 %v887, %v1160
      %v1177 = vmax.f32 %v925, %v1161
      %1190 = vrot.lane.b32.xlu0 %v1032, 60
      %v1191 = vpop.permute.xlu0 %1190
      %1192 = vrot.lane.b32.xlu0 %v1070, 60
      %v1193 = vpop.permute.xlu0 %1192
      %1194 = vrot.lane.b32.xlu0 %v1108, 60
      %v1195 = vpop.permute.xlu0 %1194
      %1196 = vrot.lane.b32.xlu0 %v1034, 60
      %v1197 = vpop.permute.xlu0 %1196
      %1198 = vrot.lane.b32.xlu0 %v1072, 60
      %v1199 = vpop.permute.xlu0 %1198
      %1200 = vrot.lane.b32.xlu0 %v1110, 60
      %v1201 = vpop.permute.xlu0 %1200
      %1202 = vrot.lane.b32.xlu0 %v1037, 60
      %v1203 = vpop.permute.xlu0 %1202
      %1204 = vrot.lane.b32.xlu0 %v1075, 60
      %v1205 = vpop.permute.xlu0 %1204
      %1206 = vrot.lane.b32.xlu0 %v1113, 60
      %v1207 = vpop.permute.xlu0 %1206
      %1208 = vrot.lane.b32.xlu0 %v1039, 60
      %v1209 = vpop.permute.xlu0 %1208
      %1210 = vrot.lane.b32.xlu0 %v1077, 60
      %v1211 = vpop.permute.xlu0 %1210
      %1212 = vrot.lane.b32.xlu0 %v1115, 60
      %v1213 = vpop.permute.xlu0 %1212
      %v1214 = vsel %vm1153, %v1191, %v1193
      %v1215 = vsel %vm1153, %v1193, %v1195
      %v1216 = vsel %vm1153, %v1197, %v1199
      %v1217 = vsel %vm1153, %v1199, %v1201
      %v1218 = vsel %vm1153, %v1203, %v1205
      %v1219 = vsel %vm1153, %v1205, %v1207
      %v1220 = vsel %vm1153, %v1209, %v1211
      %v1221 = vsel %vm1153, %v1211, %v1213
      %v1230 = vmax.f32 %v994, %v1214
      %v1231 = vmax.f32 %v1032, %v1215
      %v1232 = vmax.f32 %v996, %v1216
      %v1233 = vmax.f32 %v1034, %v1217
      %v1234 = vmax.f32 %v999, %v1218
      %v1235 = vmax.f32 %v1037, %v1219
      %v1236 = vmax.f32 %v1001, %v1220
      %v1237 = vmax.f32 %v1039, %v1221
      %1246 = vrot.lane.b32.xlu0 %v1230, 120
      %v1247 = vpop.permute.xlu0 %1246
      %1248 = vrot.lane.b32.xlu0 %v1231, 120
      %v1249 = vpop.permute.xlu0 %1248
      %1250 = vrot.lane.b32.xlu0 %v1232, 120
      %v1251 = vpop.permute.xlu0 %1250
      %1252 = vrot.lane.b32.xlu0 %v1233, 120
      %v1253 = vpop.permute.xlu0 %1252
      %1254 = vrot.lane.b32.xlu0 %v1234, 120
      %v1255 = vpop.permute.xlu0 %1254
      %1256 = vrot.lane.b32.xlu0 %v1235, 120
      %v1257 = vpop.permute.xlu0 %1256
      %1258 = vrot.lane.b32.xlu0 %v1236, 120
      %v1259 = vpop.permute.xlu0 %1258
      %1260 = vrot.lane.b32.xlu0 %v1237, 120
      %v1261 = vpop.permute.xlu0 %1260
      %vm1262 = vcmask 982016
      %v1263 = vsel %vm1262, %v1247, %v1249
      %v1264 = vsel %vm1262, %v1251, %v1253
      %v1265 = vsel %vm1262, %v1255, %v1257
      %v1266 = vsel %vm1262, %v1259, %v1261
      %v1275 = vmax.f32 %v1170, %v1263
      %v1276 = vmax.f32 %v1171, %v1249
      %v1277 = vmax.f32 %v1172, %v1264
      %v1278 = vmax.f32 %v1173, %v1253
      %v1279 = vmax.f32 %v1174, %v1265
      %v1280 = vmax.f32 %v1175, %v1257
      %v1281 = vmax.f32 %v1176, %v1266
      %v1282 = vmax.f32 %v1177, %v1261
      %v1283 = vld [vmem:[%s3] sm:$0xff]
      %v1284 = vld [vmem:[%s3 + $0x8] sm:$0xf]
      %v1285 = vld [vmem:[%s4] sm:$0xff]
      %v1286 = vld [vmem:[%s4 + $0x8] sm:$0xf]
      %1288 = vset.pattern.permute.xlu0 0
      %1289 = vperm.xlu0 %1288, %v1285
      %v1290 = vpop.permute.xlu0 %1289
      %1293 = vset.pattern.permute.xlu0 0
      %1294 = vperm.xlu0 %1293, %v1286
      %v1295 = vpop.permute.xlu0 %1294
      %vm1297 = vcmask 261120
      %v1299 = vsel %vm1297, %v1283, 0
      %v1302 = vsel %vm1297, %v1284, 0
      %1304 = vmatpush.msra.mxu0 0.0
      %1305 = vmatpush.msra.mxu0 0.0
      %1306 = vmatpush.msra.mxu0 0.0
      %1307 = vmatpush.msra.mxu0 0.0
      %1308 = vmatpush.msra.mxu0 0.0
      %1309 = vmatpush.msra.mxu0 0.0
      %1310 = vmatpush.msra.mxu0 0.0
      %1311 = vmatpush.msra.mxu0 0.0
      %1312 = vmatpush.msra.mxu0 0.0
      %1313 = vmatpush.msra.mxu0 0.0
      %1314 = vmatpush.msra.mxu0 0.0
      %1315 = vmatpush.msra.mxu0 0.0
      %1316 = vmatpush.msra.mxu0 %v1281
      %1317 = vmatpush.msra.mxu0 %v1279
      %1318 = vmatpush.msra.mxu0 %v1277
      %1319 = vmatpush.msra.mxu0 %v1275
      %1320 = vmatmul.f32.gmra.mxu0 %v1299
      %v1321 = vpop.f32.mrf.mxu0
      %v1322 = vadd.f32 %v1290, %v1321
      %1323 = vmatmul.f32.gmra.mxu0 %v1302
      %v1324 = vpop.f32.mrf.mxu0
      %v1325 = vadd.f32 %v1295, %v1324
      %1326 = vdwg.mxu0
      %1327 = vmatpush.msra.mxu0 0.0
      %1328 = vmatpush.msra.mxu0 0.0
      %1329 = vmatpush.msra.mxu0 0.0
      %1330 = vmatpush.msra.mxu0 0.0
      %1331 = vmatpush.msra.mxu0 0.0
      %1332 = vmatpush.msra.mxu0 0.0
      %1333 = vmatpush.msra.mxu0 0.0
      %1334 = vmatpush.msra.mxu0 0.0
      %1335 = vmatpush.msra.mxu0 0.0
      %1336 = vmatpush.msra.mxu0 0.0
      %1337 = vmatpush.msra.mxu0 0.0
      %1338 = vmatpush.msra.mxu0 0.0
      %1339 = vmatpush.msra.mxu0 %v1282
      %1340 = vmatpush.msra.mxu0 %v1280
      %1341 = vmatpush.msra.mxu0 %v1278
      %1342 = vmatpush.msra.mxu0 %v1276
      %1343 = vmatmul.f32.gmra.mxu0 %v1299
      %v1344 = vpop.f32.mrf.mxu0
      %v1345 = vadd.f32 %v1290, %v1344
      %1346 = vmatmul.f32.gmra.mxu0 %v1302
      %v1347 = vpop.f32.mrf.mxu0
      %v1348 = vadd.f32 %v1295, %v1347
      %1349 = vdwg.mxu0
      %1350 = vst [vmem:[%s224] sm:$0xff] %v1322
      %vm1351 = vcmask 556032
      %1352 = vst.msk [vmem:[%s224 + $0x8] sm:$0xff] %vm1351, %v1345
      %1353 = vst [vmem:[%s224 + $0x10] sm:$0xf] %v1325
      %vm1354 = vcmask 551936
      %1355 = vst.msk [vmem:[%s224 + $0x18] sm:$0xf] %vm1354, %v1348
      %p1356 = scmp.lt.s32.totalorder %s16, 1
      %s1357 = scalar_select %p1356, %s16, 1
      %s1358 = smul.addr %s1357, 4
      %s1359 = smul.addr %s1358, 8
      %s1360 = scalar_lea.vmem %s5, %s1359
      // Predicated region
      $region41: #{competitive_block_forward.5} parent=39 // pred_check
        %p1361 = pneg %p144
      $region42: #{competitive_block_forward.5} parent=39 // pred_check_branch
        %1363 = sbr.rel (%p1361) target = $region44
      $region43: #{competitive_block_forward.5} parent=39 // pred_region
        _
      $region44: #{competitive_block_forward.5} parent=39 // pred_fallthru
        _
    $region40: #{competitive_block_forward.5} parent=5 // pred_fallthru
      _
    %p1364 = scmp.le.s32.totalorder 2, %s11
    // Predicated region
    $region45: #{competitive_block_forward.5} parent=5 // pred_check
      %p1365 = pneg %p1364
    $region46: #{competitive_block_forward.5} parent=5 // pred_check_branch
      %1367 = sbr.rel (%p1365) target = $region48
    $region47: #{competitive_block_forward.5} parent=5 // pred_region
      %s1368 = ssub.s32 %s11, 2
      // Predicated region
      $region49: #{competitive_block_forward.5} parent=47 // pred_check
        %p1369 = pneg %p150
      $region50: #{competitive_block_forward.5} parent=47 // pred_check_branch
        %1371 = sbr.rel (%p1369) target = $region52
      $region51: #{competitive_block_forward.5} parent=47 // pred_region
        %p1372 = scmp.lt.s32.totalorder %s17, 1
        %s1373 = scalar_select %p1372, %s17, 1
        %s1374 = smul.addr %s1373, 4
        %s1375 = smul.addr %s1374, 8
        %s1376 = scalar_lea.vmem %s5, %s1375
      $region52: #{competitive_block_forward.5} parent=47 // pred_fallthru
        _
    $region48: #{competitive_block_forward.5} parent=5 // pred_fallthru
      _
  $region6: #{competitive_block_forward.5} parent=0 // loop_footer
    %s15 = sadd.s32 1, %s11
  $region7: #{competitive_block_forward.5} parent=0 // loop_footer_branch
    %10 = sbr.rel target = $region3
  $region8: #{competitive_block_forward.5} parent=0 // loop_exit
    _

</llo_original>
